<compile_context>
chip_gen: v7x
topology: tpu7x:2x2x1
jax: 0.10.0
libtpu: 0.0.40
codegen_flags: <defaults>
</compile_context>

<pallas_src>
import functools

import jax
import jax.numpy as jnp
from jax.experimental import pallas as pl
from jax.experimental.pallas import tpu as pltpu

HIDDEN = 256          # hidden_size of the module (default)
HALF = HIDDEN // 2    # 128
OUT_DIM = 4           # rgb(3) + alpha(1)


def _round_up(n, m):
    return ((n + m - 1) // m) * m


def _nerf_kernel(x_ref, wx_ref, wh_ref, wo_ref, b_ref, o_ref):
    """x_ref: (tm, 66) f32 raw rows.  Weight slabs are resident in VMEM.

    wx_ref : (66, 384) bf16  -> [:, :256] = w1 (dir rows zero),
                                [:, 256:] = w4_dir (xyz rows zero)
    wh_ref : (512, 256) bf16 -> [:256] = w2, [256:] = w3
    wo_ref : (512, 128) bf16 -> [:256] = w4_feat, [256:384] = w5,
                                [384:, :3] = w_rgb (rest zero)
    b_ref  : (8, 256) f32    -> rows b1,b2,b3,b4,b5,b_rgb, w_alpha, b_alpha
    """
    f32 = jnp.float32
    bf16 = jnp.bfloat16

    xin = x_ref[...].astype(bf16)                               # (tm, 66)

    # layer1 + relu (dir lanes hit zero weight rows)
    h = jnp.dot(xin, wx_ref[:, :HIDDEN],
                preferred_element_type=f32) + b_ref[0:1, :]
    h = jnp.maximum(h, 0.0).astype(bf16)

    # layer2 + relu
    h = jnp.dot(h, wh_ref[0:HIDDEN, :],
                preferred_element_type=f32) + b_ref[1:2, :]
    x_ = jnp.maximum(h, 0.0).astype(bf16)                       # (tm, 256)

    # fc_alpha on the VPU/XLU instead of the MXU: one dot-product per row.
    alpha = (jnp.sum(x_.astype(f32) * b_ref[6:7, :], axis=-1, keepdims=True)
             + b_ref[7:8, 0:1])                                 # (tm, 1)

    # layer3 (no relu) -> feat
    feat = (jnp.dot(x_, wh_ref[HIDDEN:, :], preferred_element_type=f32)
            + b_ref[2:3, :]).astype(bf16)

    # layer4 on cat(feat, direction): two matmuls, dir comes straight from xin
    y = (jnp.dot(feat, wo_ref[0:HIDDEN, :], preferred_element_type=f32)
         + jnp.dot(xin, wx_ref[:, HIDDEN:], preferred_element_type=f32)
         + b_ref[3:4, :HALF])
    y = jnp.maximum(y, 0.0).astype(bf16)

    # layer5 + relu
    y = (jnp.dot(y, wo_ref[HIDDEN:HIDDEN + HALF, :], preferred_element_type=f32)
         + b_ref[4:5, :HALF])
    y = jnp.maximum(y, 0.0).astype(bf16)

    # fc_rgb: rgb packed into the first 3 cols of a lane-dense 128-wide slab
    rgb = (jnp.dot(y, wo_ref[HIDDEN + HALF:, :], preferred_element_type=f32)
           + b_ref[5:6, :HALF])                                 # (tm, 128)

    lane = jax.lax.broadcasted_iota(jnp.int32, o_ref.shape, 1)  # (tm, 4)
    o_ref[...] = jnp.where(lane == 3, alpha,
                           rgb[:, :OUT_DIM]).astype(o_ref.dtype)


@functools.partial(jax.jit, static_argnames=("tm",))
def replicate_nerf_forward(x, params, *, tm=1024):
    """x: (..., dim_xyz + dim_dir) f32 -> (..., 4) f32 (rgb, alpha)."""
    # bf16 min tile is (16, 128); multiples of 256 recommended for the MXU.
    assert tm % 16 == 0
    bf16, f32 = jnp.bfloat16, jnp.float32

    dim_xyz = params["w1"].shape[0]
    dim_dir = params["w4"].shape[0] - HIDDEN
    din = dim_xyz + dim_dir

    lead_shape = x.shape[:-1]
    x2 = x.reshape(-1, din).astype(f32)
    n = x2.shape[0]

    # Clamp tm to the actual N: keep >= ~4 grid steps (v7x megacore balance)
    # and avoid burning MXU cycles on padding rows when N is small.
    tm_eff = min(tm, max(256, _round_up(pl.cdiv(n, 4), 256)))
    n_pad = _round_up(n, tm_eff)
    if n_pad != n:
        # Only pays a copy when N is not a tile multiple; pick N % tm == 0 in
        # production to keep the input path zero-copy.
        x2 = jnp.pad(x2, ((0, n_pad - n), (0, 0)))

    # ---- weights packed into 3 bf16 slabs + one f32 bias/alpha slab ----
    # wx: K = din = 66 lanes shared by layer1 and layer4's dir matmul;
    #     the rows belonging to the *other* operand are zero.
    wx = jnp.zeros((din, HIDDEN + HALF), bf16)
    wx = wx.at[:dim_xyz, :HIDDEN].set(params["w1"].astype(bf16))
    wx = wx.at[dim_xyz:, HIDDEN:].set(params["w4"][HIDDEN:].astype(bf16))

    wh = jnp.concatenate([params["w2"], params["w3"]], axis=0).astype(bf16)

    wo = jnp.zeros((HIDDEN + 2 * HALF, HALF), bf16)
    wo = wo.at[:HIDDEN].set(params["w4"][:HIDDEN].astype(bf16))
    wo = wo.at[HIDDEN:HIDDEN + HALF].set(params["w5"].astype(bf16))
    wo = wo.at[HIDDEN + HALF:, :3].set(params["w_rgb"].astype(bf16))

    bias = jnp.zeros((8, HIDDEN), f32)
    bias = bias.at[0, :].set(params["b1"].astype(f32))
    bias = bias.at[1, :].set(params["b2"].astype(f32))
    bias = bias.at[2, :].set(params["b3"].astype(f32))
    bias = bias.at[3, :HALF].set(params["b4"].astype(f32))
    bias = bias.at[4, :HALF].set(params["b5"].astype(f32))
    bias = bias.at[5, :3].set(params["b_rgb"].astype(f32))
    # w_alpha rounded to bf16 (to match the matmul-input policy), kept f32
    # for the VPU multiply-reduce.
    bias = bias.at[6, :].set(
        params["w_alpha"].astype(bf16).astype(f32).reshape(HIDDEN))
    bias = bias.at[7, 0].set(params["b_alpha"].astype(f32)[0])

    operands = (x2, wx, wh, wo, bias)

    in_specs = [
        pl.BlockSpec((tm_eff, din), lambda i: (i, 0)),
        pl.BlockSpec(wx.shape, lambda i: (0, 0)),
        pl.BlockSpec(wh.shape, lambda i: (0, 0)),
        pl.BlockSpec(wo.shape, lambda i: (0, 0)),
        pl.BlockSpec(bias.shape, lambda i: (0, 0)),
    ]
    out_spec = pl.BlockSpec((tm_eff, OUT_DIM), lambda i: (i, 0))

    macs = (din * HIDDEN + HIDDEN * HIDDEN + HIDDEN * HIDDEN
            + HIDDEN * HALF + din * HALF + HALF * HALF + HALF * HALF
            + HIDDEN)  # last term: alpha head on the VPU
    weight_bytes = int(sum(int(p.size) * p.dtype.itemsize
                           for p in (wx, wh, wo, bias)))
    cost = pl.CostEstimate(
        flops=2 * n_pad * macs,
        transcendentals=0,
        bytes_accessed=n_pad * din * 4 + n_pad * OUT_DIM * 4 + weight_bytes,
    )

    out = pl.pallas_call(
        _nerf_kernel,
        out_shape=jax.ShapeDtypeStruct((n_pad, OUT_DIM), jnp.float32),
        grid_spec=pltpu.PrefetchScalarGridSpec(
            num_scalar_prefetch=0,
            grid=(n_pad // tm_eff,),
            in_specs=in_specs,
            out_specs=out_spec,
        ),
        compiler_params=pltpu.CompilerParams(
            dimension_semantics=("parallel",),
            vmem_limit_bytes=32 * 1024 * 1024,  # v7x-safe (64 MiB physical)
        ),
        cost_estimate=cost,
    )(*operands)

    return out[:n].reshape(lead_shape + (OUT_DIM,))


def init_params(key, dim_xyz=39, dim_dir=27):
    """Shapes match the PyTorch module (weights stored transposed, (in, out))."""
    def linear(k, fan_in, fan_out):
        kw, kb = jax.random.split(k)
        w = jax.random.normal(kw, (fan_in, fan_out), jnp.float32) * (fan_in ** -0.5)
        b = 0.01 * jax.random.normal(kb, (fan_out,), jnp.float32)
        return w, b

    keys = jax.random.split(key, 7)
    w1, b1 = linear(keys[0], dim_xyz, HIDDEN)
    w2, b2 = linear(keys[1], HIDDEN, HIDDEN)
    w3, b3 = linear(keys[2], HIDDEN, HIDDEN)
    w_alpha, b_alpha = linear(keys[3], HIDDEN, 1)
    w4, b4 = linear(keys[4], HIDDEN + dim_dir, HALF)
    w5, b5 = linear(keys[5], HALF, HALF)
    w_rgb, b_rgb = linear(keys[6], HALF, 3)
    return dict(w1=w1, b1=b1, w2=w2, b2=b2, w3=w3, b3=b3,
                w_alpha=w_alpha, b_alpha=b_alpha,
                w4=w4, b4=b4, w5=w5, b5=b5, w_rgb=w_rgb, b_rgb=b_rgb)


def reference_forward(x, params):
    """Pure-JAX reference with the same bf16-in / f32-accumulate matmul policy."""
    bf16 = jnp.bfloat16

    def mm(a, w):
        return jnp.dot(a.astype(bf16), w.astype(bf16),
                       preferred_element_type=jnp.float32)

    dim_xyz = params["w1"].shape[0]
    xyz, dirn = x[..., :dim_xyz], x[..., dim_xyz:]
    x_ = jax.nn.relu(mm(xyz, params["w1"]) + params["b1"])
    x_ = jax.nn.relu(mm(x_, params["w2"]) + params["b2"])
    feat = mm(x_, params["w3"]) + params["b3"]
    alpha = mm(x_, params["w_alpha"]) + params["b_alpha"]
    y = jax.nn.relu(mm(jnp.concatenate([feat, dirn], axis=-1), params["w4"])
                    + params["b4"])
    y = jax.nn.relu(mm(y, params["w5"]) + params["b5"])
    rgb = mm(y, params["w_rgb"]) + params["b_rgb"]
    return jnp.concatenate([rgb, alpha], axis=-1)


if __name__ == "__main__":
    key = jax.random.PRNGKey(0)
    key, kx = jax.random.split(key)

    dim_xyz = 3 + 2 * 3 * 6   # 39 (include_input_xyz=True, 6 encoding fns)
    dim_dir = 3 + 2 * 3 * 4   # 27 (include_input_dir=True, 4 encoding fns)
    n_points = 1000           # not a tile multiple -> exercises the pad path

    x = jax.random.normal(kx, (n_points, dim_xyz + dim_dir), jnp.float32)
    params = init_params(key, dim_xyz=dim_xyz, dim_dir=dim_dir)

    # tm auto-clamps to 256 here (4 grid steps); sweep tm in {512,1024,2048}
    # for production N (keep N % tm == 0 for the zero-copy input path).
    out = replicate_nerf_forward(x, params, tm=1024)
    out = jax.block_until_ready(out)

    ref = reference_forward(x, params)
    assert out.shape == (n_points, 4)
    # bf16 matmul inputs on both sides -> differences are accumulation-order only.
    assert jnp.allclose(out, ref, atol=1e-2, rtol=1e-2), float(
        jnp.max(jnp.abs(out - ref)))

    print("KERNEL_OK")
</pallas_src>

<mosaic_0001>
module attributes {stable_mosaic.version = 11 : i64} {
  func.func @_nerf_kernel(%arg0: i32, %arg1: memref<256x66xf32, #tpu.memory_space<vmem>>, %arg2: memref<66x384xbf16, #tpu.memory_space<vmem>>, %arg3: memref<512x256xbf16, #tpu.memory_space<vmem>>, %arg4: memref<512x128xbf16, #tpu.memory_space<vmem>>, %arg5: memref<8x256xf32, #tpu.memory_space<vmem>>, %arg6: memref<256x4xf32, #tpu.memory_space<vmem>>) attributes {dimension_semantics = [#tpu.dimension_semantics<parallel>], iteration_bounds = array<i64: 4>, scalar_prefetch = 0 : i64, scratch_operands = 0 : i64, tpu.core_type = #tpu.core_type<tc>, window_params = [{transform_indices = @transform_0, window_bounds = array<i64: 256, 66>}, {pipeline_mode = #tpu.pipeline_mode<synchronous>, transform_indices = @transform_1, window_bounds = array<i64: 66, 384>}, {pipeline_mode = #tpu.pipeline_mode<synchronous>, transform_indices = @transform_2, window_bounds = array<i64: 512, 256>}, {pipeline_mode = #tpu.pipeline_mode<synchronous>, transform_indices = @transform_3, window_bounds = array<i64: 512, 128>}, {pipeline_mode = #tpu.pipeline_mode<synchronous>, transform_indices = @transform_4, window_bounds = array<i64: 8, 256>}, {transform_indices = @transform_5, window_bounds = array<i64: 256, 4>}]} {
    %c0 = arith.constant 0 : index
    %c0_0 = arith.constant 0 : index
    %0 = vector.load %arg1[%c0, %c0_0] : memref<256x66xf32, #tpu.memory_space<vmem>>, vector<256x66xf32>
    %1 = arith.truncf %0 : vector<256x66xf32> to vector<256x66xbf16>
    %c0_1 = arith.constant 0 : index
    %c0_2 = arith.constant 0 : index
    %2 = vector.load %arg2[%c0_1, %c0_2] : memref<66x384xbf16, #tpu.memory_space<vmem>>, vector<66x256xbf16>
    %cst = arith.constant dense<0.000000e+00> : vector<256x256xf32>
    %3 = tpu.matmul %1, %2, %cst {dimension_numbers = #tpu.dot_dimension_numbers<[1], [0], [0], [1], [0, 0, 1, 1], [], []>} : vector<256x66xbf16>, vector<66x256xbf16>, vector<256x256xf32> -> vector<256x256xf32>
    %c0_3 = arith.constant 0 : index
    %c0_4 = arith.constant 0 : index
    %4 = vector.load %arg5[%c0_3, %c0_4] : memref<8x256xf32, #tpu.memory_space<vmem>>, vector<1x256xf32>
    %5 = vector.broadcast %4 : vector<1x256xf32> to vector<256x256xf32>
    %6 = arith.addf %3, %5 : vector<256x256xf32>
    %cst_5 = arith.constant 0.000000e+00 : f32
    %7 = vector.broadcast %cst_5 : f32 to vector<256x256xf32>
    %8 = arith.maximumf %6, %7 : vector<256x256xf32>
    %9 = arith.truncf %8 : vector<256x256xf32> to vector<256x256xbf16>
    %c0_6 = arith.constant 0 : index
    %c0_7 = arith.constant 0 : index
    %10 = vector.load %arg3[%c0_6, %c0_7] : memref<512x256xbf16, #tpu.memory_space<vmem>>, vector<256x256xbf16>
    %cst_8 = arith.constant dense<0.000000e+00> : vector<256x256xf32>
    %11 = tpu.matmul %9, %10, %cst_8 {dimension_numbers = #tpu.dot_dimension_numbers<[1], [0], [0], [1], [0, 0, 1, 1], [], []>} : vector<256x256xbf16>, vector<256x256xbf16>, vector<256x256xf32> -> vector<256x256xf32>
    %c1 = arith.constant 1 : index
    %c0_9 = arith.constant 0 : index
    %12 = vector.load %arg5[%c1, %c0_9] : memref<8x256xf32, #tpu.memory_space<vmem>>, vector<1x256xf32>
    %13 = vector.broadcast %12 : vector<1x256xf32> to vector<256x256xf32>
    %14 = arith.addf %11, %13 : vector<256x256xf32>
    %cst_10 = arith.constant 0.000000e+00 : f32
    %15 = vector.broadcast %cst_10 : f32 to vector<256x256xf32>
    %16 = arith.maximumf %14, %15 : vector<256x256xf32>
    %17 = arith.truncf %16 : vector<256x256xf32> to vector<256x256xbf16>
    %18 = arith.extf %17 : vector<256x256xbf16> to vector<256x256xf32>
    %c6 = arith.constant 6 : index
    %c0_11 = arith.constant 0 : index
    %19 = vector.load %arg5[%c6, %c0_11] : memref<8x256xf32, #tpu.memory_space<vmem>>, vector<1x256xf32>
    %20 = vector.broadcast %19 : vector<1x256xf32> to vector<256x256xf32>
    %21 = arith.mulf %18, %20 : vector<256x256xf32>
    %cst_12 = arith.constant dense<0.000000e+00> : vector<256xf32>
    %22 = vector.multi_reduction <add>, %21, %cst_12 [1] : vector<256x256xf32> to vector<256xf32>
    %23 = vector.shape_cast %22 : vector<256xf32> to vector<256x1xf32>
    %c7 = arith.constant 7 : index
    %c0_13 = arith.constant 0 : index
    %24 = vector.load %arg5[%c7, %c0_13] : memref<8x256xf32, #tpu.memory_space<vmem>>, vector<1x1xf32>
    %25 = vector.broadcast %24 : vector<1x1xf32> to vector<256x1xf32>
    %26 = arith.addf %23, %25 : vector<256x1xf32>
    %c256 = arith.constant 256 : index
    %c0_14 = arith.constant 0 : index
    %27 = vector.load %arg3[%c256, %c0_14] : memref<512x256xbf16, #tpu.memory_space<vmem>>, vector<256x256xbf16>
    %cst_15 = arith.constant dense<0.000000e+00> : vector<256x256xf32>
    %28 = tpu.matmul %17, %27, %cst_15 {dimension_numbers = #tpu.dot_dimension_numbers<[1], [0], [0], [1], [0, 0, 1, 1], [], []>} : vector<256x256xbf16>, vector<256x256xbf16>, vector<256x256xf32> -> vector<256x256xf32>
    %c2 = arith.constant 2 : index
    %c0_16 = arith.constant 0 : index
    %29 = vector.load %arg5[%c2, %c0_16] : memref<8x256xf32, #tpu.memory_space<vmem>>, vector<1x256xf32>
    %30 = vector.broadcast %29 : vector<1x256xf32> to vector<256x256xf32>
    %31 = arith.addf %28, %30 : vector<256x256xf32>
    %32 = arith.truncf %31 : vector<256x256xf32> to vector<256x256xbf16>
    %c0_17 = arith.constant 0 : index
    %c0_18 = arith.constant 0 : index
    %33 = vector.load %arg4[%c0_17, %c0_18] : memref<512x128xbf16, #tpu.memory_space<vmem>>, vector<256x128xbf16>
    %cst_19 = arith.constant dense<0.000000e+00> : vector<256x128xf32>
    %34 = tpu.matmul %32, %33, %cst_19 {dimension_numbers = #tpu.dot_dimension_numbers<[1], [0], [0], [1], [0, 0, 1, 1], [], []>} : vector<256x256xbf16>, vector<256x128xbf16>, vector<256x128xf32> -> vector<256x128xf32>
    %c0_20 = arith.constant 0 : index
    %c256_21 = arith.constant 256 : index
    %35 = vector.load %arg2[%c0_20, %c256_21] : memref<66x384xbf16, #tpu.memory_space<vmem>>, vector<66x128xbf16>
    %cst_22 = arith.constant dense<0.000000e+00> : vector<256x128xf32>
    %36 = tpu.matmul %1, %35, %cst_22 {dimension_numbers = #tpu.dot_dimension_numbers<[1], [0], [0], [1], [0, 0, 1, 1], [], []>} : vector<256x66xbf16>, vector<66x128xbf16>, vector<256x128xf32> -> vector<256x128xf32>
    %37 = arith.addf %34, %36 : vector<256x128xf32>
    %c3 = arith.constant 3 : index
    %c0_23 = arith.constant 0 : index
    %38 = vector.load %arg5[%c3, %c0_23] : memref<8x256xf32, #tpu.memory_space<vmem>>, vector<1x128xf32>
    %39 = vector.broadcast %38 : vector<1x128xf32> to vector<256x128xf32>
    %40 = arith.addf %37, %39 : vector<256x128xf32>
    %cst_24 = arith.constant 0.000000e+00 : f32
    %41 = vector.broadcast %cst_24 : f32 to vector<256x128xf32>
    %42 = arith.maximumf %40, %41 : vector<256x128xf32>
    %43 = arith.truncf %42 : vector<256x128xf32> to vector<256x128xbf16>
    %c256_25 = arith.constant 256 : index
    %c0_26 = arith.constant 0 : index
    %44 = vector.load %arg4[%c256_25, %c0_26] : memref<512x128xbf16, #tpu.memory_space<vmem>>, vector<128x128xbf16>
    %cst_27 = arith.constant dense<0.000000e+00> : vector<256x128xf32>
    %45 = tpu.matmul %43, %44, %cst_27 {dimension_numbers = #tpu.dot_dimension_numbers<[1], [0], [0], [1], [0, 0, 1, 1], [], []>} : vector<256x128xbf16>, vector<128x128xbf16>, vector<256x128xf32> -> vector<256x128xf32>
    %c4 = arith.constant 4 : index
    %c0_28 = arith.constant 0 : index
    %46 = vector.load %arg5[%c4, %c0_28] : memref<8x256xf32, #tpu.memory_space<vmem>>, vector<1x128xf32>
    %47 = vector.broadcast %46 : vector<1x128xf32> to vector<256x128xf32>
    %48 = arith.addf %45, %47 : vector<256x128xf32>
    %cst_29 = arith.constant 0.000000e+00 : f32
    %49 = vector.broadcast %cst_29 : f32 to vector<256x128xf32>
    %50 = arith.maximumf %48, %49 : vector<256x128xf32>
    %51 = arith.truncf %50 : vector<256x128xf32> to vector<256x128xbf16>
    %c384 = arith.constant 384 : index
    %c0_30 = arith.constant 0 : index
    %52 = vector.load %arg4[%c384, %c0_30] : memref<512x128xbf16, #tpu.memory_space<vmem>>, vector<128x128xbf16>
    %cst_31 = arith.constant dense<0.000000e+00> : vector<256x128xf32>
    %53 = tpu.matmul %51, %52, %cst_31 {dimension_numbers = #tpu.dot_dimension_numbers<[1], [0], [0], [1], [0, 0, 1, 1], [], []>} : vector<256x128xbf16>, vector<128x128xbf16>, vector<256x128xf32> -> vector<256x128xf32>
    %c5 = arith.constant 5 : index
    %c0_32 = arith.constant 0 : index
    %54 = vector.load %arg5[%c5, %c0_32] : memref<8x256xf32, #tpu.memory_space<vmem>>, vector<1x128xf32>
    %55 = vector.broadcast %54 : vector<1x128xf32> to vector<256x128xf32>
    %56 = arith.addf %53, %55 : vector<256x128xf32>
    %57 = tpu.iota {dimensions = array<i32: 1>} : vector<256x4xi32>
    %c3_i32 = arith.constant 3 : i32
    %58 = vector.broadcast %c3_i32 : i32 to vector<256x4xi32>
    %59 = arith.cmpi eq, %57, %58 : vector<256x4xi32>
    %60 = vector.extract_strided_slice %56 {offsets = [0, 0], sizes = [256, 4], strides = [1, 1]} : vector<256x128xf32> to vector<256x4xf32>
    %61 = vector.shape_cast %26 : vector<256x1xf32> to vector<256x1xf32>
    %62 = vector.broadcast %61 : vector<256x1xf32> to vector<256x4xf32>
    %63 = arith.select %59, %62, %60 : vector<256x4xi1>, vector<256x4xf32>
    %c0_33 = arith.constant 0 : index
    %c0_34 = arith.constant 0 : index
    %64 = vector.load %arg6[%c0_33, %c0_34] : memref<256x4xf32, #tpu.memory_space<vmem>>, vector<256x4xf32>
    tpu.vector_store %arg6[%c0_33, %c0_34], %63 {strides = array<i32>} : memref<256x4xf32, #tpu.memory_space<vmem>>, vector<256x4xf32>,
    return
  }
  func.func @transform_0(%arg0: i32) -> (i32, i32) {
    %c0_i32 = arith.constant 0 : i32
    %c0_i32_0 = arith.constant 0 : i32
    return %arg0, %c0_i32 : i32, i32
  }
  func.func @transform_1(%arg0: i32) -> (i32, i32) {
    %c0_i32 = arith.constant 0 : i32
    %c0_i32_0 = arith.constant 0 : i32
    %c0_i32_1 = arith.constant 0 : i32
    return %c0_i32, %c0_i32_0 : i32, i32
  }
  func.func @transform_2(%arg0: i32) -> (i32, i32) {
    %c0_i32 = arith.constant 0 : i32
    %c0_i32_0 = arith.constant 0 : i32
    %c0_i32_1 = arith.constant 0 : i32
    return %c0_i32, %c0_i32_0 : i32, i32
  }
  func.func @transform_3(%arg0: i32) -> (i32, i32) {
    %c0_i32 = arith.constant 0 : i32
    %c0_i32_0 = arith.constant 0 : i32
    %c0_i32_1 = arith.constant 0 : i32
    return %c0_i32, %c0_i32_0 : i32, i32
  }
  func.func @transform_4(%arg0: i32) -> (i32, i32) {
    %c0_i32 = arith.constant 0 : i32
    %c0_i32_0 = arith.constant 0 : i32
    %c0_i32_1 = arith.constant 0 : i32
    return %c0_i32, %c0_i32_0 : i32, i32
  }
  func.func @transform_5(%arg0: i32) -> (i32, i32) {
    %c0_i32 = arith.constant 0 : i32
    %c0_i32_0 = arith.constant 0 : i32
    return %arg0, %c0_i32 : i32, i32
  }
}

</mosaic_0001>

<llo_original>
// kernel: replicate_nerf_forward.1
$region0: #{replicate_nerf_forward.1}
  #allocation0 [shape = 'u32[]', space=smem, size = 0x4, offset = 0x4, fixed_abs, tag = 'smem constant byte address 0x4 - core index']
  #allocation1 [shape = 'u32[144,128]{1,0:T(1,128)}', space=vmem, size = 0x12000, scoped, tag = 'internal scratch']
  %s0 = inlined_call_operand.vmem [shape: f32[1024,66], index: 0, kind: input, shape index: {}]
  %s1 = inlined_call_operand.vmem [shape: bf16[66,384], index: 1, kind: input, shape index: {}]
  %s2 = inlined_call_operand.vmem [shape: bf16[512,256], index: 2, kind: input, shape index: {}]
  %s3 = inlined_call_operand.vmem [shape: bf16[512,128], index: 3, kind: input, shape index: {}]
  %s4 = inlined_call_operand.vmem [shape: f32[8,256], index: 4, kind: input, shape index: {}]
  %s5 = inlined_call_operand.vmem [shape: f32[1024,4], index: 5, kind: output, shape index: {}]
  %s6 = sld [smem:[#allocation0]]
  $region53: #{replicate_nerf_forward.1} parent=0
    _
  %s8 = ssub.s32 1, %s6
  %s9 = scalar_select 0, %s8, %s6
  loop: start=0, step=1, limit=6
  $region2: #{replicate_nerf_forward.1} parent=0 // loop_pre_header
    _
  $region3: #{replicate_nerf_forward.1} parent=0 // loop_header
    %s11 = sphi 0, %s15
    %p12 = scmp.ge.s32.totalorder %s11, 6
    %s21 = sphi 0, %s23
    %s24 = sphi 0, %s21
    %s25 = sphi 0, %s24
    %s41 = sphi 0, %s25
    %s45 = sphi 0, %s45
    %s47 = sphi 0, %s45
    %s48 = sphi 0, %s47
    %s62 = sphi 0, %s48
    %s66 = sphi 0, %s66
    %s68 = sphi 0, %s66
    %s69 = sphi 0, %s68
    %s83 = sphi 0, %s69
    %s87 = sphi 0, %s87
    %s89 = sphi 0, %s87
    %s90 = sphi 0, %s89
    %s104 = sphi 0, %s90
    %s108 = sphi 0, %s108
    %s110 = sphi 0, %s108
    %s111 = sphi 0, %s110
    %s125 = sphi 0, %s111
    %s131 = sphi 0, %s133
    %s134 = sphi 0, %s131
    %s135 = sphi 0, %s134
    %s151 = sphi 0, %s135
  $region4: #{replicate_nerf_forward.1} parent=0 // loop_header_branch
    %14 = sbr.rel (%p12) target = $region8
  $region5: #{replicate_nerf_forward.1} parent=0 // loop_body
    %s16 = ssub.s32 %s11, 1
    %s17 = ssub.s32 %s11, 2
    %s18 = sadd.s32 %s11, 1
    %s19 = ssub.s32 %s11, %s18
    %p20 = scmp.eq.s32.totalorder %s19, 0
    %s22 = sadd.s32 %s21, 1
    %s23 = scalar_select %p20, %s21, %s22
    %p26 = pneg %p20
    %p27 = scmp.eq.s32.totalorder %s11, 3
    %p28 = por %p26, %p27
    %p29 = scmp.ne.s32.totalorder %s21, %s24
    %p30 = scmp.eq.s32.totalorder %s11, 0
    %p31 = por %p29, %p30
    %p32 = scmp.ne.s32.totalorder %s21, %s24
    %p33 = scmp.eq.s32.totalorder %s16, 3
    %p34 = por %p32, %p33
    %p35 = scmp.ne.s32.totalorder %s24, %s25
    %p36 = scmp.eq.s32.totalorder %s16, 0
    %p37 = por %p35, %p36
    %p38 = scmp.ne.s32.totalorder %s24, %s25
    %p39 = scmp.eq.s32.totalorder %s17, 3
    %p40 = por %p38, %p39
    %p42 = scmp.ne.s32.totalorder %s25, %s41
    %p43 = scmp.eq.s32.totalorder %s17, 0
    %p44 = por %p42, %p43
    %s46 = sadd.s32 %s45, 1
    %p49 = scmp.eq.s32.totalorder %s11, 3
    %p50 = scmp.ne.s32.totalorder %s45, %s47
    %p51 = scmp.eq.s32.totalorder %s11, 0
    %p52 = por %p50, %p51
    %p53 = scmp.ne.s32.totalorder %s45, %s47
    %p54 = scmp.eq.s32.totalorder %s16, 3
    %p55 = por %p53, %p54
    %p56 = scmp.ne.s32.totalorder %s47, %s48
    %p57 = scmp.eq.s32.totalorder %s16, 0
    %p58 = por %p56, %p57
    %p59 = scmp.ne.s32.totalorder %s47, %s48
    %p60 = scmp.eq.s32.totalorder %s17, 3
    %p61 = por %p59, %p60
    %p63 = scmp.ne.s32.totalorder %s48, %s62
    %p64 = scmp.eq.s32.totalorder %s17, 0
    %p65 = por %p63, %p64
    %s67 = sadd.s32 %s66, 1
    %p70 = scmp.eq.s32.totalorder %s11, 3
    %p71 = scmp.ne.s32.totalorder %s66, %s68
    %p72 = scmp.eq.s32.totalorder %s11, 0
    %p73 = por %p71, %p72
    %p74 = scmp.ne.s32.totalorder %s66, %s68
    %p75 = scmp.eq.s32.totalorder %s16, 3
    %p76 = por %p74, %p75
    %p77 = scmp.ne.s32.totalorder %s68, %s69
    %p78 = scmp.eq.s32.totalorder %s16, 0
    %p79 = por %p77, %p78
    %p80 = scmp.ne.s32.totalorder %s68, %s69
    %p81 = scmp.eq.s32.totalorder %s17, 3
    %p82 = por %p80, %p81
    %p84 = scmp.ne.s32.totalorder %s69, %s83
    %p85 = scmp.eq.s32.totalorder %s17, 0
    %p86 = por %p84, %p85
    %s88 = sadd.s32 %s87, 1
    %p91 = scmp.eq.s32.totalorder %s11, 3
    %p92 = scmp.ne.s32.totalorder %s87, %s89
    %p93 = scmp.eq.s32.totalorder %s11, 0
    %p94 = por %p92, %p93
    %p95 = scmp.ne.s32.totalorder %s87, %s89
    %p96 = scmp.eq.s32.totalorder %s16, 3
    %p97 = por %p95, %p96
    %p98 = scmp.ne.s32.totalorder %s89, %s90
    %p99 = scmp.eq.s32.totalorder %s16, 0
    %p100 = por %p98, %p99
    %p101 = scmp.ne.s32.totalorder %s89, %s90
    %p102 = scmp.eq.s32.totalorder %s17, 3
    %p103 = por %p101, %p102
    %p105 = scmp.ne.s32.totalorder %s90, %s104
    %p106 = scmp.eq.s32.totalorder %s17, 0
    %p107 = por %p105, %p106
    %s109 = sadd.s32 %s108, 1
    %p112 = scmp.eq.s32.totalorder %s11, 3
    %p113 = scmp.ne.s32.totalorder %s108, %s110
    %p114 = scmp.eq.s32.totalorder %s11, 0
    %p115 = por %p113, %p114
    %p116 = scmp.ne.s32.totalorder %s108, %s110
    %p117 = scmp.eq.s32.totalorder %s16, 3
    %p118 = por %p116, %p117
    %p119 = scmp.ne.s32.totalorder %s110, %s111
    %p120 = scmp.eq.s32.totalorder %s16, 0
    %p121 = por %p119, %p120
    %p122 = scmp.ne.s32.totalorder %s110, %s111
    %p123 = scmp.eq.s32.totalorder %s17, 3
    %p124 = por %p122, %p123
    %p126 = scmp.ne.s32.totalorder %s111, %s125
    %p127 = scmp.eq.s32.totalorder %s17, 0
    %p128 = por %p126, %p127
    %s129 = ssub.s32 %s11, %s18
    %p130 = scmp.eq.s32.totalorder %s129, 0
    %s132 = sadd.s32 %s131, 1
    %s133 = scalar_select %p130, %s131, %s132
    %p136 = pneg %p130
    %p137 = scmp.eq.s32.totalorder %s11, 3
    %p138 = por %p136, %p137
    %p139 = scmp.ne.s32.totalorder %s131, %s134
    %p140 = scmp.eq.s32.totalorder %s11, 0
    %p141 = por %p139, %p140
    %p142 = scmp.ne.s32.totalorder %s131, %s134
    %p143 = scmp.eq.s32.totalorder %s16, 3
    %p144 = por %p142, %p143
    %p145 = scmp.ne.s32.totalorder %s134, %s135
    %p146 = scmp.eq.s32.totalorder %s16, 0
    %p147 = por %p145, %p146
    %p148 = scmp.ne.s32.totalorder %s134, %s135
    %p149 = scmp.eq.s32.totalorder %s17, 3
    %p150 = por %p148, %p149
    %p152 = scmp.ne.s32.totalorder %s135, %s151
    %p153 = scmp.eq.s32.totalorder %s17, 0
    %p154 = por %p152, %p153
    %p155 = scmp.le.s32.totalorder 1, %s11
    %p156 = scmp.lt.s32.totalorder %s11, 5
    %p157 = pnand %p155, %p156
    %p158 = pneg %p157
    // Predicated region
    $region9: #{replicate_nerf_forward.1} parent=5 // pred_check
      _
    $region10: #{replicate_nerf_forward.1} parent=5 // pred_check_branch
      %160 = sbr.rel (%p157) target = $region12
    $region11: #{replicate_nerf_forward.1} parent=5 // pred_region
      %s161 = ssub.s32 %s11, 1
      // Predicated region
      $region13: #{replicate_nerf_forward.1} parent=11 // pred_check
        %p162 = pneg %p58
      $region14: #{replicate_nerf_forward.1} parent=11 // pred_check_branch
        %164 = sbr.rel (%p162) target = $region16
      $region15: #{replicate_nerf_forward.1} parent=11 // pred_region
        _
      $region16: #{replicate_nerf_forward.1} parent=11 // pred_fallthru
        _
      // Predicated region
      $region17: #{replicate_nerf_forward.1} parent=11 // pred_check
        %p165 = pneg %p79
      $region18: #{replicate_nerf_forward.1} parent=11 // pred_check_branch
        %167 = sbr.rel (%p165) target = $region20
      $region19: #{replicate_nerf_forward.1} parent=11 // pred_region
        _
      $region20: #{replicate_nerf_forward.1} parent=11 // pred_fallthru
        _
      // Predicated region
      $region21: #{replicate_nerf_forward.1} parent=11 // pred_check
        %p168 = pneg %p100
      $region22: #{replicate_nerf_forward.1} parent=11 // pred_check_branch
        %170 = sbr.rel (%p168) target = $region24
      $region23: #{replicate_nerf_forward.1} parent=11 // pred_region
        _
      $region24: #{replicate_nerf_forward.1} parent=11 // pred_fallthru
        _
      // Predicated region
      $region25: #{replicate_nerf_forward.1} parent=11 // pred_check
        %p171 = pneg %p121
      $region26: #{replicate_nerf_forward.1} parent=11 // pred_check_branch
        %173 = sbr.rel (%p171) target = $region28
      $region27: #{replicate_nerf_forward.1} parent=11 // pred_region
        _
      $region28: #{replicate_nerf_forward.1} parent=11 // pred_fallthru
        _
    $region12: #{replicate_nerf_forward.1} parent=5 // pred_fallthru
      _
    %p174 = scmp.lt.s32.totalorder %s11, 4
    // Predicated region
    $region29: #{replicate_nerf_forward.1} parent=5 // pred_check
      %p175 = pneg %p174
    $region30: #{replicate_nerf_forward.1} parent=5 // pred_check_branch
      %177 = sbr.rel (%p175) target = $region32
    $region31: #{replicate_nerf_forward.1} parent=5 // pred_region
      // Predicated region
      $region33: #{replicate_nerf_forward.1} parent=31 // pred_check
        %p178 = pneg %p31
      $region34: #{replicate_nerf_forward.1} parent=31 // pred_check_branch
        %180 = sbr.rel (%p178) target = $region36
      $region35: #{replicate_nerf_forward.1} parent=31 // pred_region
        %s181 = smul.u32 32, %s11
        %p182 = scmp.lt.s32.totalorder %s181, 127
        %s183 = scalar_select %p182, %s181, 127
        %s184 = smul.addr %s183, 8
        %s185 = scalar_lea.vmem %s0, %s184
        %s186 = smul.u32 32, %s11
      $region36: #{replicate_nerf_forward.1} parent=31 // pred_fallthru
        _
    $region32: #{replicate_nerf_forward.1} parent=5 // pred_fallthru
      _
    %p187 = scmp.le.s32.totalorder 1, %s11
    %p188 = scmp.lt.s32.totalorder %s11, 5
    %p189 = pnand %p187, %p188
    %p190 = pneg %p189
    // Predicated region
    $region37: #{replicate_nerf_forward.1} parent=5 // pred_check
      _
    $region38: #{replicate_nerf_forward.1} parent=5 // pred_check_branch
      %192 = sbr.rel (%p189) target = $region40
    $region39: #{replicate_nerf_forward.1} parent=5 // pred_region
      %s193 = ssub.s32 %s11, 1
      %s194 = smul.u32 32, %s16
      %p195 = scmp.lt.s32.totalorder %s194, 127
      %s196 = scalar_select %p195, %s194, 127
      %s197 = smul.addr %s196, 8
      %s198 = scalar_lea.vmem %s0, %s197
      %p199 = pneg %p37
      %p200 = pneg %p34
      %p201 = pneg %p58
      %p202 = pneg %p55
      %p203 = pneg %p79
      %p204 = pneg %p76
      %p205 = pneg %p100
      %p206 = pneg %p97
      %p207 = pneg %p121
      %p208 = pneg %p118
      %p209 = pneg %p147
      %p210 = pneg %p144
      %s211 = smul.u32 32, %s16
      %p212 = scmp.lt.s32.totalorder %s211, 127
      %s213 = scalar_select %p212, %s211, 127
      %s214 = smul.addr %s213, 8
      %s215 = scalar_lea.vmem %s5, %s214
      %s216 = smul.u32 32, %s16
      %p217 = scmp.lt.s32.totalorder %s216, 127
      %s218 = scalar_select %p217, %s216, 127
      %s219 = smul.addr %s218, 8
      %s220 = scalar_lea.vmem %s0, %s219
      %s221 = smul.u32 32, %s16
      %s222 = smul.u32 32, %s16
      %p223 = scmp.lt.s32.totalorder %s222, 127
      %s224 = scalar_select %p223, %s222, 127
      %s225 = smul.addr %s224, 8
      %s226 = scalar_lea.vmem %s5, %s225
      %s227 = smul.u32 32, %s16
      %v229 = vld [vmem:[%s220] sm:$0xff]
      %v230 = vld [vmem:[%s220 + $0x8] sm:$0xff]
      %v231 = vld [vmem:[%s220 + $0x10] sm:$0xff]
      %v232 = vld [vmem:[%s220 + $0x18] sm:$0xff]
      %v233 = vld [vmem:[%s220 + $0x20] sm:$0xff]
      %v234 = vld [vmem:[%s220 + $0x28] sm:$0xff]
      %v235 = vld [vmem:[%s220 + $0x30] sm:$0xff]
      %v236 = vld [vmem:[%s220 + $0x38] sm:$0xff]
      %v237 = vld [vmem:[%s220 + $0x40] sm:$0xff]
      %v238 = vld [vmem:[%s220 + $0x48] sm:$0xff]
      %v239 = vld [vmem:[%s220 + $0x50] sm:$0xff]
      %v240 = vld [vmem:[%s220 + $0x58] sm:$0xff]
      %v241 = vld [vmem:[%s220 + $0x60] sm:$0xff]
      %v242 = vld [vmem:[%s220 + $0x68] sm:$0xff]
      %v243 = vld [vmem:[%s220 + $0x70] sm:$0xff]
      %v244 = vld [vmem:[%s220 + $0x78] sm:$0xff]
      %v245 = vld [vmem:[%s220 + $0x80] sm:$0xff]
      %v246 = vld [vmem:[%s220 + $0x88] sm:$0xff]
      %v247 = vld [vmem:[%s220 + $0x90] sm:$0xff]
      %v248 = vld [vmem:[%s220 + $0x98] sm:$0xff]
      %v249 = vld [vmem:[%s220 + $0xa0] sm:$0xff]
      %v250 = vld [vmem:[%s220 + $0xa8] sm:$0xff]
      %v251 = vld [vmem:[%s220 + $0xb0] sm:$0xff]
      %v252 = vld [vmem:[%s220 + $0xb8] sm:$0xff]
      %v253 = vld [vmem:[%s220 + $0xc0] sm:$0xff]
      %v254 = vld [vmem:[%s220 + $0xc8] sm:$0xff]
      %v255 = vld [vmem:[%s220 + $0xd0] sm:$0xff]
      %v256 = vld [vmem:[%s220 + $0xd8] sm:$0xff]
      %v257 = vld [vmem:[%s220 + $0xe0] sm:$0xff]
      %v258 = vld [vmem:[%s220 + $0xe8] sm:$0xff]
      %v259 = vld [vmem:[%s220 + $0xf0] sm:$0xff]
      %v260 = vld [vmem:[%s220 + $0xf8] sm:$0xff]
      %v261 = vpack.c.bf16 %v230, %v229
      %v262 = vpack.c.bf16 %v232, %v231
      %v263 = vpack.c.bf16 %v234, %v233
      %v264 = vpack.c.bf16 %v236, %v235
      %v265 = vpack.c.bf16 %v238, %v237
      %v266 = vpack.c.bf16 %v240, %v239
      %v267 = vpack.c.bf16 %v242, %v241
      %v268 = vpack.c.bf16 %v244, %v243
      %v269 = vpack.c.bf16 %v246, %v245
      %v270 = vpack.c.bf16 %v248, %v247
      %v271 = vpack.c.bf16 %v250, %v249
      %v272 = vpack.c.bf16 %v252, %v251
      %v273 = vpack.c.bf16 %v254, %v253
      %v274 = vpack.c.bf16 %v256, %v255
      %v275 = vpack.c.bf16 %v258, %v257
      %v276 = vpack.c.bf16 %v260, %v259
      %v277 = vld [vmem:[%s1] sm:$0xff]
      %v278 = vld [vmem:[%s1 + $0xc] sm:$0xff]
      %v279 = vld [vmem:[%s1 + $0x18] sm:$0xff]
      %v280 = vld [vmem:[%s1 + $0x24] sm:$0xff]
      %v281 = vld [vmem:[%s1 + $0x30] sm:$0xff]
      %v282 = vld [vmem:[%s1 + $0x3c] sm:$0xff]
      %v283 = vld [vmem:[%s1 + $0x48] sm:$0xff]
      %v284 = vld [vmem:[%s1 + $0x54] sm:$0xff]
      %v285 = vld [vmem:[%s1 + $0x60] sm:$0x11]
      %v286 = vld [vmem:[%s4] ss:$8 sm:$0x3]
      %v288 = vlaneseq
      %v289 = vshrl.u32 %v288, 7
      %v290 = vsub.s32 0, %v289
      %v291 = vrot.slane %v286, %v290
      %v292 = vlaneseq
      %v293 = vshrl.u32 %v292, 7
      %v294 = vsub.s32 1, %v293
      %v295 = vrot.slane %v286, %v294
      %v307 = vunpack.c.l.b16 %v277
      %v308 = vunpack.c.h.b16 %v277
      %v309 = vunpack.c.l.b16 %v278
      %v310 = vunpack.c.h.b16 %v278
      %v311 = vunpack.c.l.b16 %v279
      %v312 = vunpack.c.h.b16 %v279
      %v313 = vunpack.c.l.b16 %v280
      %v314 = vunpack.c.h.b16 %v280
      %v315 = vunpack.c.l.b16 %v281
      %v316 = vunpack.c.h.b16 %v281
      %v317 = vunpack.c.l.b16 %v282
      %v318 = vunpack.c.h.b16 %v282
      %v319 = vunpack.c.l.b16 %v283
      %v320 = vunpack.c.h.b16 %v283
      %v321 = vunpack.c.l.b16 %v284
      %v322 = vunpack.c.h.b16 %v284
      %v323 = vunpack.c.l.b16 %v285
      %v324 = vunpack.c.h.b16 %v285
      %v325 = vpack.c.b16 %v309, %v307
      %v326 = vpack.c.b16 %v310, %v308
      %v327 = vpack.c.b16 %v313, %v311
      %v328 = vpack.c.b16 %v314, %v312
      %v329 = vpack.c.b16 %v317, %v315
      %v330 = vpack.c.b16 %v318, %v316
      %v331 = vpack.c.b16 %v321, %v319
      %v332 = vpack.c.b16 %v322, %v320
      %v333 = vpack.c.b16 %v323, %v323
      %v334 = vpack.c.b16 %v324, %v324
      %vm343 = vcmask 539648
      %v345 = vsel %vm343, %v261, 0
      %v348 = vsel %vm343, %v262, 0
      %v351 = vsel %vm343, %v263, 0
      %v354 = vsel %vm343, %v264, 0
      %v357 = vsel %vm343, %v265, 0
      %v360 = vsel %vm343, %v266, 0
      %v363 = vsel %vm343, %v267, 0
      %v366 = vsel %vm343, %v268, 0
      %v369 = vsel %vm343, %v269, 0
      %v372 = vsel %vm343, %v270, 0
      %v375 = vsel %vm343, %v271, 0
      %v378 = vsel %vm343, %v272, 0
      %v381 = vsel %vm343, %v273, 0
      %v384 = vsel %vm343, %v274, 0
      %v387 = vsel %vm343, %v275, 0
      %v390 = vsel %vm343, %v276, 0
      %vm392 = vcmask 1040384
      %v394 = vsel %vm392, %v333, 0
      %v397 = vsel %vm392, %v334, 0
      %399 = vmatprep.subr.bf16.mxu0 %v326
      %400 = vmatpush1.bf16.msra.mxu0 %v325
      %401 = vmatprep.subr.bf16.mxu0 %v328
      %402 = vmatpush1.bf16.msra.mxu0 %v327
      %403 = vmatprep.subr.bf16.mxu0 %v330
      %404 = vmatpush1.bf16.msra.mxu0 %v329
      %405 = vmatprep.subr.bf16.mxu0 %v332
      %406 = vmatpush1.bf16.msra.mxu0 %v331
      %407 = vmatprep.subr.bf16.mxu0 %v397
      %408 = vmatpush1.bf16.msra.mxu0 %v394
      %409 = vmatprep.subr.bf16.mxu0 0
      %410 = vmatpush1.bf16.msra.mxu0 0
      %411 = vmatprep.subr.bf16.mxu0 0
      %412 = vmatpush1.bf16.msra.mxu0 0
      %413 = vmatprep.subr.bf16.mxu0 0
      %414 = vmatpush1.bf16.msra.mxu0 0
      %415 = vmatprep.subr.bf16.mxu0 0
      %416 = vmatpush1.bf16.msra.mxu0 0
      %417 = vmatprep.subr.bf16.mxu0 0
      %418 = vmatpush1.bf16.msra.mxu0 0
      %419 = vmatprep.subr.bf16.mxu0 0
      %420 = vmatpush1.bf16.msra.mxu0 0
      %421 = vmatprep.subr.bf16.mxu0 0
      %422 = vmatpush1.bf16.msra.mxu0 0
      %423 = vmatprep.subr.bf16.mxu0 0
      %424 = vmatpush1.bf16.msra.mxu0 0
      %425 = vmatprep.subr.bf16.mxu0 0
      %426 = vmatpush1.bf16.msra.mxu0 0
      %427 = vmatprep.subr.bf16.mxu0 0
      %428 = vmatpush1.bf16.msra.mxu0 0
      %429 = vmatprep.subr.bf16.mxu0 0
      %430 = vmatpush1.bf16.msra.mxu0 0
      %431 = vmatprep.mubr.bf16.mxu0 0
      %432 = vmatmul.mubr.bf16.gmra.mrb[0].mxu0 %v345
      %v433 = vpop.f32.mrb[0].mxu0
      %v434 = vadd.f32 %v291, %v433
      %v435 = vpop.f32.mrb[0].mxu0
      %v436 = vadd.f32 %v295, %v435
      %v437 = vpop.f32.mrb[0].mxu0
      %v438 = vadd.f32 %v291, %v437
      %v439 = vpop.f32.mrb[0].mxu0
      %v440 = vadd.f32 %v295, %v439
      %441 = vmatprep.mubr.bf16.mxu0 0
      %442 = vmatmul.mubr.bf16.gmra.mrb[0].mxu0 %v348
      %v443 = vpop.f32.mrb[0].mxu0
      %v444 = vadd.f32 %v291, %v443
      %v445 = vpop.f32.mrb[0].mxu0
      %v446 = vadd.f32 %v295, %v445
      %v447 = vpop.f32.mrb[0].mxu0
      %v448 = vadd.f32 %v291, %v447
      %v449 = vpop.f32.mrb[0].mxu0
      %v450 = vadd.f32 %v295, %v449
      %451 = vmatprep.mubr.bf16.mxu0 0
      %452 = vmatmul.mubr.bf16.gmra.mrb[0].mxu0 %v351
      %v453 = vpop.f32.mrb[0].mxu0
      %v454 = vadd.f32 %v291, %v453
      %v455 = vpop.f32.mrb[0].mxu0
      %v456 = vadd.f32 %v295, %v455
      %v457 = vpop.f32.mrb[0].mxu0
      %v458 = vadd.f32 %v291, %v457
      %v459 = vpop.f32.mrb[0].mxu0
      %v460 = vadd.f32 %v295, %v459
      %461 = vmatprep.mubr.bf16.mxu0 0
      %462 = vmatmul.mubr.bf16.gmra.mrb[0].mxu0 %v354
      %v463 = vpop.f32.mrb[0].mxu0
      %v464 = vadd.f32 %v291, %v463
      %v465 = vpop.f32.mrb[0].mxu0
      %v466 = vadd.f32 %v295, %v465
      %v467 = vpop.f32.mrb[0].mxu0
      %v468 = vadd.f32 %v291, %v467
      %v469 = vpop.f32.mrb[0].mxu0
      %v470 = vadd.f32 %v295, %v469
      %471 = vmatprep.mubr.bf16.mxu0 0
      %472 = vmatmul.mubr.bf16.gmra.mrb[0].mxu0 %v357
      %v473 = vpop.f32.mrb[0].mxu0
      %v474 = vadd.f32 %v291, %v473
      %v475 = vpop.f32.mrb[0].mxu0
      %v476 = vadd.f32 %v295, %v475
      %v477 = vpop.f32.mrb[0].mxu0
      %v478 = vadd.f32 %v291, %v477
      %v479 = vpop.f32.mrb[0].mxu0
      %v480 = vadd.f32 %v295, %v479
      %481 = vmatprep.mubr.bf16.mxu0 0
      %482 = vmatmul.mubr.bf16.gmra.mrb[0].mxu0 %v360
      %v483 = vpop.f32.mrb[0].mxu0
      %v484 = vadd.f32 %v291, %v483
      %v485 = vpop.f32.mrb[0].mxu0
      %v486 = vadd.f32 %v295, %v485
      %v487 = vpop.f32.mrb[0].mxu0
      %v488 = vadd.f32 %v291, %v487
      %v489 = vpop.f32.mrb[0].mxu0
      %v490 = vadd.f32 %v295, %v489
      %491 = vmatprep.mubr.bf16.mxu0 0
      %492 = vmatmul.mubr.bf16.gmra.mrb[0].mxu0 %v363
      %v493 = vpop.f32.mrb[0].mxu0
      %v494 = vadd.f32 %v291, %v493
      %v495 = vpop.f32.mrb[0].mxu0
      %v496 = vadd.f32 %v295, %v495
      %v497 = vpop.f32.mrb[0].mxu0
      %v498 = vadd.f32 %v291, %v497
      %v499 = vpop.f32.mrb[0].mxu0
      %v500 = vadd.f32 %v295, %v499
      %501 = vmatprep.mubr.bf16.mxu0 0
      %502 = vmatmul.mubr.bf16.gmra.mrb[0].mxu0 %v366
      %v503 = vpop.f32.mrb[0].mxu0
      %v504 = vadd.f32 %v291, %v503
      %v505 = vpop.f32.mrb[0].mxu0
      %v506 = vadd.f32 %v295, %v505
      %v507 = vpop.f32.mrb[0].mxu0
      %v508 = vadd.f32 %v291, %v507
      %v509 = vpop.f32.mrb[0].mxu0
      %v510 = vadd.f32 %v295, %v509
      %511 = vmatprep.mubr.bf16.mxu0 0
      %512 = vmatmul.mubr.bf16.gmra.mrb[0].mxu0 %v369
      %v513 = vpop.f32.mrb[0].mxu0
      %v514 = vadd.f32 %v291, %v513
      %v515 = vpop.f32.mrb[0].mxu0
      %v516 = vadd.f32 %v295, %v515
      %v517 = vpop.f32.mrb[0].mxu0
      %v518 = vadd.f32 %v291, %v517
      %v519 = vpop.f32.mrb[0].mxu0
      %v520 = vadd.f32 %v295, %v519
      %521 = vmatprep.mubr.bf16.mxu0 0
      %522 = vmatmul.mubr.bf16.gmra.mrb[0].mxu0 %v372
      %v523 = vpop.f32.mrb[0].mxu0
      %v524 = vadd.f32 %v291, %v523
      %v525 = vpop.f32.mrb[0].mxu0
      %v526 = vadd.f32 %v295, %v525
      %v527 = vpop.f32.mrb[0].mxu0
      %v528 = vadd.f32 %v291, %v527
      %v529 = vpop.f32.mrb[0].mxu0
      %v530 = vadd.f32 %v295, %v529
      %531 = vmatprep.mubr.bf16.mxu0 0
      %532 = vmatmul.mubr.bf16.gmra.mrb[0].mxu0 %v375
      %v533 = vpop.f32.mrb[0].mxu0
      %v534 = vadd.f32 %v291, %v533
      %v535 = vpop.f32.mrb[0].mxu0
      %v536 = vadd.f32 %v295, %v535
      %v537 = vpop.f32.mrb[0].mxu0
      %v538 = vadd.f32 %v291, %v537
      %v539 = vpop.f32.mrb[0].mxu0
      %v540 = vadd.f32 %v295, %v539
      %541 = vmatprep.mubr.bf16.mxu0 0
      %542 = vmatmul.mubr.bf16.gmra.mrb[0].mxu0 %v378
      %v543 = vpop.f32.mrb[0].mxu0
      %v544 = vadd.f32 %v291, %v543
      %v545 = vpop.f32.mrb[0].mxu0
      %v546 = vadd.f32 %v295, %v545
      %v547 = vpop.f32.mrb[0].mxu0
      %v548 = vadd.f32 %v291, %v547
      %v549 = vpop.f32.mrb[0].mxu0
      %v550 = vadd.f32 %v295, %v549
      %551 = vmatprep.mubr.bf16.mxu0 0
      %552 = vmatmul.mubr.bf16.gmra.mrb[0].mxu0 %v381
      %v553 = vpop.f32.mrb[0].mxu0
      %v554 = vadd.f32 %v291, %v553
      %v555 = vpop.f32.mrb[0].mxu0
      %v556 = vadd.f32 %v295, %v555
      %v557 = vpop.f32.mrb[0].mxu0
      %v558 = vadd.f32 %v291, %v557
      %v559 = vpop.f32.mrb[0].mxu0
      %v560 = vadd.f32 %v295, %v559
      %561 = vmatprep.mubr.bf16.mxu0 0
      %562 = vmatmul.mubr.bf16.gmra.mrb[0].mxu0 %v384
      %v563 = vpop.f32.mrb[0].mxu0
      %v564 = vadd.f32 %v291, %v563
      %v565 = vpop.f32.mrb[0].mxu0
      %v566 = vadd.f32 %v295, %v565
      %v567 = vpop.f32.mrb[0].mxu0
      %v568 = vadd.f32 %v291, %v567
      %v569 = vpop.f32.mrb[0].mxu0
      %v570 = vadd.f32 %v295, %v569
      %571 = vmatprep.mubr.bf16.mxu0 0
      %572 = vmatmul.mubr.bf16.gmra.mrb[0].mxu0 %v387
      %v573 = vpop.f32.mrb[0].mxu0
      %v574 = vadd.f32 %v291, %v573
      %v575 = vpop.f32.mrb[0].mxu0
      %v576 = vadd.f32 %v295, %v575
      %v577 = vpop.f32.mrb[0].mxu0
      %v578 = vadd.f32 %v291, %v577
      %v579 = vpop.f32.mrb[0].mxu0
      %v580 = vadd.f32 %v295, %v579
      %581 = vmatprep.mubr.bf16.mxu0 0
      %582 = vmatmul.mubr.bf16.gmra.mrb[0].mxu0 %v390
      %v583 = vpop.f32.mrb[0].mxu0
      %v584 = vadd.f32 %v291, %v583
      %v585 = vpop.f32.mrb[0].mxu0
      %v586 = vadd.f32 %v295, %v585
      %v587 = vpop.f32.mrb[0].mxu0
      %v588 = vadd.f32 %v291, %v587
      %v589 = vpop.f32.mrb[0].mxu0
      %v590 = vadd.f32 %v295, %v589
      %591 = vdwg.mxu0
      %v592 = vmax.f32 %v434, 0.0
      %v593 = vmax.f32 %v436, 0.0
      %v594 = vmax.f32 %v438, 0.0
      %v595 = vmax.f32 %v440, 0.0
      %v596 = vmax.f32 %v444, 0.0
      %v597 = vmax.f32 %v446, 0.0
      %v598 = vmax.f32 %v448, 0.0
      %v599 = vmax.f32 %v450, 0.0
      %v600 = vmax.f32 %v454, 0.0
      %v601 = vmax.f32 %v456, 0.0
      %v602 = vmax.f32 %v458, 0.0
      %v603 = vmax.f32 %v460, 0.0
      %v604 = vmax.f32 %v464, 0.0
      %v605 = vmax.f32 %v466, 0.0
      %v606 = vmax.f32 %v468, 0.0
      %v607 = vmax.f32 %v470, 0.0
      %v608 = vmax.f32 %v474, 0.0
      %v609 = vmax.f32 %v476, 0.0
      %v610 = vmax.f32 %v478, 0.0
      %v611 = vmax.f32 %v480, 0.0
      %v612 = vmax.f32 %v484, 0.0
      %v613 = vmax.f32 %v486, 0.0
      %v614 = vmax.f32 %v488, 0.0
      %v615 = vmax.f32 %v490, 0.0
      %v616 = vmax.f32 %v494, 0.0
      %v617 = vmax.f32 %v496, 0.0
      %v618 = vmax.f32 %v498, 0.0
      %v619 = vmax.f32 %v500, 0.0
      %v620 = vmax.f32 %v504, 0.0
      %v621 = vmax.f32 %v506, 0.0
      %v622 = vmax.f32 %v508, 0.0
      %v623 = vmax.f32 %v510, 0.0
      %v624 = vmax.f32 %v514, 0.0
      %v625 = vmax.f32 %v516, 0.0
      %v626 = vmax.f32 %v518, 0.0
      %v627 = vmax.f32 %v520, 0.0
      %v628 = vmax.f32 %v524, 0.0
      %v629 = vmax.f32 %v526, 0.0
      %v630 = vmax.f32 %v528, 0.0
      %v631 = vmax.f32 %v530, 0.0
      %v632 = vmax.f32 %v534, 0.0
      %v633 = vmax.f32 %v536, 0.0
      %v634 = vmax.f32 %v538, 0.0
      %v635 = vmax.f32 %v540, 0.0
      %v636 = vmax.f32 %v544, 0.0
      %v637 = vmax.f32 %v546, 0.0
      %v638 = vmax.f32 %v548, 0.0
      %v639 = vmax.f32 %v550, 0.0
      %v640 = vmax.f32 %v554, 0.0
      %v641 = vmax.f32 %v556, 0.0
      %v642 = vmax.f32 %v558, 0.0
      %v643 = vmax.f32 %v560, 0.0
      %v644 = vmax.f32 %v564, 0.0
      %v645 = vmax.f32 %v566, 0.0
      %v646 = vmax.f32 %v568, 0.0
      %v647 = vmax.f32 %v570, 0.0
      %v648 = vmax.f32 %v574, 0.0
      %v649 = vmax.f32 %v576, 0.0
      %v650 = vmax.f32 %v578, 0.0
      %v651 = vmax.f32 %v580, 0.0
      %v652 = vmax.f32 %v584, 0.0
      %v653 = vmax.f32 %v586, 0.0
      %v654 = vmax.f32 %v588, 0.0
      %v655 = vmax.f32 %v590, 0.0
      %v656 = vpack.c.bf16 %v594, %v592
      %v657 = vpack.c.bf16 %v595, %v593
      %v658 = vpack.c.bf16 %v598, %v596
      %v659 = vpack.c.bf16 %v599, %v597
      %v660 = vpack.c.bf16 %v602, %v600
      %v661 = vpack.c.bf16 %v603, %v601
      %v662 = vpack.c.bf16 %v606, %v604
      %v663 = vpack.c.bf16 %v607, %v605
      %v664 = vpack.c.bf16 %v610, %v608
      %v665 = vpack.c.bf16 %v611, %v609
      %v666 = vpack.c.bf16 %v614, %v612
      %v667 = vpack.c.bf16 %v615, %v613
      %v668 = vpack.c.bf16 %v618, %v616
      %v669 = vpack.c.bf16 %v619, %v617
      %v670 = vpack.c.bf16 %v622, %v620
      %v671 = vpack.c.bf16 %v623, %v621
      %v672 = vpack.c.bf16 %v626, %v624
      %v673 = vpack.c.bf16 %v627, %v625
      %v674 = vpack.c.bf16 %v630, %v628
      %v675 = vpack.c.bf16 %v631, %v629
      %v676 = vpack.c.bf16 %v634, %v632
      %v677 = vpack.c.bf16 %v635, %v633
      %v678 = vpack.c.bf16 %v638, %v636
      %v679 = vpack.c.bf16 %v639, %v637
      %v680 = vpack.c.bf16 %v642, %v640
      %v681 = vpack.c.bf16 %v643, %v641
      %v682 = vpack.c.bf16 %v646, %v644
      %v683 = vpack.c.bf16 %v647, %v645
      %v684 = vpack.c.bf16 %v650, %v648
      %v685 = vpack.c.bf16 %v651, %v649
      %v686 = vpack.c.bf16 %v654, %v652
      %v687 = vpack.c.bf16 %v655, %v653
      %v688 = vld [vmem:[%s2] sm:$0xff]
      %v689 = vld [vmem:[%s2 + $0x8] sm:$0xff]
      %v690 = vld [vmem:[%s2 + $0x10] sm:$0xff]
      %v691 = vld [vmem:[%s2 + $0x18] sm:$0xff]
      %v692 = vld [vmem:[%s2 + $0x20] sm:$0xff]
      %v693 = vld [vmem:[%s2 + $0x28] sm:$0xff]
      %v694 = vld [vmem:[%s2 + $0x30] sm:$0xff]
      %v695 = vld [vmem:[%s2 + $0x38] sm:$0xff]
      %v696 = vld [vmem:[%s2 + $0x40] sm:$0xff]
      %v697 = vld [vmem:[%s2 + $0x48] sm:$0xff]
      %v698 = vld [vmem:[%s2 + $0x50] sm:$0xff]
      %v699 = vld [vmem:[%s2 + $0x58] sm:$0xff]
      %v700 = vld [vmem:[%s2 + $0x60] sm:$0xff]
      %v701 = vld [vmem:[%s2 + $0x68] sm:$0xff]
      %v702 = vld [vmem:[%s2 + $0x70] sm:$0xff]
      %v703 = vld [vmem:[%s2 + $0x78] sm:$0xff]
      %v704 = vld [vmem:[%s2 + $0x80] sm:$0xff]
      %v705 = vld [vmem:[%s2 + $0x88] sm:$0xff]
      %v706 = vld [vmem:[%s2 + $0x90] sm:$0xff]
      %v707 = vld [vmem:[%s2 + $0x98] sm:$0xff]
      %v708 = vld [vmem:[%s2 + $0xa0] sm:$0xff]
      %v709 = vld [vmem:[%s2 + $0xa8] sm:$0xff]
      %v710 = vld [vmem:[%s2 + $0xb0] sm:$0xff]
      %v711 = vld [vmem:[%s2 + $0xb8] sm:$0xff]
      %v712 = vld [vmem:[%s2 + $0xc0] sm:$0xff]
      %v713 = vld [vmem:[%s2 + $0xc8] sm:$0xff]
      %v714 = vld [vmem:[%s2 + $0xd0] sm:$0xff]
      %v715 = vld [vmem:[%s2 + $0xd8] sm:$0xff]
      %v716 = vld [vmem:[%s2 + $0xe0] sm:$0xff]
      %v717 = vld [vmem:[%s2 + $0xe8] sm:$0xff]
      %v718 = vld [vmem:[%s2 + $0xf0] sm:$0xff]
      %v719 = vld [vmem:[%s2 + $0xf8] sm:$0xff]
      %s720 = scalar_lea.vmem %s4, 1
      %v721 = vld [vmem:[%s720] ss:$8 sm:$0x3]
      %v723 = vlaneseq
      %v724 = vshrl.u32 %v723, 7
      %v725 = vsub.s32 0, %v724
      %v726 = vrot.slane %v721, %v725
      %v727 = vlaneseq
      %v728 = vshrl.u32 %v727, 7
      %v729 = vsub.s32 1, %v728
      %v730 = vrot.slane %v721, %v729
      %v765 = vunpack.c.l.b16 %v688
      %v766 = vunpack.c.h.b16 %v688
      %v767 = vunpack.c.l.b16 %v689
      %v768 = vunpack.c.h.b16 %v689
      %v769 = vunpack.c.l.b16 %v690
      %v770 = vunpack.c.h.b16 %v690
      %v771 = vunpack.c.l.b16 %v691
      %v772 = vunpack.c.h.b16 %v691
      %v773 = vunpack.c.l.b16 %v692
      %v774 = vunpack.c.h.b16 %v692
      %v775 = vunpack.c.l.b16 %v693
      %v776 = vunpack.c.h.b16 %v693
      %v777 = vunpack.c.l.b16 %v694
      %v778 = vunpack.c.h.b16 %v694
      %v779 = vunpack.c.l.b16 %v695
      %v780 = vunpack.c.h.b16 %v695
      %v781 = vunpack.c.l.b16 %v696
      %v782 = vunpack.c.h.b16 %v696
      %v783 = vunpack.c.l.b16 %v697
      %v784 = vunpack.c.h.b16 %v697
      %v785 = vunpack.c.l.b16 %v698
      %v786 = vunpack.c.h.b16 %v698
      %v787 = vunpack.c.l.b16 %v699
      %v788 = vunpack.c.h.b16 %v699
      %v789 = vunpack.c.l.b16 %v700
      %v790 = vunpack.c.h.b16 %v700
      %v791 = vunpack.c.l.b16 %v701
      %v792 = vunpack.c.h.b16 %v701
      %v793 = vunpack.c.l.b16 %v702
      %v794 = vunpack.c.h.b16 %v702
      %v795 = vunpack.c.l.b16 %v703
      %v796 = vunpack.c.h.b16 %v703
      %v797 = vunpack.c.l.b16 %v704
      %v798 = vunpack.c.h.b16 %v704
      %v799 = vunpack.c.l.b16 %v705
      %v800 = vunpack.c.h.b16 %v705
      %v801 = vunpack.c.l.b16 %v706
      %v802 = vunpack.c.h.b16 %v706
      %v803 = vunpack.c.l.b16 %v707
      %v804 = vunpack.c.h.b16 %v707
      %v805 = vunpack.c.l.b16 %v708
      %v806 = vunpack.c.h.b16 %v708
      %v807 = vunpack.c.l.b16 %v709
      %v808 = vunpack.c.h.b16 %v709
      %v809 = vunpack.c.l.b16 %v710
      %v810 = vunpack.c.h.b16 %v710
      %v811 = vunpack.c.l.b16 %v711
      %v812 = vunpack.c.h.b16 %v711
      %v813 = vunpack.c.l.b16 %v712
      %v814 = vunpack.c.h.b16 %v712
      %v815 = vunpack.c.l.b16 %v713
      %v816 = vunpack.c.h.b16 %v713
      %v817 = vunpack.c.l.b16 %v714
      %v818 = vunpack.c.h.b16 %v714
      %v819 = vunpack.c.l.b16 %v715
      %v820 = vunpack.c.h.b16 %v715
      %v821 = vunpack.c.l.b16 %v716
      %v822 = vunpack.c.h.b16 %v716
      %v823 = vunpack.c.l.b16 %v717
      %v824 = vunpack.c.h.b16 %v717
      %v825 = vunpack.c.l.b16 %v718
      %v826 = vunpack.c.h.b16 %v718
      %v827 = vunpack.c.l.b16 %v719
      %v828 = vunpack.c.h.b16 %v719
      %v829 = vpack.c.b16 %v767, %v765
      %v830 = vpack.c.b16 %v768, %v766
      %v831 = vpack.c.b16 %v771, %v769
      %v832 = vpack.c.b16 %v772, %v770
      %v833 = vpack.c.b16 %v775, %v773
      %v834 = vpack.c.b16 %v776, %v774
      %v835 = vpack.c.b16 %v779, %v777
      %v836 = vpack.c.b16 %v780, %v778
      %v837 = vpack.c.b16 %v783, %v781
      %v838 = vpack.c.b16 %v784, %v782
      %v839 = vpack.c.b16 %v787, %v785
      %v840 = vpack.c.b16 %v788, %v786
      %v841 = vpack.c.b16 %v791, %v789
      %v842 = vpack.c.b16 %v792, %v790
      %v843 = vpack.c.b16 %v795, %v793
      %v844 = vpack.c.b16 %v796, %v794
      %v845 = vpack.c.b16 %v799, %v797
      %v846 = vpack.c.b16 %v800, %v798
      %v847 = vpack.c.b16 %v803, %v801
      %v848 = vpack.c.b16 %v804, %v802
      %v849 = vpack.c.b16 %v807, %v805
      %v850 = vpack.c.b16 %v808, %v806
      %v851 = vpack.c.b16 %v811, %v809
      %v852 = vpack.c.b16 %v812, %v810
      %v853 = vpack.c.b16 %v815, %v813
      %v854 = vpack.c.b16 %v816, %v814
      %v855 = vpack.c.b16 %v819, %v817
      %v856 = vpack.c.b16 %v820, %v818
      %v857 = vpack.c.b16 %v823, %v821
      %v858 = vpack.c.b16 %v824, %v822
      %v859 = vpack.c.b16 %v827, %v825
      %v860 = vpack.c.b16 %v828, %v826
      %893 = vmatprep.subr.bf16.mxu0 %v830
      %894 = vmatpush1.bf16.msra.mxu0 %v829
      %895 = vmatprep.subr.bf16.mxu0 %v832
      %896 = vmatpush1.bf16.msra.mxu0 %v831
      %897 = vmatprep.subr.bf16.mxu0 %v834
      %898 = vmatpush1.bf16.msra.mxu0 %v833
      %899 = vmatprep.subr.bf16.mxu0 %v836
      %900 = vmatpush1.bf16.msra.mxu0 %v835
      %901 = vmatprep.subr.bf16.mxu0 %v838
      %902 = vmatpush1.bf16.msra.mxu0 %v837
      %903 = vmatprep.subr.bf16.mxu0 %v840
      %904 = vmatpush1.bf16.msra.mxu0 %v839
      %905 = vmatprep.subr.bf16.mxu0 %v842
      %906 = vmatpush1.bf16.msra.mxu0 %v841
      %907 = vmatprep.subr.bf16.mxu0 %v844
      %908 = vmatpush1.bf16.msra.mxu0 %v843
      %909 = vmatprep.subr.bf16.mxu0 %v846
      %910 = vmatpush1.bf16.msra.mxu0 %v845
      %911 = vmatprep.subr.bf16.mxu0 %v848
      %912 = vmatpush1.bf16.msra.mxu0 %v847
      %913 = vmatprep.subr.bf16.mxu0 %v850
      %914 = vmatpush1.bf16.msra.mxu0 %v849
      %915 = vmatprep.subr.bf16.mxu0 %v852
      %916 = vmatpush1.bf16.msra.mxu0 %v851
      %917 = vmatprep.subr.bf16.mxu0 %v854
      %918 = vmatpush1.bf16.msra.mxu0 %v853
      %919 = vmatprep.subr.bf16.mxu0 %v856
      %920 = vmatpush1.bf16.msra.mxu0 %v855
      %921 = vmatprep.subr.bf16.mxu0 %v858
      %922 = vmatpush1.bf16.msra.mxu0 %v857
      %923 = vmatprep.subr.bf16.mxu0 %v860
      %924 = vmatpush1.bf16.msra.mxu0 %v859
      %925 = vmatprep.mubr.bf16.mxu0 %v657
      %926 = vmatmul.mubr.bf16.gmra.mrb[0].mxu0 %v656
      %v927 = vpop.f32.mrb[0].mxu0
      %v928 = vadd.f32 %v726, %v927
      %v929 = vpop.f32.mrb[0].mxu0
      %v930 = vadd.f32 %v730, %v929
      %v931 = vpop.f32.mrb[0].mxu0
      %v932 = vadd.f32 %v726, %v931
      %v933 = vpop.f32.mrb[0].mxu0
      %v934 = vadd.f32 %v730, %v933
      %935 = vmatprep.mubr.bf16.mxu0 %v659
      %936 = vmatmul.mubr.bf16.gmra.mrb[0].mxu0 %v658
      %v937 = vpop.f32.mrb[0].mxu0
      %v938 = vadd.f32 %v726, %v937
      %v939 = vpop.f32.mrb[0].mxu0
      %v940 = vadd.f32 %v730, %v939
      %v941 = vpop.f32.mrb[0].mxu0
      %v942 = vadd.f32 %v726, %v941
      %v943 = vpop.f32.mrb[0].mxu0
      %v944 = vadd.f32 %v730, %v943
      %945 = vmatprep.mubr.bf16.mxu0 %v661
      %946 = vmatmul.mubr.bf16.gmra.mrb[0].mxu0 %v660
      %v947 = vpop.f32.mrb[0].mxu0
      %v948 = vadd.f32 %v726, %v947
      %v949 = vpop.f32.mrb[0].mxu0
      %v950 = vadd.f32 %v730, %v949
      %v951 = vpop.f32.mrb[0].mxu0
      %v952 = vadd.f32 %v726, %v951
      %v953 = vpop.f32.mrb[0].mxu0
      %v954 = vadd.f32 %v730, %v953
      %955 = vmatprep.mubr.bf16.mxu0 %v663
      %956 = vmatmul.mubr.bf16.gmra.mrb[0].mxu0 %v662
      %v957 = vpop.f32.mrb[0].mxu0
      %v958 = vadd.f32 %v726, %v957
      %v959 = vpop.f32.mrb[0].mxu0
      %v960 = vadd.f32 %v730, %v959
      %v961 = vpop.f32.mrb[0].mxu0
      %v962 = vadd.f32 %v726, %v961
      %v963 = vpop.f32.mrb[0].mxu0
      %v964 = vadd.f32 %v730, %v963
      %965 = vmatprep.mubr.bf16.mxu0 %v665
      %966 = vmatmul.mubr.bf16.gmra.mrb[0].mxu0 %v664
      %v967 = vpop.f32.mrb[0].mxu0
      %v968 = vadd.f32 %v726, %v967
      %v969 = vpop.f32.mrb[0].mxu0
      %v970 = vadd.f32 %v730, %v969
      %v971 = vpop.f32.mrb[0].mxu0
      %v972 = vadd.f32 %v726, %v971
      %v973 = vpop.f32.mrb[0].mxu0
      %v974 = vadd.f32 %v730, %v973
      %975 = vmatprep.mubr.bf16.mxu0 %v667
      %976 = vmatmul.mubr.bf16.gmra.mrb[0].mxu0 %v666
      %v977 = vpop.f32.mrb[0].mxu0
      %v978 = vadd.f32 %v726, %v977
      %v979 = vpop.f32.mrb[0].mxu0
      %v980 = vadd.f32 %v730, %v979
      %v981 = vpop.f32.mrb[0].mxu0
      %v982 = vadd.f32 %v726, %v981
      %v983 = vpop.f32.mrb[0].mxu0
      %v984 = vadd.f32 %v730, %v983
      %985 = vmatprep.mubr.bf16.mxu0 %v669
      %986 = vmatmul.mubr.bf16.gmra.mrb[0].mxu0 %v668
      %v987 = vpop.f32.mrb[0].mxu0
      %v988 = vadd.f32 %v726, %v987
      %v989 = vpop.f32.mrb[0].mxu0
      %v990 = vadd.f32 %v730, %v989
      %v991 = vpop.f32.mrb[0].mxu0
      %v992 = vadd.f32 %v726, %v991
      %v993 = vpop.f32.mrb[0].mxu0
      %v994 = vadd.f32 %v730, %v993
      %995 = vmatprep.mubr.bf16.mxu0 %v671
      %996 = vmatmul.mubr.bf16.gmra.mrb[0].mxu0 %v670
      %v997 = vpop.f32.mrb[0].mxu0
      %v998 = vadd.f32 %v726, %v997
      %v999 = vpop.f32.mrb[0].mxu0
      %v1000 = vadd.f32 %v730, %v999
      %v1001 = vpop.f32.mrb[0].mxu0
      %v1002 = vadd.f32 %v726, %v1001
      %v1003 = vpop.f32.mrb[0].mxu0
      %v1004 = vadd.f32 %v730, %v1003
      %1005 = vmatprep.mubr.bf16.mxu0 %v673
      %1006 = vmatmul.mubr.bf16.gmra.mrb[0].mxu0 %v672
      %v1007 = vpop.f32.mrb[0].mxu0
      %v1008 = vadd.f32 %v726, %v1007
      %v1009 = vpop.f32.mrb[0].mxu0
      %v1010 = vadd.f32 %v730, %v1009
      %v1011 = vpop.f32.mrb[0].mxu0
      %v1012 = vadd.f32 %v726, %v1011
      %v1013 = vpop.f32.mrb[0].mxu0
      %v1014 = vadd.f32 %v730, %v1013
      %1015 = vmatprep.mubr.bf16.mxu0 %v675
      %1016 = vmatmul.mubr.bf16.gmra.mrb[0].mxu0 %v674
      %v1017 = vpop.f32.mrb[0].mxu0
      %v1018 = vadd.f32 %v726, %v1017
      %v1019 = vpop.f32.mrb[0].mxu0
      %v1020 = vadd.f32 %v730, %v1019
      %v1021 = vpop.f32.mrb[0].mxu0
      %v1022 = vadd.f32 %v726, %v1021
      %v1023 = vpop.f32.mrb[0].mxu0
      %v1024 = vadd.f32 %v730, %v1023
      %1025 = vmatprep.mubr.bf16.mxu0 %v677
      %1026 = vmatmul.mubr.bf16.gmra.mrb[0].mxu0 %v676
      %v1027 = vpop.f32.mrb[0].mxu0
      %v1028 = vadd.f32 %v726, %v1027
      %v1029 = vpop.f32.mrb[0].mxu0
      %v1030 = vadd.f32 %v730, %v1029
      %v1031 = vpop.f32.mrb[0].mxu0
      %v1032 = vadd.f32 %v726, %v1031
      %v1033 = vpop.f32.mrb[0].mxu0
      %v1034 = vadd.f32 %v730, %v1033
      %1035 = vmatprep.mubr.bf16.mxu0 %v679
      %1036 = vmatmul.mubr.bf16.gmra.mrb[0].mxu0 %v678
      %v1037 = vpop.f32.mrb[0].mxu0
      %v1038 = vadd.f32 %v726, %v1037
      %v1039 = vpop.f32.mrb[0].mxu0
      %v1040 = vadd.f32 %v730, %v1039
      %v1041 = vpop.f32.mrb[0].mxu0
      %v1042 = vadd.f32 %v726, %v1041
      %v1043 = vpop.f32.mrb[0].mxu0
      %v1044 = vadd.f32 %v730, %v1043
      %1045 = vmatprep.mubr.bf16.mxu0 %v681
      %1046 = vmatmul.mubr.bf16.gmra.mrb[0].mxu0 %v680
      %v1047 = vpop.f32.mrb[0].mxu0
      %v1048 = vadd.f32 %v726, %v1047
      %v1049 = vpop.f32.mrb[0].mxu0
      %v1050 = vadd.f32 %v730, %v1049
      %v1051 = vpop.f32.mrb[0].mxu0
      %v1052 = vadd.f32 %v726, %v1051
      %v1053 = vpop.f32.mrb[0].mxu0
      %v1054 = vadd.f32 %v730, %v1053
      %1055 = vmatprep.mubr.bf16.mxu0 %v683
      %1056 = vmatmul.mubr.bf16.gmra.mrb[0].mxu0 %v682
      %v1057 = vpop.f32.mrb[0].mxu0
      %v1058 = vadd.f32 %v726, %v1057
      %v1059 = vpop.f32.mrb[0].mxu0
      %v1060 = vadd.f32 %v730, %v1059
      %v1061 = vpop.f32.mrb[0].mxu0
      %v1062 = vadd.f32 %v726, %v1061
      %v1063 = vpop.f32.mrb[0].mxu0
      %v1064 = vadd.f32 %v730, %v1063
      %1065 = vmatprep.mubr.bf16.mxu0 %v685
      %1066 = vmatmul.mubr.bf16.gmra.mrb[0].mxu0 %v684
      %v1067 = vpop.f32.mrb[0].mxu0
      %v1068 = vadd.f32 %v726, %v1067
      %v1069 = vpop.f32.mrb[0].mxu0
      %v1070 = vadd.f32 %v730, %v1069
      %v1071 = vpop.f32.mrb[0].mxu0
      %v1072 = vadd.f32 %v726, %v1071
      %v1073 = vpop.f32.mrb[0].mxu0
      %v1074 = vadd.f32 %v730, %v1073
      %1075 = vmatprep.mubr.bf16.mxu0 %v687
      %1076 = vmatmul.mubr.bf16.gmra.mrb[0].mxu0 %v686
      %v1077 = vpop.f32.mrb[0].mxu0
      %v1078 = vadd.f32 %v726, %v1077
      %v1079 = vpop.f32.mrb[0].mxu0
      %v1080 = vadd.f32 %v730, %v1079
      %v1081 = vpop.f32.mrb[0].mxu0
      %v1082 = vadd.f32 %v726, %v1081
      %v1083 = vpop.f32.mrb[0].mxu0
      %v1084 = vadd.f32 %v730, %v1083
      %1085 = vdwg.mxu0
      %v1086 = vmax.f32 %v928, 0.0
      %v1087 = vmax.f32 %v930, 0.0
      %v1088 = vmax.f32 %v932, 0.0
      %v1089 = vmax.f32 %v934, 0.0
      %v1090 = vmax.f32 %v938, 0.0
      %v1091 = vmax.f32 %v940, 0.0
      %v1092 = vmax.f32 %v942, 0.0
      %v1093 = vmax.f32 %v944, 0.0
      %v1094 = vmax.f32 %v948, 0.0
      %v1095 = vmax.f32 %v950, 0.0
      %v1096 = vmax.f32 %v952, 0.0
      %v1097 = vmax.f32 %v954, 0.0
      %v1098 = vmax.f32 %v958, 0.0
      %v1099 = vmax.f32 %v960, 0.0
      %v1100 = vmax.f32 %v962, 0.0
      %v1101 = vmax.f32 %v964, 0.0
      %v1102 = vmax.f32 %v968, 0.0
      %v1103 = vmax.f32 %v970, 0.0
      %v1104 = vmax.f32 %v972, 0.0
      %v1105 = vmax.f32 %v974, 0.0
      %v1106 = vmax.f32 %v978, 0.0
      %v1107 = vmax.f32 %v980, 0.0
      %v1108 = vmax.f32 %v982, 0.0
      %v1109 = vmax.f32 %v984, 0.0
      %v1110 = vmax.f32 %v988, 0.0
      %v1111 = vmax.f32 %v990, 0.0
      %v1112 = vmax.f32 %v992, 0.0
      %v1113 = vmax.f32 %v994, 0.0
      %v1114 = vmax.f32 %v998, 0.0
      %v1115 = vmax.f32 %v1000, 0.0
      %v1116 = vmax.f32 %v1002, 0.0
      %v1117 = vmax.f32 %v1004, 0.0
      %v1118 = vmax.f32 %v1008, 0.0
      %v1119 = vmax.f32 %v1010, 0.0
      %v1120 = vmax.f32 %v1012, 0.0
      %v1121 = vmax.f32 %v1014, 0.0
      %v1122 = vmax.f32 %v1018, 0.0
      %v1123 = vmax.f32 %v1020, 0.0
      %v1124 = vmax.f32 %v1022, 0.0
      %v1125 = vmax.f32 %v1024, 0.0
      %v1126 = vmax.f32 %v1028, 0.0
      %v1127 = vmax.f32 %v1030, 0.0
      %v1128 = vmax.f32 %v1032, 0.0
      %v1129 = vmax.f32 %v1034, 0.0
      %v1130 = vmax.f32 %v1038, 0.0
      %v1131 = vmax.f32 %v1040, 0.0
      %v1132 = vmax.f32 %v1042, 0.0
      %v1133 = vmax.f32 %v1044, 0.0
      %v1134 = vmax.f32 %v1048, 0.0
      %v1135 = vmax.f32 %v1050, 0.0
      %v1136 = vmax.f32 %v1052, 0.0
      %v1137 = vmax.f32 %v1054, 0.0
      %v1138 = vmax.f32 %v1058, 0.0
      %v1139 = vmax.f32 %v1060, 0.0
      %v1140 = vmax.f32 %v1062, 0.0
      %v1141 = vmax.f32 %v1064, 0.0
      %v1142 = vmax.f32 %v1068, 0.0
      %v1143 = vmax.f32 %v1070, 0.0
      %v1144 = vmax.f32 %v1072, 0.0
      %v1145 = vmax.f32 %v1074, 0.0
      %v1146 = vmax.f32 %v1078, 0.0
      %v1147 = vmax.f32 %v1080, 0.0
      %v1148 = vmax.f32 %v1082, 0.0
      %v1149 = vmax.f32 %v1084, 0.0
      %v1150 = vpack.c.bf16 %v1088, %v1086
      %v1151 = vpack.c.bf16 %v1089, %v1087
      %v1152 = vpack.c.bf16 %v1092, %v1090
      %v1153 = vpack.c.bf16 %v1093, %v1091
      %v1154 = vpack.c.bf16 %v1096, %v1094
      %v1155 = vpack.c.bf16 %v1097, %v1095
      %v1156 = vpack.c.bf16 %v1100, %v1098
      %v1157 = vpack.c.bf16 %v1101, %v1099
      %v1158 = vpack.c.bf16 %v1104, %v1102
      %v1159 = vpack.c.bf16 %v1105, %v1103
      %v1160 = vpack.c.bf16 %v1108, %v1106
      %v1161 = vpack.c.bf16 %v1109, %v1107
      %v1162 = vpack.c.bf16 %v1112, %v1110
      %v1163 = vpack.c.bf16 %v1113, %v1111
      %v1164 = vpack.c.bf16 %v1116, %v1114
      %v1165 = vpack.c.bf16 %v1117, %v1115
      %v1166 = vpack.c.bf16 %v1120, %v1118
      %v1167 = vpack.c.bf16 %v1121, %v1119
      %v1168 = vpack.c.bf16 %v1124, %v1122
      %v1169 = vpack.c.bf16 %v1125, %v1123
      %v1170 = vpack.c.bf16 %v1128, %v1126
      %v1171 = vpack.c.bf16 %v1129, %v1127
      %v1172 = vpack.c.bf16 %v1132, %v1130
      %v1173 = vpack.c.bf16 %v1133, %v1131
      %v1174 = vpack.c.bf16 %v1136, %v1134
      %v1175 = vpack.c.bf16 %v1137, %v1135
      %v1176 = vpack.c.bf16 %v1140, %v1138
      %v1177 = vpack.c.bf16 %v1141, %v1139
      %v1178 = vpack.c.bf16 %v1144, %v1142
      %v1179 = vpack.c.bf16 %v1145, %v1143
      %v1180 = vpack.c.bf16 %v1148, %v1146
      %v1181 = vpack.c.bf16 %v1149, %v1147
      %v1182 = vunpack.c.l.bf16 %v1150
      %v1183 = vunpack.c.l.bf16 %v1151
      %v1184 = vunpack.c.h.bf16 %v1150
      %v1185 = vunpack.c.h.bf16 %v1151
      %v1186 = vunpack.c.l.bf16 %v1152
      %v1187 = vunpack.c.l.bf16 %v1153
      %v1188 = vunpack.c.h.bf16 %v1152
      %v1189 = vunpack.c.h.bf16 %v1153
      %v1190 = vunpack.c.l.bf16 %v1154
      %v1191 = vunpack.c.l.bf16 %v1155
      %v1192 = vunpack.c.h.bf16 %v1154
      %v1193 = vunpack.c.h.bf16 %v1155
      %v1194 = vunpack.c.l.bf16 %v1156
      %v1195 = vunpack.c.l.bf16 %v1157
      %v1196 = vunpack.c.h.bf16 %v1156
      %v1197 = vunpack.c.h.bf16 %v1157
      %v1198 = vunpack.c.l.bf16 %v1158
      %v1199 = vunpack.c.l.bf16 %v1159
      %v1200 = vunpack.c.h.bf16 %v1158
      %v1201 = vunpack.c.h.bf16 %v1159
      %v1202 = vunpack.c.l.bf16 %v1160
      %v1203 = vunpack.c.l.bf16 %v1161
      %v1204 = vunpack.c.h.bf16 %v1160
      %v1205 = vunpack.c.h.bf16 %v1161
      %v1206 = vunpack.c.l.bf16 %v1162
      %v1207 = vunpack.c.l.bf16 %v1163
      %v1208 = vunpack.c.h.bf16 %v1162
      %v1209 = vunpack.c.h.bf16 %v1163
      %v1210 = vunpack.c.l.bf16 %v1164
      %v1211 = vunpack.c.l.bf16 %v1165
      %v1212 = vunpack.c.h.bf16 %v1164
      %v1213 = vunpack.c.h.bf16 %v1165
      %v1214 = vunpack.c.l.bf16 %v1166
      %v1215 = vunpack.c.l.bf16 %v1167
      %v1216 = vunpack.c.h.bf16 %v1166
      %v1217 = vunpack.c.h.bf16 %v1167
      %v1218 = vunpack.c.l.bf16 %v1168
      %v1219 = vunpack.c.l.bf16 %v1169
      %v1220 = vunpack.c.h.bf16 %v1168
      %v1221 = vunpack.c.h.bf16 %v1169
      %v1222 = vunpack.c.l.bf16 %v1170
      %v1223 = vunpack.c.l.bf16 %v1171
      %v1224 = vunpack.c.h.bf16 %v1170
      %v1225 = vunpack.c.h.bf16 %v1171
      %v1226 = vunpack.c.l.bf16 %v1172
      %v1227 = vunpack.c.l.bf16 %v1173
      %v1228 = vunpack.c.h.bf16 %v1172
      %v1229 = vunpack.c.h.bf16 %v1173
      %v1230 = vunpack.c.l.bf16 %v1174
      %v1231 = vunpack.c.l.bf16 %v1175
      %v1232 = vunpack.c.h.bf16 %v1174
      %v1233 = vunpack.c.h.bf16 %v1175
      %v1234 = vunpack.c.l.bf16 %v1176
      %v1235 = vunpack.c.l.bf16 %v1177
      %v1236 = vunpack.c.h.bf16 %v1176
      %v1237 = vunpack.c.h.bf16 %v1177
      %v1238 = vunpack.c.l.bf16 %v1178
      %v1239 = vunpack.c.l.bf16 %v1179
      %v1240 = vunpack.c.h.bf16 %v1178
      %v1241 = vunpack.c.h.bf16 %v1179
      %v1242 = vunpack.c.l.bf16 %v1180
      %v1243 = vunpack.c.l.bf16 %v1181
      %v1244 = vunpack.c.h.bf16 %v1180
      %v1245 = vunpack.c.h.bf16 %v1181
      %s1246 = scalar_lea.vmem %s4, 6
      %v1247 = vld [vmem:[%s1246] ss:$8 sm:$0x3]
      %v1249 = vlaneseq
      %v1250 = vshrl.u32 %v1249, 7
      %v1251 = vsub.s32 0, %v1250
      %v1252 = vrot.slane %v1247, %v1251
      %v1253 = vlaneseq
      %v1254 = vshrl.u32 %v1253, 7
      %v1255 = vsub.s32 1, %v1254
      %v1256 = vrot.slane %v1247, %v1255
      %v1259 = vmul.f32 %v1182, %v1252
      %v1260 = vmul.f32 %v1183, %v1256
      %v1261 = vmul.f32 %v1184, %v1252
      %v1262 = vmul.f32 %v1185, %v1256
      %v1263 = vmul.f32 %v1186, %v1252
      %v1264 = vmul.f32 %v1187, %v1256
      %v1265 = vmul.f32 %v1188, %v1252
      %v1266 = vmul.f32 %v1189, %v1256
      %v1267 = vmul.f32 %v1190, %v1252
      %v1268 = vmul.f32 %v1191, %v1256
      %v1269 = vmul.f32 %v1192, %v1252
      %v1270 = vmul.f32 %v1193, %v1256
      %v1271 = vmul.f32 %v1194, %v1252
      %v1272 = vmul.f32 %v1195, %v1256
      %v1273 = vmul.f32 %v1196, %v1252
      %v1274 = vmul.f32 %v1197, %v1256
      %v1275 = vmul.f32 %v1198, %v1252
      %v1276 = vmul.f32 %v1199, %v1256
      %v1277 = vmul.f32 %v1200, %v1252
      %v1278 = vmul.f32 %v1201, %v1256
      %v1279 = vmul.f32 %v1202, %v1252
      %v1280 = vmul.f32 %v1203, %v1256
      %v1281 = vmul.f32 %v1204, %v1252
      %v1282 = vmul.f32 %v1205, %v1256
      %v1283 = vmul.f32 %v1206, %v1252
      %v1284 = vmul.f32 %v1207, %v1256
      %v1285 = vmul.f32 %v1208, %v1252
      %v1286 = vmul.f32 %v1209, %v1256
      %v1287 = vmul.f32 %v1210, %v1252
      %v1288 = vmul.f32 %v1211, %v1256
      %v1289 = vmul.f32 %v1212, %v1252
      %v1290 = vmul.f32 %v1213, %v1256
      %v1291 = vmul.f32 %v1214, %v1252
      %v1292 = vmul.f32 %v1215, %v1256
      %v1293 = vmul.f32 %v1216, %v1252
      %v1294 = vmul.f32 %v1217, %v1256
      %v1295 = vmul.f32 %v1218, %v1252
      %v1296 = vmul.f32 %v1219, %v1256
      %v1297 = vmul.f32 %v1220, %v1252
      %v1298 = vmul.f32 %v1221, %v1256
      %v1299 = vmul.f32 %v1222, %v1252
      %v1300 = vmul.f32 %v1223, %v1256
      %v1301 = vmul.f32 %v1224, %v1252
      %v1302 = vmul.f32 %v1225, %v1256
      %v1303 = vmul.f32 %v1226, %v1252
      %v1304 = vmul.f32 %v1227, %v1256
      %v1305 = vmul.f32 %v1228, %v1252
      %v1306 = vmul.f32 %v1229, %v1256
      %v1307 = vmul.f32 %v1230, %v1252
      %v1308 = vmul.f32 %v1231, %v1256
      %v1309 = vmul.f32 %v1232, %v1252
      %v1310 = vmul.f32 %v1233, %v1256
      %v1311 = vmul.f32 %v1234, %v1252
      %v1312 = vmul.f32 %v1235, %v1256
      %v1313 = vmul.f32 %v1236, %v1252
      %v1314 = vmul.f32 %v1237, %v1256
      %v1315 = vmul.f32 %v1238, %v1252
      %v1316 = vmul.f32 %v1239, %v1256
      %v1317 = vmul.f32 %v1240, %v1252
      %v1318 = vmul.f32 %v1241, %v1256
      %v1319 = vmul.f32 %v1242, %v1252
      %v1320 = vmul.f32 %v1243, %v1256
      %v1321 = vmul.f32 %v1244, %v1252
      %v1322 = vmul.f32 %v1245, %v1256
      %v1323 = vadd.f32 %v1259, %v1260
      %1324 = vadd.xlane.f32.xlu0 %v1323
      %v1325 = vpop.xlane.xlu0 %1324
      %v1326 = vadd.f32 %v1261, %v1262
      %1327 = vadd.xlane.f32.xlu0 %v1326
      %v1328 = vpop.xlane.xlu0 %1327
      %v1329 = vadd.f32 %v1263, %v1264
      %1330 = vadd.xlane.f32.xlu0 %v1329
      %v1331 = vpop.xlane.xlu0 %1330
      %v1332 = vadd.f32 %v1265, %v1266
      %1333 = vadd.xlane.f32.xlu0 %v1332
      %v1334 = vpop.xlane.xlu0 %1333
      %v1335 = vadd.f32 %v1267, %v1268
      %1336 = vadd.xlane.f32.xlu0 %v1335
      %v1337 = vpop.xlane.xlu0 %1336
      %v1338 = vadd.f32 %v1269, %v1270
      %1339 = vadd.xlane.f32.xlu0 %v1338
      %v1340 = vpop.xlane.xlu0 %1339
      %v1341 = vadd.f32 %v1271, %v1272
      %1342 = vadd.xlane.f32.xlu0 %v1341
      %v1343 = vpop.xlane.xlu0 %1342
      %v1344 = vadd.f32 %v1273, %v1274
      %1345 = vadd.xlane.f32.xlu0 %v1344
      %v1346 = vpop.xlane.xlu0 %1345
      %v1347 = vadd.f32 %v1275, %v1276
      %1348 = vadd.xlane.f32.xlu0 %v1347
      %v1349 = vpop.xlane.xlu0 %1348
      %v1350 = vadd.f32 %v1277, %v1278
      %1351 = vadd.xlane.f32.xlu0 %v1350
      %v1352 = vpop.xlane.xlu0 %1351
      %v1353 = vadd.f32 %v1279, %v1280
      %1354 = vadd.xlane.f32.xlu0 %v1353
      %v1355 = vpop.xlane.xlu0 %1354
      %v1356 = vadd.f32 %v1281, %v1282
      %1357 = vadd.xlane.f32.xlu0 %v1356
      %v1358 = vpop.xlane.xlu0 %1357
      %v1359 = vadd.f32 %v1283, %v1284
      %1360 = vadd.xlane.f32.xlu0 %v1359
      %v1361 = vpop.xlane.xlu0 %1360
      %v1362 = vadd.f32 %v1285, %v1286
      %1363 = vadd.xlane.f32.xlu0 %v1362
      %v1364 = vpop.xlane.xlu0 %1363
      %v1365 = vadd.f32 %v1287, %v1288
      %1366 = vadd.xlane.f32.xlu0 %v1365
      %v1367 = vpop.xlane.xlu0 %1366
      %v1368 = vadd.f32 %v1289, %v1290
      %1369 = vadd.xlane.f32.xlu0 %v1368
      %v1370 = vpop.xlane.xlu0 %1369
      %v1371 = vadd.f32 %v1291, %v1292
      %1372 = vadd.xlane.f32.xlu0 %v1371
      %v1373 = vpop.xlane.xlu0 %1372
      %v1374 = vadd.f32 %v1293, %v1294
      %1375 = vadd.xlane.f32.xlu0 %v1374
      %v1376 = vpop.xlane.xlu0 %1375
      %v1377 = vadd.f32 %v1295, %v1296
      %1378 = vadd.xlane.f32.xlu0 %v1377
      %v1379 = vpop.xlane.xlu0 %1378
      %v1380 = vadd.f32 %v1297, %v1298
      %1381 = vadd.xlane.f32.xlu0 %v1380
      %v1382 = vpop.xlane.xlu0 %1381
      %v1383 = vadd.f32 %v1299, %v1300
      %1384 = vadd.xlane.f32.xlu0 %v1383
      %v1385 = vpop.xlane.xlu0 %1384
      %v1386 = vadd.f32 %v1301, %v1302
      %1387 = vadd.xlane.f32.xlu0 %v1386
      %v1388 = vpop.xlane.xlu0 %1387
      %v1389 = vadd.f32 %v1303, %v1304
      %1390 = vadd.xlane.f32.xlu0 %v1389
      %v1391 = vpop.xlane.xlu0 %1390
      %v1392 = vadd.f32 %v1305, %v1306
      %1393 = vadd.xlane.f32.xlu0 %v1392
      %v1394 = vpop.xlane.xlu0 %1393
      %v1395 = vadd.f32 %v1307, %v1308
      %1396 = vadd.xlane.f32.xlu0 %v1395
      %v1397 = vpop.xlane.xlu0 %1396
      %v1398 = vadd.f32 %v1309, %v1310
      %1399 = vadd.xlane.f32.xlu0 %v1398
      %v1400 = vpop.xlane.xlu0 %1399
      %v1401 = vadd.f32 %v1311, %v1312
      %1402 = vadd.xlane.f32.xlu0 %v1401
      %v1403 = vpop.xlane.xlu0 %1402
      %v1404 = vadd.f32 %v1313, %v1314
      %1405 = vadd.xlane.f32.xlu0 %v1404
      %v1406 = vpop.xlane.xlu0 %1405
      %v1407 = vadd.f32 %v1315, %v1316
      %1408 = vadd.xlane.f32.xlu0 %v1407
      %v1409 = vpop.xlane.xlu0 %1408
      %v1410 = vadd.f32 %v1317, %v1318
      %1411 = vadd.xlane.f32.xlu0 %v1410
      %v1412 = vpop.xlane.xlu0 %1411
      %v1413 = vadd.f32 %v1319, %v1320
      %1414 = vadd.xlane.f32.xlu0 %v1413
      %v1415 = vpop.xlane.xlu0 %1414
      %v1416 = vadd.f32 %v1321, %v1322
      %1417 = vadd.xlane.f32.xlu0 %v1416
      %v1418 = vpop.xlane.xlu0 %1417
      %v1419 = vld [vmem:[%s4 + $0x7] ss:$0 sm:$0xff]
      %v1420 = vadd.f32 %v1325, %v1419
      %v1421 = vadd.f32 %v1328, %v1419
      %v1422 = vadd.f32 %v1331, %v1419
      %v1423 = vadd.f32 %v1334, %v1419
      %v1424 = vadd.f32 %v1337, %v1419
      %v1425 = vadd.f32 %v1340, %v1419
      %v1426 = vadd.f32 %v1343, %v1419
      %v1427 = vadd.f32 %v1346, %v1419
      %v1428 = vadd.f32 %v1349, %v1419
      %v1429 = vadd.f32 %v1352, %v1419
      %v1430 = vadd.f32 %v1355, %v1419
      %v1431 = vadd.f32 %v1358, %v1419
      %v1432 = vadd.f32 %v1361, %v1419
      %v1433 = vadd.f32 %v1364, %v1419
      %v1434 = vadd.f32 %v1367, %v1419
      %v1435 = vadd.f32 %v1370, %v1419
      %v1436 = vadd.f32 %v1373, %v1419
      %v1437 = vadd.f32 %v1376, %v1419
      %v1438 = vadd.f32 %v1379, %v1419
      %v1439 = vadd.f32 %v1382, %v1419
      %v1440 = vadd.f32 %v1385, %v1419
      %v1441 = vadd.f32 %v1388, %v1419
      %v1442 = vadd.f32 %v1391, %v1419
      %v1443 = vadd.f32 %v1394, %v1419
      %v1444 = vadd.f32 %v1397, %v1419
      %v1445 = vadd.f32 %v1400, %v1419
      %v1446 = vadd.f32 %v1403, %v1419
      %v1447 = vadd.f32 %v1406, %v1419
      %v1448 = vadd.f32 %v1409, %v1419
      %v1449 = vadd.f32 %v1412, %v1419
      %v1450 = vadd.f32 %v1415, %v1419
      %v1451 = vadd.f32 %v1418, %v1419
      %v1452 = vld [vmem:[%s2 + $0x100] sm:$0xff]
      %v1453 = vld [vmem:[%s2 + $0x108] sm:$0xff]
      %v1454 = vld [vmem:[%s2 + $0x110] sm:$0xff]
      %v1455 = vld [vmem:[%s2 + $0x118] sm:$0xff]
      %v1456 = vld [vmem:[%s2 + $0x120] sm:$0xff]
      %v1457 = vld [vmem:[%s2 + $0x128] sm:$0xff]
      %v1458 = vld [vmem:[%s2 + $0x130] sm:$0xff]
      %v1459 = vld [vmem:[%s2 + $0x138] sm:$0xff]
      %v1460 = vld [vmem:[%s2 + $0x140] sm:$0xff]
      %v1461 = vld [vmem:[%s2 + $0x148] sm:$0xff]
      %v1462 = vld [vmem:[%s2 + $0x150] sm:$0xff]
      %v1463 = vld [vmem:[%s2 + $0x158] sm:$0xff]
      %v1464 = vld [vmem:[%s2 + $0x160] sm:$0xff]
      %v1465 = vld [vmem:[%s2 + $0x168] sm:$0xff]
      %v1466 = vld [vmem:[%s2 + $0x170] sm:$0xff]
      %v1467 = vld [vmem:[%s2 + $0x178] sm:$0xff]
      %v1468 = vld [vmem:[%s2 + $0x180] sm:$0xff]
      %v1469 = vld [vmem:[%s2 + $0x188] sm:$0xff]
      %v1470 = vld [vmem:[%s2 + $0x190] sm:$0xff]
      %v1471 = vld [vmem:[%s2 + $0x198] sm:$0xff]
      %v1472 = vld [vmem:[%s2 + $0x1a0] sm:$0xff]
      %v1473 = vld [vmem:[%s2 + $0x1a8] sm:$0xff]
      %v1474 = vld [vmem:[%s2 + $0x1b0] sm:$0xff]
      %v1475 = vld [vmem:[%s2 + $0x1b8] sm:$0xff]
      %v1476 = vld [vmem:[%s2 + $0x1c0] sm:$0xff]
      %v1477 = vld [vmem:[%s2 + $0x1c8] sm:$0xff]
      %v1478 = vld [vmem:[%s2 + $0x1d0] sm:$0xff]
      %v1479 = vld [vmem:[%s2 + $0x1d8] sm:$0xff]
      %v1480 = vld [vmem:[%s2 + $0x1e0] sm:$0xff]
      %v1481 = vld [vmem:[%s2 + $0x1e8] sm:$0xff]
      %v1482 = vld [vmem:[%s2 + $0x1f0] sm:$0xff]
      %v1483 = vld [vmem:[%s2 + $0x1f8] sm:$0xff]
      %s1484 = scalar_lea.vmem %s4, 2
      %v1485 = vld [vmem:[%s1484] ss:$8 sm:$0x3]
      %v1487 = vlaneseq
      %v1488 = vshrl.u32 %v1487, 7
      %v1489 = vsub.s32 0, %v1488
      %v1490 = vrot.slane %v1485, %v1489
      %v1491 = vlaneseq
      %v1492 = vshrl.u32 %v1491, 7
      %v1493 = vsub.s32 1, %v1492
      %v1494 = vrot.slane %v1485, %v1493
      %v1529 = vunpack.c.l.b16 %v1452
      %v1530 = vunpack.c.h.b16 %v1452
      %v1531 = vunpack.c.l.b16 %v1453
      %v1532 = vunpack.c.h.b16 %v1453
      %v1533 = vunpack.c.l.b16 %v1454
      %v1534 = vunpack.c.h.b16 %v1454
      %v1535 = vunpack.c.l.b16 %v1455
      %v1536 = vunpack.c.h.b16 %v1455
      %v1537 = vunpack.c.l.b16 %v1456
      %v1538 = vunpack.c.h.b16 %v1456
      %v1539 = vunpack.c.l.b16 %v1457
      %v1540 = vunpack.c.h.b16 %v1457
      %v1541 = vunpack.c.l.b16 %v1458
      %v1542 = vunpack.c.h.b16 %v1458
      %v1543 = vunpack.c.l.b16 %v1459
      %v1544 = vunpack.c.h.b16 %v1459
      %v1545 = vunpack.c.l.b16 %v1460
      %v1546 = vunpack.c.h.b16 %v1460
      %v1547 = vunpack.c.l.b16 %v1461
      %v1548 = vunpack.c.h.b16 %v1461
      %v1549 = vunpack.c.l.b16 %v1462
      %v1550 = vunpack.c.h.b16 %v1462
      %v1551 = vunpack.c.l.b16 %v1463
      %v1552 = vunpack.c.h.b16 %v1463
      %v1553 = vunpack.c.l.b16 %v1464
      %v1554 = vunpack.c.h.b16 %v1464
      %v1555 = vunpack.c.l.b16 %v1465
      %v1556 = vunpack.c.h.b16 %v1465
      %v1557 = vunpack.c.l.b16 %v1466
      %v1558 = vunpack.c.h.b16 %v1466
      %v1559 = vunpack.c.l.b16 %v1467
      %v1560 = vunpack.c.h.b16 %v1467
      %v1561 = vunpack.c.l.b16 %v1468
      %v1562 = vunpack.c.h.b16 %v1468
      %v1563 = vunpack.c.l.b16 %v1469
      %v1564 = vunpack.c.h.b16 %v1469
      %v1565 = vunpack.c.l.b16 %v1470
      %v1566 = vunpack.c.h.b16 %v1470
      %v1567 = vunpack.c.l.b16 %v1471
      %v1568 = vunpack.c.h.b16 %v1471
      %v1569 = vunpack.c.l.b16 %v1472
      %v1570 = vunpack.c.h.b16 %v1472
      %v1571 = vunpack.c.l.b16 %v1473
      %v1572 = vunpack.c.h.b16 %v1473
      %v1573 = vunpack.c.l.b16 %v1474
      %v1574 = vunpack.c.h.b16 %v1474
      %v1575 = vunpack.c.l.b16 %v1475
      %v1576 = vunpack.c.h.b16 %v1475
      %v1577 = vunpack.c.l.b16 %v1476
      %v1578 = vunpack.c.h.b16 %v1476
      %v1579 = vunpack.c.l.b16 %v1477
      %v1580 = vunpack.c.h.b16 %v1477
      %v1581 = vunpack.c.l.b16 %v1478
      %v1582 = vunpack.c.h.b16 %v1478
      %v1583 = vunpack.c.l.b16 %v1479
      %v1584 = vunpack.c.h.b16 %v1479
      %v1585 = vunpack.c.l.b16 %v1480
      %v1586 = vunpack.c.h.b16 %v1480
      %v1587 = vunpack.c.l.b16 %v1481
      %v1588 = vunpack.c.h.b16 %v1481
      %v1589 = vunpack.c.l.b16 %v1482
      %v1590 = vunpack.c.h.b16 %v1482
      %v1591 = vunpack.c.l.b16 %v1483
      %v1592 = vunpack.c.h.b16 %v1483
      %v1593 = vpack.c.b16 %v1531, %v1529
      %v1594 = vpack.c.b16 %v1532, %v1530
      %v1595 = vpack.c.b16 %v1535, %v1533
      %v1596 = vpack.c.b16 %v1536, %v1534
      %v1597 = vpack.c.b16 %v1539, %v1537
      %v1598 = vpack.c.b16 %v1540, %v1538
      %v1599 = vpack.c.b16 %v1543, %v1541
      %v1600 = vpack.c.b16 %v1544, %v1542
      %v1601 = vpack.c.b16 %v1547, %v1545
      %v1602 = vpack.c.b16 %v1548, %v1546
      %v1603 = vpack.c.b16 %v1551, %v1549
      %v1604 = vpack.c.b16 %v1552, %v1550
      %v1605 = vpack.c.b16 %v1555, %v1553
      %v1606 = vpack.c.b16 %v1556, %v1554
      %v1607 = vpack.c.b16 %v1559, %v1557
      %v1608 = vpack.c.b16 %v1560, %v1558
      %v1609 = vpack.c.b16 %v1563, %v1561
      %v1610 = vpack.c.b16 %v1564, %v1562
      %v1611 = vpack.c.b16 %v1567, %v1565
      %v1612 = vpack.c.b16 %v1568, %v1566
      %v1613 = vpack.c.b16 %v1571, %v1569
      %v1614 = vpack.c.b16 %v1572, %v1570
      %v1615 = vpack.c.b16 %v1575, %v1573
      %v1616 = vpack.c.b16 %v1576, %v1574
      %v1617 = vpack.c.b16 %v1579, %v1577
      %v1618 = vpack.c.b16 %v1580, %v1578
      %v1619 = vpack.c.b16 %v1583, %v1581
      %v1620 = vpack.c.b16 %v1584, %v1582
      %v1621 = vpack.c.b16 %v1587, %v1585
      %v1622 = vpack.c.b16 %v1588, %v1586
      %v1623 = vpack.c.b16 %v1591, %v1589
      %v1624 = vpack.c.b16 %v1592, %v1590
      %1657 = vmatprep.subr.bf16.mxu0 %v1594
      %1658 = vmatpush1.bf16.msra.mxu0 %v1593
      %1659 = vmatprep.subr.bf16.mxu0 %v1596
      %1660 = vmatpush1.bf16.msra.mxu0 %v1595
      %1661 = vmatprep.subr.bf16.mxu0 %v1598
      %1662 = vmatpush1.bf16.msra.mxu0 %v1597
      %1663 = vmatprep.subr.bf16.mxu0 %v1600
      %1664 = vmatpush1.bf16.msra.mxu0 %v1599
      %1665 = vmatprep.subr.bf16.mxu0 %v1602
      %1666 = vmatpush1.bf16.msra.mxu0 %v1601
      %1667 = vmatprep.subr.bf16.mxu0 %v1604
      %1668 = vmatpush1.bf16.msra.mxu0 %v1603
      %1669 = vmatprep.subr.bf16.mxu0 %v1606
      %1670 = vmatpush1.bf16.msra.mxu0 %v1605
      %1671 = vmatprep.subr.bf16.mxu0 %v1608
      %1672 = vmatpush1.bf16.msra.mxu0 %v1607
      %1673 = vmatprep.subr.bf16.mxu0 %v1610
      %1674 = vmatpush1.bf16.msra.mxu0 %v1609
      %1675 = vmatprep.subr.bf16.mxu0 %v1612
      %1676 = vmatpush1.bf16.msra.mxu0 %v1611
      %1677 = vmatprep.subr.bf16.mxu0 %v1614
      %1678 = vmatpush1.bf16.msra.mxu0 %v1613
      %1679 = vmatprep.subr.bf16.mxu0 %v1616
      %1680 = vmatpush1.bf16.msra.mxu0 %v1615
      %1681 = vmatprep.subr.bf16.mxu0 %v1618
      %1682 = vmatpush1.bf16.msra.mxu0 %v1617
      %1683 = vmatprep.subr.bf16.mxu0 %v1620
      %1684 = vmatpush1.bf16.msra.mxu0 %v1619
      %1685 = vmatprep.subr.bf16.mxu0 %v1622
      %1686 = vmatpush1.bf16.msra.mxu0 %v1621
      %1687 = vmatprep.subr.bf16.mxu0 %v1624
      %1688 = vmatpush1.bf16.msra.mxu0 %v1623
      %1689 = vmatprep.mubr.bf16.mxu0 %v1151
      %1690 = vmatmul.mubr.bf16.gmra.mrb[0].mxu0 %v1150
      %v1691 = vpop.f32.mrb[0].mxu0
      %v1692 = vadd.f32 %v1490, %v1691
      %v1693 = vpop.f32.mrb[0].mxu0
      %v1694 = vadd.f32 %v1494, %v1693
      %v1695 = vpop.f32.mrb[0].mxu0
      %v1696 = vadd.f32 %v1490, %v1695
      %v1697 = vpop.f32.mrb[0].mxu0
      %v1698 = vadd.f32 %v1494, %v1697
      %1699 = vmatprep.mubr.bf16.mxu0 %v1153
      %1700 = vmatmul.mubr.bf16.gmra.mrb[0].mxu0 %v1152
      %v1701 = vpop.f32.mrb[0].mxu0
      %v1702 = vadd.f32 %v1490, %v1701
      %v1703 = vpop.f32.mrb[0].mxu0
      %v1704 = vadd.f32 %v1494, %v1703
      %v1705 = vpop.f32.mrb[0].mxu0
      %v1706 = vadd.f32 %v1490, %v1705
      %v1707 = vpop.f32.mrb[0].mxu0
      %v1708 = vadd.f32 %v1494, %v1707
      %1709 = vmatprep.mubr.bf16.mxu0 %v1155
      %1710 = vmatmul.mubr.bf16.gmra.mrb[0].mxu0 %v1154
      %v1711 = vpop.f32.mrb[0].mxu0
      %v1712 = vadd.f32 %v1490, %v1711
      %v1713 = vpop.f32.mrb[0].mxu0
      %v1714 = vadd.f32 %v1494, %v1713
      %v1715 = vpop.f32.mrb[0].mxu0
      %v1716 = vadd.f32 %v1490, %v1715
      %v1717 = vpop.f32.mrb[0].mxu0
      %v1718 = vadd.f32 %v1494, %v1717
      %1719 = vmatprep.mubr.bf16.mxu0 %v1157
      %1720 = vmatmul.mubr.bf16.gmra.mrb[0].mxu0 %v1156
      %v1721 = vpop.f32.mrb[0].mxu0
      %v1722 = vadd.f32 %v1490, %v1721
      %v1723 = vpop.f32.mrb[0].mxu0
      %v1724 = vadd.f32 %v1494, %v1723
      %v1725 = vpop.f32.mrb[0].mxu0
      %v1726 = vadd.f32 %v1490, %v1725
      %v1727 = vpop.f32.mrb[0].mxu0
      %v1728 = vadd.f32 %v1494, %v1727
      %1729 = vmatprep.mubr.bf16.mxu0 %v1159
      %1730 = vmatmul.mubr.bf16.gmra.mrb[0].mxu0 %v1158
      %v1731 = vpop.f32.mrb[0].mxu0
      %v1732 = vadd.f32 %v1490, %v1731
      %v1733 = vpop.f32.mrb[0].mxu0
      %v1734 = vadd.f32 %v1494, %v1733
      %v1735 = vpop.f32.mrb[0].mxu0
      %v1736 = vadd.f32 %v1490, %v1735
      %v1737 = vpop.f32.mrb[0].mxu0
      %v1738 = vadd.f32 %v1494, %v1737
      %1739 = vmatprep.mubr.bf16.mxu0 %v1161
      %1740 = vmatmul.mubr.bf16.gmra.mrb[0].mxu0 %v1160
      %v1741 = vpop.f32.mrb[0].mxu0
      %v1742 = vadd.f32 %v1490, %v1741
      %v1743 = vpop.f32.mrb[0].mxu0
      %v1744 = vadd.f32 %v1494, %v1743
      %v1745 = vpop.f32.mrb[0].mxu0
      %v1746 = vadd.f32 %v1490, %v1745
      %v1747 = vpop.f32.mrb[0].mxu0
      %v1748 = vadd.f32 %v1494, %v1747
      %1749 = vmatprep.mubr.bf16.mxu0 %v1163
      %1750 = vmatmul.mubr.bf16.gmra.mrb[0].mxu0 %v1162
      %v1751 = vpop.f32.mrb[0].mxu0
      %v1752 = vadd.f32 %v1490, %v1751
      %v1753 = vpop.f32.mrb[0].mxu0
      %v1754 = vadd.f32 %v1494, %v1753
      %v1755 = vpop.f32.mrb[0].mxu0
      %v1756 = vadd.f32 %v1490, %v1755
      %v1757 = vpop.f32.mrb[0].mxu0
      %v1758 = vadd.f32 %v1494, %v1757
      %1759 = vmatprep.mubr.bf16.mxu0 %v1165
      %1760 = vmatmul.mubr.bf16.gmra.mrb[0].mxu0 %v1164
      %v1761 = vpop.f32.mrb[0].mxu0
      %v1762 = vadd.f32 %v1490, %v1761
      %v1763 = vpop.f32.mrb[0].mxu0
      %v1764 = vadd.f32 %v1494, %v1763
      %v1765 = vpop.f32.mrb[0].mxu0
      %v1766 = vadd.f32 %v1490, %v1765
      %v1767 = vpop.f32.mrb[0].mxu0
      %v1768 = vadd.f32 %v1494, %v1767
      %1769 = vmatprep.mubr.bf16.mxu0 %v1167
      %1770 = vmatmul.mubr.bf16.gmra.mrb[0].mxu0 %v1166
      %v1771 = vpop.f32.mrb[0].mxu0
      %v1772 = vadd.f32 %v1490, %v1771
      %v1773 = vpop.f32.mrb[0].mxu0
      %v1774 = vadd.f32 %v1494, %v1773
      %v1775 = vpop.f32.mrb[0].mxu0
      %v1776 = vadd.f32 %v1490, %v1775
      %v1777 = vpop.f32.mrb[0].mxu0
      %v1778 = vadd.f32 %v1494, %v1777
      %1779 = vmatprep.mubr.bf16.mxu0 %v1169
      %1780 = vmatmul.mubr.bf16.gmra.mrb[0].mxu0 %v1168
      %v1781 = vpop.f32.mrb[0].mxu0
      %v1782 = vadd.f32 %v1490, %v1781
      %v1783 = vpop.f32.mrb[0].mxu0
      %v1784 = vadd.f32 %v1494, %v1783
      %v1785 = vpop.f32.mrb[0].mxu0
      %v1786 = vadd.f32 %v1490, %v1785
      %v1787 = vpop.f32.mrb[0].mxu0
      %v1788 = vadd.f32 %v1494, %v1787
      %1789 = vmatprep.mubr.bf16.mxu0 %v1171
      %1790 = vmatmul.mubr.bf16.gmra.mrb[0].mxu0 %v1170
      %v1791 = vpop.f32.mrb[0].mxu0
      %v1792 = vadd.f32 %v1490, %v1791
      %v1793 = vpop.f32.mrb[0].mxu0
      %v1794 = vadd.f32 %v1494, %v1793
      %v1795 = vpop.f32.mrb[0].mxu0
      %v1796 = vadd.f32 %v1490, %v1795
      %v1797 = vpop.f32.mrb[0].mxu0
      %v1798 = vadd.f32 %v1494, %v1797
      %1799 = vmatprep.mubr.bf16.mxu0 %v1173
      %1800 = vmatmul.mubr.bf16.gmra.mrb[0].mxu0 %v1172
      %v1801 = vpop.f32.mrb[0].mxu0
      %v1802 = vadd.f32 %v1490, %v1801
      %v1803 = vpop.f32.mrb[0].mxu0
      %v1804 = vadd.f32 %v1494, %v1803
      %v1805 = vpop.f32.mrb[0].mxu0
      %v1806 = vadd.f32 %v1490, %v1805
      %v1807 = vpop.f32.mrb[0].mxu0
      %v1808 = vadd.f32 %v1494, %v1807
      %1809 = vmatprep.mubr.bf16.mxu0 %v1175
      %1810 = vmatmul.mubr.bf16.gmra.mrb[0].mxu0 %v1174
      %v1811 = vpop.f32.mrb[0].mxu0
      %v1812 = vadd.f32 %v1490, %v1811
      %v1813 = vpop.f32.mrb[0].mxu0
      %v1814 = vadd.f32 %v1494, %v1813
      %v1815 = vpop.f32.mrb[0].mxu0
      %v1816 = vadd.f32 %v1490, %v1815
      %v1817 = vpop.f32.mrb[0].mxu0
      %v1818 = vadd.f32 %v1494, %v1817
      %1819 = vmatprep.mubr.bf16.mxu0 %v1177
      %1820 = vmatmul.mubr.bf16.gmra.mrb[0].mxu0 %v1176
      %v1821 = vpop.f32.mrb[0].mxu0
      %v1822 = vadd.f32 %v1490, %v1821
      %v1823 = vpop.f32.mrb[0].mxu0
      %v1824 = vadd.f32 %v1494, %v1823
      %v1825 = vpop.f32.mrb[0].mxu0
      %v1826 = vadd.f32 %v1490, %v1825
      %v1827 = vpop.f32.mrb[0].mxu0
      %v1828 = vadd.f32 %v1494, %v1827
      %1829 = vmatprep.mubr.bf16.mxu0 %v1179
      %1830 = vmatmul.mubr.bf16.gmra.mrb[0].mxu0 %v1178
      %v1831 = vpop.f32.mrb[0].mxu0
      %v1832 = vadd.f32 %v1490, %v1831
      %v1833 = vpop.f32.mrb[0].mxu0
      %v1834 = vadd.f32 %v1494, %v1833
      %v1835 = vpop.f32.mrb[0].mxu0
      %v1836 = vadd.f32 %v1490, %v1835
      %v1837 = vpop.f32.mrb[0].mxu0
      %v1838 = vadd.f32 %v1494, %v1837
      %1839 = vmatprep.mubr.bf16.mxu0 %v1181
      %1840 = vmatmul.mubr.bf16.gmra.mrb[0].mxu0 %v1180
      %v1841 = vpop.f32.mrb[0].mxu0
      %v1842 = vadd.f32 %v1490, %v1841
      %v1843 = vpop.f32.mrb[0].mxu0
      %v1844 = vadd.f32 %v1494, %v1843
      %v1845 = vpop.f32.mrb[0].mxu0
      %v1846 = vadd.f32 %v1490, %v1845
      %v1847 = vpop.f32.mrb[0].mxu0
      %v1848 = vadd.f32 %v1494, %v1847
      %1849 = vdwg.mxu0
      %v1850 = vpack.c.bf16 %v1696, %v1692
      %v1851 = vpack.c.bf16 %v1698, %v1694
      %v1852 = vpack.c.bf16 %v1706, %v1702
      %v1853 = vpack.c.bf16 %v1708, %v1704
      %v1854 = vpack.c.bf16 %v1716, %v1712
      %v1855 = vpack.c.bf16 %v1718, %v1714
      %v1856 = vpack.c.bf16 %v1726, %v1722
      %v1857 = vpack.c.bf16 %v1728, %v1724
      %v1858 = vpack.c.bf16 %v1736, %v1732
      %v1859 = vpack.c.bf16 %v1738, %v1734
      %v1860 = vpack.c.bf16 %v1746, %v1742
      %v1861 = vpack.c.bf16 %v1748, %v1744
      %v1862 = vpack.c.bf16 %v1756, %v1752
      %v1863 = vpack.c.bf16 %v1758, %v1754
      %v1864 = vpack.c.bf16 %v1766, %v1762
      %v1865 = vpack.c.bf16 %v1768, %v1764
      %v1866 = vpack.c.bf16 %v1776, %v1772
      %v1867 = vpack.c.bf16 %v1778, %v1774
      %v1868 = vpack.c.bf16 %v1786, %v1782
      %v1869 = vpack.c.bf16 %v1788, %v1784
      %v1870 = vpack.c.bf16 %v1796, %v1792
      %v1871 = vpack.c.bf16 %v1798, %v1794
      %v1872 = vpack.c.bf16 %v1806, %v1802
      %v1873 = vpack.c.bf16 %v1808, %v1804
      %v1874 = vpack.c.bf16 %v1816, %v1812
      %v1875 = vpack.c.bf16 %v1818, %v1814
      %v1876 = vpack.c.bf16 %v1826, %v1822
      %v1877 = vpack.c.bf16 %v1828, %v1824
      %v1878 = vpack.c.bf16 %v1836, %v1832
      %v1879 = vpack.c.bf16 %v1838, %v1834
      %v1880 = vpack.c.bf16 %v1846, %v1842
      %v1881 = vpack.c.bf16 %v1848, %v1844
      %v1882 = vld [vmem:[%s3] sm:$0xf]
      %v1883 = vld [vmem:[%s3 + $0x4] sm:$0xf]
      %v1884 = vld [vmem:[%s3 + $0x8] sm:$0xf]
      %v1885 = vld [vmem:[%s3 + $0xc] sm:$0xf]
      %v1886 = vld [vmem:[%s3 + $0x10] sm:$0xf]
      %v1887 = vld [vmem:[%s3 + $0x14] sm:$0xf]
      %v1888 = vld [vmem:[%s3 + $0x18] sm:$0xf]
      %v1889 = vld [vmem:[%s3 + $0x1c] sm:$0xf]
      %v1890 = vld [vmem:[%s3 + $0x20] sm:$0xf]
      %v1891 = vld [vmem:[%s3 + $0x24] sm:$0xf]
      %v1892 = vld [vmem:[%s3 + $0x28] sm:$0xf]
      %v1893 = vld [vmem:[%s3 + $0x2c] sm:$0xf]
      %v1894 = vld [vmem:[%s3 + $0x30] sm:$0xf]
      %v1895 = vld [vmem:[%s3 + $0x34] sm:$0xf]
      %v1896 = vld [vmem:[%s3 + $0x38] sm:$0xf]
      %v1897 = vld [vmem:[%s3 + $0x3c] sm:$0xf]
      %v1898 = vld [vmem:[%s3 + $0x40] sm:$0xf]
      %v1899 = vld [vmem:[%s3 + $0x44] sm:$0xf]
      %v1900 = vld [vmem:[%s3 + $0x48] sm:$0xf]
      %v1901 = vld [vmem:[%s3 + $0x4c] sm:$0xf]
      %v1902 = vld [vmem:[%s3 + $0x50] sm:$0xf]
      %v1903 = vld [vmem:[%s3 + $0x54] sm:$0xf]
      %v1904 = vld [vmem:[%s3 + $0x58] sm:$0xf]
      %v1905 = vld [vmem:[%s3 + $0x5c] sm:$0xf]
      %v1906 = vld [vmem:[%s3 + $0x60] sm:$0xf]
      %v1907 = vld [vmem:[%s3 + $0x64] sm:$0xf]
      %v1908 = vld [vmem:[%s3 + $0x68] sm:$0xf]
      %v1909 = vld [vmem:[%s3 + $0x6c] sm:$0xf]
      %v1910 = vld [vmem:[%s3 + $0x70] sm:$0xf]
      %v1911 = vld [vmem:[%s3 + $0x74] sm:$0xf]
      %v1912 = vld [vmem:[%s3 + $0x78] sm:$0xf]
      %v1913 = vld [vmem:[%s3 + $0x7c] sm:$0xf]
      %v1914 = vld [vmem:[%s1 + $0x8] sm:$0xf]
      %v1915 = vld [vmem:[%s1 + $0x14] sm:$0xf]
      %v1916 = vld [vmem:[%s1 + $0x20] sm:$0xf]
      %v1917 = vld [vmem:[%s1 + $0x2c] sm:$0xf]
      %v1918 = vld [vmem:[%s1 + $0x38] sm:$0xf]
      %v1919 = vld [vmem:[%s1 + $0x44] sm:$0xf]
      %v1920 = vld [vmem:[%s1 + $0x50] sm:$0xf]
      %v1921 = vld [vmem:[%s1 + $0x5c] sm:$0xf]
      %v1922 = vld [vmem:[%s1 + $0x68] sm:$0x1]
      %v1932 = vunpack.c.l.b16 %v1914
      %v1933 = vunpack.c.l.b16 %v1915
      %v1934 = vunpack.c.l.b16 %v1916
      %v1935 = vunpack.c.l.b16 %v1917
      %v1936 = vunpack.c.l.b16 %v1918
      %v1937 = vunpack.c.l.b16 %v1919
      %v1938 = vunpack.c.l.b16 %v1920
      %v1939 = vunpack.c.l.b16 %v1921
      %v1940 = vunpack.c.l.b16 %v1922
      %v1941 = vpack.c.b16 %v1933, %v1932
      %v1942 = vpack.c.b16 %v1935, %v1934
      %v1943 = vpack.c.b16 %v1937, %v1936
      %v1944 = vpack.c.b16 %v1939, %v1938
      %v1945 = vpack.c.b16 %v1940, %v1940
      %v1951 = vsel %vm392, %v1945, 0
      %1953 = vmatprep.subr.bf16.mxu0 0
      %1954 = vmatpush1.bf16.msra.mxu0 %v1941
      %1955 = vmatprep.subr.bf16.mxu0 0
      %1956 = vmatpush1.bf16.msra.mxu0 %v1942
      %1957 = vmatprep.subr.bf16.mxu0 0
      %1958 = vmatpush1.bf16.msra.mxu0 %v1943
      %1959 = vmatprep.subr.bf16.mxu0 0
      %1960 = vmatpush1.bf16.msra.mxu0 %v1944
      %1961 = vmatprep.subr.bf16.mxu0 0
      %1962 = vmatpush1.bf16.msra.mxu0 %v1951
      %1963 = vmatprep.subr.bf16.mxu0 0
      %1964 = vmatpush1.bf16.msra.mxu0 0
      %1965 = vmatprep.subr.bf16.mxu0 0
      %1966 = vmatpush1.bf16.msra.mxu0 0
      %1967 = vmatprep.subr.bf16.mxu0 0
      %1968 = vmatpush1.bf16.msra.mxu0 0
      %1969 = vmatprep.subr.bf16.mxu0 0
      %1970 = vmatpush1.bf16.msra.mxu0 0
      %1971 = vmatprep.subr.bf16.mxu0 0
      %1972 = vmatpush1.bf16.msra.mxu0 0
      %1973 = vmatprep.subr.bf16.mxu0 0
      %1974 = vmatpush1.bf16.msra.mxu0 0
      %1975 = vmatprep.subr.bf16.mxu0 0
      %1976 = vmatpush1.bf16.msra.mxu0 0
      %1977 = vmatprep.subr.bf16.mxu0 0
      %1978 = vmatpush1.bf16.msra.mxu0 0
      %1979 = vmatprep.subr.bf16.mxu0 0
      %1980 = vmatpush1.bf16.msra.mxu0 0
      %1981 = vmatprep.subr.bf16.mxu0 0
      %1982 = vmatpush1.bf16.msra.mxu0 0
      %1983 = vmatprep.subr.bf16.mxu0 0
      %1984 = vmatpush1.bf16.msra.mxu0 0
      %1985 = vmatprep.mubr.bf16.mxu0 0
      %1986 = vmatmul.mubr.bf16.gmra.mrb[0].mxu0 %v345
      %v1987 = vpop.f32.mrb[0].mxu0
      %v1988 = vadd.f32 0.0, %v1987
      %v1989 = vpop.f32.mrb[0].mxu0
      %v1990 = vpop.f32.mrb[0].mxu0
      %v1991 = vadd.f32 0.0, %v1990
      %v1992 = vpop.f32.mrb[0].mxu0
      %1993 = vmatprep.mubr.bf16.mxu0 0
      %1994 = vmatmul.mubr.bf16.gmra.mrb[0].mxu0 %v348
      %v1995 = vpop.f32.mrb[0].mxu0
      %v1996 = vadd.f32 0.0, %v1995
      %v1997 = vpop.f32.mrb[0].mxu0
      %v1998 = vpop.f32.mrb[0].mxu0
      %v1999 = vadd.f32 0.0, %v1998
      %v2000 = vpop.f32.mrb[0].mxu0
      %2001 = vmatprep.mubr.bf16.mxu0 0
      %2002 = vmatmul.mubr.bf16.gmra.mrb[0].mxu0 %v351
      %v2003 = vpop.f32.mrb[0].mxu0
      %v2004 = vadd.f32 0.0, %v2003
      %v2005 = vpop.f32.mrb[0].mxu0
      %v2006 = vpop.f32.mrb[0].mxu0
      %v2007 = vadd.f32 0.0, %v2006
      %v2008 = vpop.f32.mrb[0].mxu0
      %2009 = vmatprep.mubr.bf16.mxu0 0
      %2010 = vmatmul.mubr.bf16.gmra.mrb[0].mxu0 %v354
      %v2011 = vpop.f32.mrb[0].mxu0
      %v2012 = vadd.f32 0.0, %v2011
      %v2013 = vpop.f32.mrb[0].mxu0
      %v2014 = vpop.f32.mrb[0].mxu0
      %v2015 = vadd.f32 0.0, %v2014
      %v2016 = vpop.f32.mrb[0].mxu0
      %2017 = vmatprep.mubr.bf16.mxu0 0
      %2018 = vmatmul.mubr.bf16.gmra.mrb[0].mxu0 %v357
      %v2019 = vpop.f32.mrb[0].mxu0
      %v2020 = vadd.f32 0.0, %v2019
      %v2021 = vpop.f32.mrb[0].mxu0
      %v2022 = vpop.f32.mrb[0].mxu0
      %v2023 = vadd.f32 0.0, %v2022
      %v2024 = vpop.f32.mrb[0].mxu0
      %2025 = vmatprep.mubr.bf16.mxu0 0
      %2026 = vmatmul.mubr.bf16.gmra.mrb[0].mxu0 %v360
      %v2027 = vpop.f32.mrb[0].mxu0
      %v2028 = vadd.f32 0.0, %v2027
      %v2029 = vpop.f32.mrb[0].mxu0
      %v2030 = vpop.f32.mrb[0].mxu0
      %v2031 = vadd.f32 0.0, %v2030
      %v2032 = vpop.f32.mrb[0].mxu0
      %2033 = vmatprep.mubr.bf16.mxu0 0
      %2034 = vmatmul.mubr.bf16.gmra.mrb[0].mxu0 %v363
      %v2035 = vpop.f32.mrb[0].mxu0
      %v2036 = vadd.f32 0.0, %v2035
      %v2037 = vpop.f32.mrb[0].mxu0
      %v2038 = vpop.f32.mrb[0].mxu0
      %v2039 = vadd.f32 0.0, %v2038
      %v2040 = vpop.f32.mrb[0].mxu0
      %2041 = vmatprep.mubr.bf16.mxu0 0
      %2042 = vmatmul.mubr.bf16.gmra.mrb[0].mxu0 %v366
      %v2043 = vpop.f32.mrb[0].mxu0
      %v2044 = vadd.f32 0.0, %v2043
      %v2045 = vpop.f32.mrb[0].mxu0
      %v2046 = vpop.f32.mrb[0].mxu0
      %v2047 = vadd.f32 0.0, %v2046
      %v2048 = vpop.f32.mrb[0].mxu0
      %2049 = vmatprep.mubr.bf16.mxu0 0
      %2050 = vmatmul.mubr.bf16.gmra.mrb[0].mxu0 %v369
      %v2051 = vpop.f32.mrb[0].mxu0
      %v2052 = vadd.f32 0.0, %v2051
      %v2053 = vpop.f32.mrb[0].mxu0
      %v2054 = vpop.f32.mrb[0].mxu0
      %v2055 = vadd.f32 0.0, %v2054
      %v2056 = vpop.f32.mrb[0].mxu0
      %2057 = vmatprep.mubr.bf16.mxu0 0
      %2058 = vmatmul.mubr.bf16.gmra.mrb[0].mxu0 %v372
      %v2059 = vpop.f32.mrb[0].mxu0
      %v2060 = vadd.f32 0.0, %v2059
      %v2061 = vpop.f32.mrb[0].mxu0
      %v2062 = vpop.f32.mrb[0].mxu0
      %v2063 = vadd.f32 0.0, %v2062
      %v2064 = vpop.f32.mrb[0].mxu0
      %2065 = vmatprep.mubr.bf16.mxu0 0
      %2066 = vmatmul.mubr.bf16.gmra.mrb[0].mxu0 %v375
      %v2067 = vpop.f32.mrb[0].mxu0
      %v2068 = vadd.f32 0.0, %v2067
      %v2069 = vpop.f32.mrb[0].mxu0
      %v2070 = vpop.f32.mrb[0].mxu0
      %v2071 = vadd.f32 0.0, %v2070
      %v2072 = vpop.f32.mrb[0].mxu0
      %2073 = vmatprep.mubr.bf16.mxu0 0
      %2074 = vmatmul.mubr.bf16.gmra.mrb[0].mxu0 %v378
      %v2075 = vpop.f32.mrb[0].mxu0
      %v2076 = vadd.f32 0.0, %v2075
      %v2077 = vpop.f32.mrb[0].mxu0
      %v2078 = vpop.f32.mrb[0].mxu0
      %v2079 = vadd.f32 0.0, %v2078
      %v2080 = vpop.f32.mrb[0].mxu0
      %2081 = vmatprep.mubr.bf16.mxu0 0
      %2082 = vmatmul.mubr.bf16.gmra.mrb[0].mxu0 %v381
      %v2083 = vpop.f32.mrb[0].mxu0
      %v2084 = vadd.f32 0.0, %v2083
      %v2085 = vpop.f32.mrb[0].mxu0
      %v2086 = vpop.f32.mrb[0].mxu0
      %v2087 = vadd.f32 0.0, %v2086
      %v2088 = vpop.f32.mrb[0].mxu0
      %2089 = vmatprep.mubr.bf16.mxu0 0
      %2090 = vmatmul.mubr.bf16.gmra.mrb[0].mxu0 %v384
      %v2091 = vpop.f32.mrb[0].mxu0
      %v2092 = vadd.f32 0.0, %v2091
      %v2093 = vpop.f32.mrb[0].mxu0
      %v2094 = vpop.f32.mrb[0].mxu0
      %v2095 = vadd.f32 0.0, %v2094
      %v2096 = vpop.f32.mrb[0].mxu0
      %2097 = vmatprep.mubr.bf16.mxu0 0
      %2098 = vmatmul.mubr.bf16.gmra.mrb[0].mxu0 %v387
      %v2099 = vpop.f32.mrb[0].mxu0
      %v2100 = vadd.f32 0.0, %v2099
      %v2101 = vpop.f32.mrb[0].mxu0
      %v2102 = vpop.f32.mrb[0].mxu0
      %v2103 = vadd.f32 0.0, %v2102
      %v2104 = vpop.f32.mrb[0].mxu0
      %2105 = vmatprep.mubr.bf16.mxu0 0
      %2106 = vmatmul.mubr.bf16.gmra.mrb[0].mxu0 %v390
      %v2107 = vpop.f32.mrb[0].mxu0
      %v2108 = vadd.f32 0.0, %v2107
      %v2109 = vpop.f32.mrb[0].mxu0
      %v2110 = vpop.f32.mrb[0].mxu0
      %v2111 = vadd.f32 0.0, %v2110
      %v2112 = vpop.f32.mrb[0].mxu0
      %2113 = vdwg.mxu0
      %v2146 = vunpack.c.l.b16 %v1882
      %v2147 = vunpack.c.l.b16 %v1883
      %v2148 = vunpack.c.l.b16 %v1884
      %v2149 = vunpack.c.l.b16 %v1885
      %v2150 = vunpack.c.l.b16 %v1886
      %v2151 = vunpack.c.l.b16 %v1887
      %v2152 = vunpack.c.l.b16 %v1888
      %v2153 = vunpack.c.l.b16 %v1889
      %v2154 = vunpack.c.l.b16 %v1890
      %v2155 = vunpack.c.l.b16 %v1891
      %v2156 = vunpack.c.l.b16 %v1892
      %v2157 = vunpack.c.l.b16 %v1893
      %v2158 = vunpack.c.l.b16 %v1894
      %v2159 = vunpack.c.l.b16 %v1895
      %v2160 = vunpack.c.l.b16 %v1896
      %v2161 = vunpack.c.l.b16 %v1897
      %v2162 = vunpack.c.l.b16 %v1898
      %v2163 = vunpack.c.l.b16 %v1899
      %v2164 = vunpack.c.l.b16 %v1900
      %v2165 = vunpack.c.l.b16 %v1901
      %v2166 = vunpack.c.l.b16 %v1902
      %v2167 = vunpack.c.l.b16 %v1903
      %v2168 = vunpack.c.l.b16 %v1904
      %v2169 = vunpack.c.l.b16 %v1905
      %v2170 = vunpack.c.l.b16 %v1906
      %v2171 = vunpack.c.l.b16 %v1907
      %v2172 = vunpack.c.l.b16 %v1908
      %v2173 = vunpack.c.l.b16 %v1909
      %v2174 = vunpack.c.l.b16 %v1910
      %v2175 = vunpack.c.l.b16 %v1911
      %v2176 = vunpack.c.l.b16 %v1912
      %v2177 = vunpack.c.l.b16 %v1913
      %v2178 = vpack.c.b16 %v2147, %v2146
      %v2179 = vpack.c.b16 %v2149, %v2148
      %v2180 = vpack.c.b16 %v2151, %v2150
      %v2181 = vpack.c.b16 %v2153, %v2152
      %v2182 = vpack.c.b16 %v2155, %v2154
      %v2183 = vpack.c.b16 %v2157, %v2156
      %v2184 = vpack.c.b16 %v2159, %v2158
      %v2185 = vpack.c.b16 %v2161, %v2160
      %v2186 = vpack.c.b16 %v2163, %v2162
      %v2187 = vpack.c.b16 %v2165, %v2164
      %v2188 = vpack.c.b16 %v2167, %v2166
      %v2189 = vpack.c.b16 %v2169, %v2168
      %v2190 = vpack.c.b16 %v2171, %v2170
      %v2191 = vpack.c.b16 %v2173, %v2172
      %v2192 = vpack.c.b16 %v2175, %v2174
      %v2193 = vpack.c.b16 %v2177, %v2176
      %2210 = vmatprep.subr.bf16.mxu0 0
      %2211 = vmatpush1.bf16.msra.mxu0 %v2178
      %2212 = vmatprep.subr.bf16.mxu0 0
      %2213 = vmatpush1.bf16.msra.mxu0 %v2179
      %2214 = vmatprep.subr.bf16.mxu0 0
      %2215 = vmatpush1.bf16.msra.mxu0 %v2180
      %2216 = vmatprep.subr.bf16.mxu0 0
      %2217 = vmatpush1.bf16.msra.mxu0 %v2181
      %2218 = vmatprep.subr.bf16.mxu0 0
      %2219 = vmatpush1.bf16.msra.mxu0 %v2182
      %2220 = vmatprep.subr.bf16.mxu0 0
      %2221 = vmatpush1.bf16.msra.mxu0 %v2183
      %2222 = vmatprep.subr.bf16.mxu0 0
      %2223 = vmatpush1.bf16.msra.mxu0 %v2184
      %2224 = vmatprep.subr.bf16.mxu0 0
      %2225 = vmatpush1.bf16.msra.mxu0 %v2185
      %2226 = vmatprep.subr.bf16.mxu0 0
      %2227 = vmatpush1.bf16.msra.mxu0 %v2186
      %2228 = vmatprep.subr.bf16.mxu0 0
      %2229 = vmatpush1.bf16.msra.mxu0 %v2187
      %2230 = vmatprep.subr.bf16.mxu0 0
      %2231 = vmatpush1.bf16.msra.mxu0 %v2188
      %2232 = vmatprep.subr.bf16.mxu0 0
      %2233 = vmatpush1.bf16.msra.mxu0 %v2189
      %2234 = vmatprep.subr.bf16.mxu0 0
      %2235 = vmatpush1.bf16.msra.mxu0 %v2190
      %2236 = vmatprep.subr.bf16.mxu0 0
      %2237 = vmatpush1.bf16.msra.mxu0 %v2191
      %2238 = vmatprep.subr.bf16.mxu0 0
      %2239 = vmatpush1.bf16.msra.mxu0 %v2192
      %2240 = vmatprep.subr.bf16.mxu0 0
      %2241 = vmatpush1.bf16.msra.mxu0 %v2193
      %2242 = vmatprep.mubr.bf16.mxu0 %v1851
      %2243 = vmatmul.mubr.bf16.gmra.mrb[0].mxu0 %v1850
      %v2244 = vpop.f32.mrb[0].mxu0
      %v2245 = vadd.f32 %v1988, %v2244
      %v2246 = vpop.f32.mrb[0].mxu0
      %v2247 = vpop.f32.mrb[0].mxu0
      %v2248 = vadd.f32 %v1991, %v2247
      %v2249 = vpop.f32.mrb[0].mxu0
      %2250 = vmatprep.mubr.bf16.mxu0 %v1853
      %2251 = vmatmul.mubr.bf16.gmra.mrb[0].mxu0 %v1852
      %v2252 = vpop.f32.mrb[0].mxu0
      %v2253 = vadd.f32 %v1996, %v2252
      %v2254 = vpop.f32.mrb[0].mxu0
      %v2255 = vpop.f32.mrb[0].mxu0
      %v2256 = vadd.f32 %v1999, %v2255
      %v2257 = vpop.f32.mrb[0].mxu0
      %2258 = vmatprep.mubr.bf16.mxu0 %v1855
      %2259 = vmatmul.mubr.bf16.gmra.mrb[0].mxu0 %v1854
      %v2260 = vpop.f32.mrb[0].mxu0
      %v2261 = vadd.f32 %v2004, %v2260
      %v2262 = vpop.f32.mrb[0].mxu0
      %v2263 = vpop.f32.mrb[0].mxu0
      %v2264 = vadd.f32 %v2007, %v2263
      %v2265 = vpop.f32.mrb[0].mxu0
      %2266 = vmatprep.mubr.bf16.mxu0 %v1857
      %2267 = vmatmul.mubr.bf16.gmra.mrb[0].mxu0 %v1856
      %v2268 = vpop.f32.mrb[0].mxu0
      %v2269 = vadd.f32 %v2012, %v2268
      %v2270 = vpop.f32.mrb[0].mxu0
      %v2271 = vpop.f32.mrb[0].mxu0
      %v2272 = vadd.f32 %v2015, %v2271
      %v2273 = vpop.f32.mrb[0].mxu0
      %2274 = vmatprep.mubr.bf16.mxu0 %v1859
      %2275 = vmatmul.mubr.bf16.gmra.mrb[0].mxu0 %v1858
      %v2276 = vpop.f32.mrb[0].mxu0
      %v2277 = vadd.f32 %v2020, %v2276
      %v2278 = vpop.f32.mrb[0].mxu0
      %v2279 = vpop.f32.mrb[0].mxu0
      %v2280 = vadd.f32 %v2023, %v2279
      %v2281 = vpop.f32.mrb[0].mxu0
      %2282 = vmatprep.mubr.bf16.mxu0 %v1861
      %2283 = vmatmul.mubr.bf16.gmra.mrb[0].mxu0 %v1860
      %v2284 = vpop.f32.mrb[0].mxu0
      %v2285 = vadd.f32 %v2028, %v2284
      %v2286 = vpop.f32.mrb[0].mxu0
      %v2287 = vpop.f32.mrb[0].mxu0
      %v2288 = vadd.f32 %v2031, %v2287
      %v2289 = vpop.f32.mrb[0].mxu0
      %2290 = vmatprep.mubr.bf16.mxu0 %v1863
      %2291 = vmatmul.mubr.bf16.gmra.mrb[0].mxu0 %v1862
      %v2292 = vpop.f32.mrb[0].mxu0
      %v2293 = vadd.f32 %v2036, %v2292
      %v2294 = vpop.f32.mrb[0].mxu0
      %v2295 = vpop.f32.mrb[0].mxu0
      %v2296 = vadd.f32 %v2039, %v2295
      %v2297 = vpop.f32.mrb[0].mxu0
      %2298 = vmatprep.mubr.bf16.mxu0 %v1865
      %2299 = vmatmul.mubr.bf16.gmra.mrb[0].mxu0 %v1864
      %v2300 = vpop.f32.mrb[0].mxu0
      %v2301 = vadd.f32 %v2044, %v2300
      %v2302 = vpop.f32.mrb[0].mxu0
      %v2303 = vpop.f32.mrb[0].mxu0
      %v2304 = vadd.f32 %v2047, %v2303
      %v2305 = vpop.f32.mrb[0].mxu0
      %2306 = vmatprep.mubr.bf16.mxu0 %v1867
      %2307 = vmatmul.mubr.bf16.gmra.mrb[0].mxu0 %v1866
      %v2308 = vpop.f32.mrb[0].mxu0
      %v2309 = vadd.f32 %v2052, %v2308
      %v2310 = vpop.f32.mrb[0].mxu0
      %v2311 = vpop.f32.mrb[0].mxu0
      %v2312 = vadd.f32 %v2055, %v2311
      %v2313 = vpop.f32.mrb[0].mxu0
      %2314 = vmatprep.mubr.bf16.mxu0 %v1869
      %2315 = vmatmul.mubr.bf16.gmra.mrb[0].mxu0 %v1868
      %v2316 = vpop.f32.mrb[0].mxu0
      %v2317 = vadd.f32 %v2060, %v2316
      %v2318 = vpop.f32.mrb[0].mxu0
      %v2319 = vpop.f32.mrb[0].mxu0
      %v2320 = vadd.f32 %v2063, %v2319
      %v2321 = vpop.f32.mrb[0].mxu0
      %2322 = vmatprep.mubr.bf16.mxu0 %v1871
      %2323 = vmatmul.mubr.bf16.gmra.mrb[0].mxu0 %v1870
      %v2324 = vpop.f32.mrb[0].mxu0
      %v2325 = vadd.f32 %v2068, %v2324
      %v2326 = vpop.f32.mrb[0].mxu0
      %v2327 = vpop.f32.mrb[0].mxu0
      %v2328 = vadd.f32 %v2071, %v2327
      %v2329 = vpop.f32.mrb[0].mxu0
      %2330 = vmatprep.mubr.bf16.mxu0 %v1873
      %2331 = vmatmul.mubr.bf16.gmra.mrb[0].mxu0 %v1872
      %v2332 = vpop.f32.mrb[0].mxu0
      %v2333 = vadd.f32 %v2076, %v2332
      %v2334 = vpop.f32.mrb[0].mxu0
      %v2335 = vpop.f32.mrb[0].mxu0
      %v2336 = vadd.f32 %v2079, %v2335
      %v2337 = vpop.f32.mrb[0].mxu0
      %2338 = vmatprep.mubr.bf16.mxu0 %v1875
      %2339 = vmatmul.mubr.bf16.gmra.mrb[0].mxu0 %v1874
      %v2340 = vpop.f32.mrb[0].mxu0
      %v2341 = vadd.f32 %v2084, %v2340
      %v2342 = vpop.f32.mrb[0].mxu0
      %v2343 = vpop.f32.mrb[0].mxu0
      %v2344 = vadd.f32 %v2087, %v2343
      %v2345 = vpop.f32.mrb[0].mxu0
      %2346 = vmatprep.mubr.bf16.mxu0 %v1877
      %2347 = vmatmul.mubr.bf16.gmra.mrb[0].mxu0 %v1876
      %v2348 = vpop.f32.mrb[0].mxu0
      %v2349 = vadd.f32 %v2092, %v2348
      %v2350 = vpop.f32.mrb[0].mxu0
      %v2351 = vpop.f32.mrb[0].mxu0
      %v2352 = vadd.f32 %v2095, %v2351
      %v2353 = vpop.f32.mrb[0].mxu0
      %2354 = vmatprep.mubr.bf16.mxu0 %v1879
      %2355 = vmatmul.mubr.bf16.gmra.mrb[0].mxu0 %v1878
      %v2356 = vpop.f32.mrb[0].mxu0
      %v2357 = vadd.f32 %v2100, %v2356
      %v2358 = vpop.f32.mrb[0].mxu0
      %v2359 = vpop.f32.mrb[0].mxu0
      %v2360 = vadd.f32 %v2103, %v2359
      %v2361 = vpop.f32.mrb[0].mxu0
      %2362 = vmatprep.mubr.bf16.mxu0 %v1881
      %2363 = vmatmul.mubr.bf16.gmra.mrb[0].mxu0 %v1880
      %v2364 = vpop.f32.mrb[0].mxu0
      %v2365 = vadd.f32 %v2108, %v2364
      %v2366 = vpop.f32.mrb[0].mxu0
      %v2367 = vpop.f32.mrb[0].mxu0
      %v2368 = vadd.f32 %v2111, %v2367
      %v2369 = vpop.f32.mrb[0].mxu0
      %2370 = vdwg.mxu0
      %v2371 = vld [vmem:[%s4 + $0x3] ss:$0 sm:$0xff]
      %v2372 = vadd.f32 %v2245, %v2371
      %v2373 = vadd.f32 %v2248, %v2371
      %v2374 = vadd.f32 %v2253, %v2371
      %v2375 = vadd.f32 %v2256, %v2371
      %v2376 = vadd.f32 %v2261, %v2371
      %v2377 = vadd.f32 %v2264, %v2371
      %v2378 = vadd.f32 %v2269, %v2371
      %v2379 = vadd.f32 %v2272, %v2371
      %v2380 = vadd.f32 %v2277, %v2371
      %v2381 = vadd.f32 %v2280, %v2371
      %v2382 = vadd.f32 %v2285, %v2371
      %v2383 = vadd.f32 %v2288, %v2371
      %v2384 = vadd.f32 %v2293, %v2371
      %v2385 = vadd.f32 %v2296, %v2371
      %v2386 = vadd.f32 %v2301, %v2371
      %v2387 = vadd.f32 %v2304, %v2371
      %v2388 = vadd.f32 %v2309, %v2371
      %v2389 = vadd.f32 %v2312, %v2371
      %v2390 = vadd.f32 %v2317, %v2371
      %v2391 = vadd.f32 %v2320, %v2371
      %v2392 = vadd.f32 %v2325, %v2371
      %v2393 = vadd.f32 %v2328, %v2371
      %v2394 = vadd.f32 %v2333, %v2371
      %v2395 = vadd.f32 %v2336, %v2371
      %v2396 = vadd.f32 %v2341, %v2371
      %v2397 = vadd.f32 %v2344, %v2371
      %v2398 = vadd.f32 %v2349, %v2371
      %v2399 = vadd.f32 %v2352, %v2371
      %v2400 = vadd.f32 %v2357, %v2371
      %v2401 = vadd.f32 %v2360, %v2371
      %v2402 = vadd.f32 %v2365, %v2371
      %v2403 = vadd.f32 %v2368, %v2371
      %v2404 = vmax.f32 %v2372, 0.0
      %v2405 = vmax.f32 %v2373, 0.0
      %v2406 = vmax.f32 %v2374, 0.0
      %v2407 = vmax.f32 %v2375, 0.0
      %v2408 = vmax.f32 %v2376, 0.0
      %v2409 = vmax.f32 %v2377, 0.0
      %v2410 = vmax.f32 %v2378, 0.0
      %v2411 = vmax.f32 %v2379, 0.0
      %v2412 = vmax.f32 %v2380, 0.0
      %v2413 = vmax.f32 %v2381, 0.0
      %v2414 = vmax.f32 %v2382, 0.0
      %v2415 = vmax.f32 %v2383, 0.0
      %v2416 = vmax.f32 %v2384, 0.0
      %v2417 = vmax.f32 %v2385, 0.0
      %v2418 = vmax.f32 %v2386, 0.0
      %v2419 = vmax.f32 %v2387, 0.0
      %v2420 = vmax.f32 %v2388, 0.0
      %v2421 = vmax.f32 %v2389, 0.0
      %v2422 = vmax.f32 %v2390, 0.0
      %v2423 = vmax.f32 %v2391, 0.0
      %v2424 = vmax.f32 %v2392, 0.0
      %v2425 = vmax.f32 %v2393, 0.0
      %v2426 = vmax.f32 %v2394, 0.0
      %v2427 = vmax.f32 %v2395, 0.0
      %v2428 = vmax.f32 %v2396, 0.0
      %v2429 = vmax.f32 %v2397, 0.0
      %v2430 = vmax.f32 %v2398, 0.0
      %v2431 = vmax.f32 %v2399, 0.0
      %v2432 = vmax.f32 %v2400, 0.0
      %v2433 = vmax.f32 %v2401, 0.0
      %v2434 = vmax.f32 %v2402, 0.0
      %v2435 = vmax.f32 %v2403, 0.0
      %v2436 = vpack.c.bf16 %v2405, %v2404
      %v2437 = vpack.c.bf16 %v2407, %v2406
      %v2438 = vpack.c.bf16 %v2409, %v2408
      %v2439 = vpack.c.bf16 %v2411, %v2410
      %v2440 = vpack.c.bf16 %v2413, %v2412
      %v2441 = vpack.c.bf16 %v2415, %v2414
      %v2442 = vpack.c.bf16 %v2417, %v2416
      %v2443 = vpack.c.bf16 %v2419, %v2418
      %v2444 = vpack.c.bf16 %v2421, %v2420
      %v2445 = vpack.c.bf16 %v2423, %v2422
      %v2446 = vpack.c.bf16 %v2425, %v2424
      %v2447 = vpack.c.bf16 %v2427, %v2426
      %v2448 = vpack.c.bf16 %v2429, %v2428
      %v2449 = vpack.c.bf16 %v2431, %v2430
      %v2450 = vpack.c.bf16 %v2433, %v2432
      %v2451 = vpack.c.bf16 %v2435, %v2434
      %v2452 = vld [vmem:[%s3 + $0x80] sm:$0xf]
      %v2453 = vld [vmem:[%s3 + $0x84] sm:$0xf]
      %v2454 = vld [vmem:[%s3 + $0x88] sm:$0xf]
      %v2455 = vld [vmem:[%s3 + $0x8c] sm:$0xf]
      %v2456 = vld [vmem:[%s3 + $0x90] sm:$0xf]
      %v2457 = vld [vmem:[%s3 + $0x94] sm:$0xf]
      %v2458 = vld [vmem:[%s3 + $0x98] sm:$0xf]
      %v2459 = vld [vmem:[%s3 + $0x9c] sm:$0xf]
      %v2460 = vld [vmem:[%s3 + $0xa0] sm:$0xf]
      %v2461 = vld [vmem:[%s3 + $0xa4] sm:$0xf]
      %v2462 = vld [vmem:[%s3 + $0xa8] sm:$0xf]
      %v2463 = vld [vmem:[%s3 + $0xac] sm:$0xf]
      %v2464 = vld [vmem:[%s3 + $0xb0] sm:$0xf]
      %v2465 = vld [vmem:[%s3 + $0xb4] sm:$0xf]
      %v2466 = vld [vmem:[%s3 + $0xb8] sm:$0xf]
      %v2467 = vld [vmem:[%s3 + $0xbc] sm:$0xf]
      %v2468 = vld [vmem:[%s4 + $0x4] ss:$0 sm:$0xff]
      %v2485 = vunpack.c.l.b16 %v2452
      %v2486 = vunpack.c.l.b16 %v2453
      %v2487 = vunpack.c.l.b16 %v2454
      %v2488 = vunpack.c.l.b16 %v2455
      %v2489 = vunpack.c.l.b16 %v2456
      %v2490 = vunpack.c.l.b16 %v2457
      %v2491 = vunpack.c.l.b16 %v2458
      %v2492 = vunpack.c.l.b16 %v2459
      %v2493 = vunpack.c.l.b16 %v2460
      %v2494 = vunpack.c.l.b16 %v2461
      %v2495 = vunpack.c.l.b16 %v2462
      %v2496 = vunpack.c.l.b16 %v2463
      %v2497 = vunpack.c.l.b16 %v2464
      %v2498 = vunpack.c.l.b16 %v2465
      %v2499 = vunpack.c.l.b16 %v2466
      %v2500 = vunpack.c.l.b16 %v2467
      %v2501 = vpack.c.b16 %v2486, %v2485
      %v2502 = vpack.c.b16 %v2488, %v2487
      %v2503 = vpack.c.b16 %v2490, %v2489
      %v2504 = vpack.c.b16 %v2492, %v2491
      %v2505 = vpack.c.b16 %v2494, %v2493
      %v2506 = vpack.c.b16 %v2496, %v2495
      %v2507 = vpack.c.b16 %v2498, %v2497
      %v2508 = vpack.c.b16 %v2500, %v2499
      %2517 = vmatprep.subr.bf16.mxu0 0
      %2518 = vmatpush1.bf16.msra.mxu0 %v2501
      %2519 = vmatprep.subr.bf16.mxu0 0
      %2520 = vmatpush1.bf16.msra.mxu0 %v2502
      %2521 = vmatprep.subr.bf16.mxu0 0
      %2522 = vmatpush1.bf16.msra.mxu0 %v2503
      %2523 = vmatprep.subr.bf16.mxu0 0
      %2524 = vmatpush1.bf16.msra.mxu0 %v2504
      %2525 = vmatprep.subr.bf16.mxu0 0
      %2526 = vmatpush1.bf16.msra.mxu0 %v2505
      %2527 = vmatprep.subr.bf16.mxu0 0
      %2528 = vmatpush1.bf16.msra.mxu0 %v2506
      %2529 = vmatprep.subr.bf16.mxu0 0
      %2530 = vmatpush1.bf16.msra.mxu0 %v2507
      %2531 = vmatprep.subr.bf16.mxu0 0
      %2532 = vmatpush1.bf16.msra.mxu0 %v2508
      %2533 = vmatprep.subr.bf16.mxu0 0
      %2534 = vmatpush1.bf16.msra.mxu0 0
      %2535 = vmatprep.subr.bf16.mxu0 0
      %2536 = vmatpush1.bf16.msra.mxu0 0
      %2537 = vmatprep.subr.bf16.mxu0 0
      %2538 = vmatpush1.bf16.msra.mxu0 0
      %2539 = vmatprep.subr.bf16.mxu0 0
      %2540 = vmatpush1.bf16.msra.mxu0 0
      %2541 = vmatprep.subr.bf16.mxu0 0
      %2542 = vmatpush1.bf16.msra.mxu0 0
      %2543 = vmatprep.subr.bf16.mxu0 0
      %2544 = vmatpush1.bf16.msra.mxu0 0
      %2545 = vmatprep.subr.bf16.mxu0 0
      %2546 = vmatpush1.bf16.msra.mxu0 0
      %2547 = vmatprep.subr.bf16.mxu0 0
      %2548 = vmatpush1.bf16.msra.mxu0 0
      %2549 = vmatprep.mubr.bf16.mxu0 0
      %2550 = vmatmul.mubr.bf16.gmra.mrb[0].mxu0 %v2436
      %v2551 = vpop.f32.mrb[0].mxu0
      %v2552 = vadd.f32 %v2468, %v2551
      %v2553 = vpop.f32.mrb[0].mxu0
      %v2554 = vpop.f32.mrb[0].mxu0
      %v2555 = vadd.f32 %v2468, %v2554
      %v2556 = vpop.f32.mrb[0].mxu0
      %2557 = vmatprep.mubr.bf16.mxu0 0
      %2558 = vmatmul.mubr.bf16.gmra.mrb[0].mxu0 %v2437
      %v2559 = vpop.f32.mrb[0].mxu0
      %v2560 = vadd.f32 %v2468, %v2559
      %v2561 = vpop.f32.mrb[0].mxu0
      %v2562 = vpop.f32.mrb[0].mxu0
      %v2563 = vadd.f32 %v2468, %v2562
      %v2564 = vpop.f32.mrb[0].mxu0
      %2565 = vmatprep.mubr.bf16.mxu0 0
      %2566 = vmatmul.mubr.bf16.gmra.mrb[0].mxu0 %v2438
      %v2567 = vpop.f32.mrb[0].mxu0
      %v2568 = vadd.f32 %v2468, %v2567
      %v2569 = vpop.f32.mrb[0].mxu0
      %v2570 = vpop.f32.mrb[0].mxu0
      %v2571 = vadd.f32 %v2468, %v2570
      %v2572 = vpop.f32.mrb[0].mxu0
      %2573 = vmatprep.mubr.bf16.mxu0 0
      %2574 = vmatmul.mubr.bf16.gmra.mrb[0].mxu0 %v2439
      %v2575 = vpop.f32.mrb[0].mxu0
      %v2576 = vadd.f32 %v2468, %v2575
      %v2577 = vpop.f32.mrb[0].mxu0
      %v2578 = vpop.f32.mrb[0].mxu0
      %v2579 = vadd.f32 %v2468, %v2578
      %v2580 = vpop.f32.mrb[0].mxu0
      %2581 = vmatprep.mubr.bf16.mxu0 0
      %2582 = vmatmul.mubr.bf16.gmra.mrb[0].mxu0 %v2440
      %v2583 = vpop.f32.mrb[0].mxu0
      %v2584 = vadd.f32 %v2468, %v2583
      %v2585 = vpop.f32.mrb[0].mxu0
      %v2586 = vpop.f32.mrb[0].mxu0
      %v2587 = vadd.f32 %v2468, %v2586
      %v2588 = vpop.f32.mrb[0].mxu0
      %2589 = vmatprep.mubr.bf16.mxu0 0
      %2590 = vmatmul.mubr.bf16.gmra.mrb[0].mxu0 %v2441
      %v2591 = vpop.f32.mrb[0].mxu0
      %v2592 = vadd.f32 %v2468, %v2591
      %v2593 = vpop.f32.mrb[0].mxu0
      %v2594 = vpop.f32.mrb[0].mxu0
      %v2595 = vadd.f32 %v2468, %v2594
      %v2596 = vpop.f32.mrb[0].mxu0
      %2597 = vmatprep.mubr.bf16.mxu0 0
      %2598 = vmatmul.mubr.bf16.gmra.mrb[0].mxu0 %v2442
      %v2599 = vpop.f32.mrb[0].mxu0
      %v2600 = vadd.f32 %v2468, %v2599
      %v2601 = vpop.f32.mrb[0].mxu0
      %v2602 = vpop.f32.mrb[0].mxu0
      %v2603 = vadd.f32 %v2468, %v2602
      %v2604 = vpop.f32.mrb[0].mxu0
      %2605 = vmatprep.mubr.bf16.mxu0 0
      %2606 = vmatmul.mubr.bf16.gmra.mrb[0].mxu0 %v2443
      %v2607 = vpop.f32.mrb[0].mxu0
      %v2608 = vadd.f32 %v2468, %v2607
      %v2609 = vpop.f32.mrb[0].mxu0
      %v2610 = vpop.f32.mrb[0].mxu0
      %v2611 = vadd.f32 %v2468, %v2610
      %v2612 = vpop.f32.mrb[0].mxu0
      %2613 = vmatprep.mubr.bf16.mxu0 0
      %2614 = vmatmul.mubr.bf16.gmra.mrb[0].mxu0 %v2444
      %v2615 = vpop.f32.mrb[0].mxu0
      %v2616 = vadd.f32 %v2468, %v2615
      %v2617 = vpop.f32.mrb[0].mxu0
      %v2618 = vpop.f32.mrb[0].mxu0
      %v2619 = vadd.f32 %v2468, %v2618
      %v2620 = vpop.f32.mrb[0].mxu0
      %2621 = vmatprep.mubr.bf16.mxu0 0
      %2622 = vmatmul.mubr.bf16.gmra.mrb[0].mxu0 %v2445
      %v2623 = vpop.f32.mrb[0].mxu0
      %v2624 = vadd.f32 %v2468, %v2623
      %v2625 = vpop.f32.mrb[0].mxu0
      %v2626 = vpop.f32.mrb[0].mxu0
      %v2627 = vadd.f32 %v2468, %v2626
      %v2628 = vpop.f32.mrb[0].mxu0
      %2629 = vmatprep.mubr.bf16.mxu0 0
      %2630 = vmatmul.mubr.bf16.gmra.mrb[0].mxu0 %v2446
      %v2631 = vpop.f32.mrb[0].mxu0
      %v2632 = vadd.f32 %v2468, %v2631
      %v2633 = vpop.f32.mrb[0].mxu0
      %v2634 = vpop.f32.mrb[0].mxu0
      %v2635 = vadd.f32 %v2468, %v2634
      %v2636 = vpop.f32.mrb[0].mxu0
      %2637 = vmatprep.mubr.bf16.mxu0 0
      %2638 = vmatmul.mubr.bf16.gmra.mrb[0].mxu0 %v2447
      %v2639 = vpop.f32.mrb[0].mxu0
      %v2640 = vadd.f32 %v2468, %v2639
      %v2641 = vpop.f32.mrb[0].mxu0
      %v2642 = vpop.f32.mrb[0].mxu0
      %v2643 = vadd.f32 %v2468, %v2642
      %v2644 = vpop.f32.mrb[0].mxu0
      %2645 = vmatprep.mubr.bf16.mxu0 0
      %2646 = vmatmul.mubr.bf16.gmra.mrb[0].mxu0 %v2448
      %v2647 = vpop.f32.mrb[0].mxu0
      %v2648 = vadd.f32 %v2468, %v2647
      %v2649 = vpop.f32.mrb[0].mxu0
      %v2650 = vpop.f32.mrb[0].mxu0
      %v2651 = vadd.f32 %v2468, %v2650
      %v2652 = vpop.f32.mrb[0].mxu0
      %2653 = vmatprep.mubr.bf16.mxu0 0
      %2654 = vmatmul.mubr.bf16.gmra.mrb[0].mxu0 %v2449
      %v2655 = vpop.f32.mrb[0].mxu0
      %v2656 = vadd.f32 %v2468, %v2655
      %v2657 = vpop.f32.mrb[0].mxu0
      %v2658 = vpop.f32.mrb[0].mxu0
      %v2659 = vadd.f32 %v2468, %v2658
      %v2660 = vpop.f32.mrb[0].mxu0
      %2661 = vmatprep.mubr.bf16.mxu0 0
      %2662 = vmatmul.mubr.bf16.gmra.mrb[0].mxu0 %v2450
      %v2663 = vpop.f32.mrb[0].mxu0
      %v2664 = vadd.f32 %v2468, %v2663
      %v2665 = vpop.f32.mrb[0].mxu0
      %v2666 = vpop.f32.mrb[0].mxu0
      %v2667 = vadd.f32 %v2468, %v2666
      %v2668 = vpop.f32.mrb[0].mxu0
      %2669 = vmatprep.mubr.bf16.mxu0 0
      %2670 = vmatmul.mubr.bf16.gmra.mrb[0].mxu0 %v2451
      %v2671 = vpop.f32.mrb[0].mxu0
      %v2672 = vadd.f32 %v2468, %v2671
      %v2673 = vpop.f32.mrb[0].mxu0
      %v2674 = vpop.f32.mrb[0].mxu0
      %v2675 = vadd.f32 %v2468, %v2674
      %v2676 = vpop.f32.mrb[0].mxu0
      %2677 = vdwg.mxu0
      %v2678 = vmax.f32 %v2552, 0.0
      %v2679 = vmax.f32 %v2555, 0.0
      %v2680 = vmax.f32 %v2560, 0.0
      %v2681 = vmax.f32 %v2563, 0.0
      %v2682 = vmax.f32 %v2568, 0.0
      %v2683 = vmax.f32 %v2571, 0.0
      %v2684 = vmax.f32 %v2576, 0.0
      %v2685 = vmax.f32 %v2579, 0.0
      %v2686 = vmax.f32 %v2584, 0.0
      %v2687 = vmax.f32 %v2587, 0.0
      %v2688 = vmax.f32 %v2592, 0.0
      %v2689 = vmax.f32 %v2595, 0.0
      %v2690 = vmax.f32 %v2600, 0.0
      %v2691 = vmax.f32 %v2603, 0.0
      %v2692 = vmax.f32 %v2608, 0.0
      %v2693 = vmax.f32 %v2611, 0.0
      %v2694 = vmax.f32 %v2616, 0.0
      %v2695 = vmax.f32 %v2619, 0.0
      %v2696 = vmax.f32 %v2624, 0.0
      %v2697 = vmax.f32 %v2627, 0.0
      %v2698 = vmax.f32 %v2632, 0.0
      %v2699 = vmax.f32 %v2635, 0.0
      %v2700 = vmax.f32 %v2640, 0.0
      %v2701 = vmax.f32 %v2643, 0.0
      %v2702 = vmax.f32 %v2648, 0.0
      %v2703 = vmax.f32 %v2651, 0.0
      %v2704 = vmax.f32 %v2656, 0.0
      %v2705 = vmax.f32 %v2659, 0.0
      %v2706 = vmax.f32 %v2664, 0.0
      %v2707 = vmax.f32 %v2667, 0.0
      %v2708 = vmax.f32 %v2672, 0.0
      %v2709 = vmax.f32 %v2675, 0.0
      %v2710 = vpack.c.bf16 %v2679, %v2678
      %v2711 = vpack.c.bf16 %v2681, %v2680
      %v2712 = vpack.c.bf16 %v2683, %v2682
      %v2713 = vpack.c.bf16 %v2685, %v2684
      %v2714 = vpack.c.bf16 %v2687, %v2686
      %v2715 = vpack.c.bf16 %v2689, %v2688
      %v2716 = vpack.c.bf16 %v2691, %v2690
      %v2717 = vpack.c.bf16 %v2693, %v2692
      %v2718 = vpack.c.bf16 %v2695, %v2694
      %v2719 = vpack.c.bf16 %v2697, %v2696
      %v2720 = vpack.c.bf16 %v2699, %v2698
      %v2721 = vpack.c.bf16 %v2701, %v2700
      %v2722 = vpack.c.bf16 %v2703, %v2702
      %v2723 = vpack.c.bf16 %v2705, %v2704
      %v2724 = vpack.c.bf16 %v2707, %v2706
      %v2725 = vpack.c.bf16 %v2709, %v2708
      %v2726 = vld [vmem:[%s3 + $0xc0] sm:$0xf]
      %v2727 = vld [vmem:[%s3 + $0xc4] sm:$0xf]
      %v2728 = vld [vmem:[%s3 + $0xc8] sm:$0xf]
      %v2729 = vld [vmem:[%s3 + $0xcc] sm:$0xf]
      %v2730 = vld [vmem:[%s3 + $0xd0] sm:$0xf]
      %v2731 = vld [vmem:[%s3 + $0xd4] sm:$0xf]
      %v2732 = vld [vmem:[%s3 + $0xd8] sm:$0xf]
      %v2733 = vld [vmem:[%s3 + $0xdc] sm:$0xf]
      %v2734 = vld [vmem:[%s3 + $0xe0] sm:$0xf]
      %v2735 = vld [vmem:[%s3 + $0xe4] sm:$0xf]
      %v2736 = vld [vmem:[%s3 + $0xe8] sm:$0xf]
      %v2737 = vld [vmem:[%s3 + $0xec] sm:$0xf]
      %v2738 = vld [vmem:[%s3 + $0xf0] sm:$0xf]
      %v2739 = vld [vmem:[%s3 + $0xf4] sm:$0xf]
      %v2740 = vld [vmem:[%s3 + $0xf8] sm:$0xf]
      %v2741 = vld [vmem:[%s3 + $0xfc] sm:$0xf]
      %v2742 = vld [vmem:[%s4 + $0x5] ss:$0 sm:$0xff]
      %v2759 = vunpack.c.l.b16 %v2726
      %v2760 = vunpack.c.l.b16 %v2727
      %v2761 = vunpack.c.l.b16 %v2728
      %v2762 = vunpack.c.l.b16 %v2729
      %v2763 = vunpack.c.l.b16 %v2730
      %v2764 = vunpack.c.l.b16 %v2731
      %v2765 = vunpack.c.l.b16 %v2732
      %v2766 = vunpack.c.l.b16 %v2733
      %v2767 = vunpack.c.l.b16 %v2734
      %v2768 = vunpack.c.l.b16 %v2735
      %v2769 = vunpack.c.l.b16 %v2736
      %v2770 = vunpack.c.l.b16 %v2737
      %v2771 = vunpack.c.l.b16 %v2738
      %v2772 = vunpack.c.l.b16 %v2739
      %v2773 = vunpack.c.l.b16 %v2740
      %v2774 = vunpack.c.l.b16 %v2741
      %v2775 = vpack.c.b16 %v2760, %v2759
      %v2776 = vpack.c.b16 %v2762, %v2761
      %v2777 = vpack.c.b16 %v2764, %v2763
      %v2778 = vpack.c.b16 %v2766, %v2765
      %v2779 = vpack.c.b16 %v2768, %v2767
      %v2780 = vpack.c.b16 %v2770, %v2769
      %v2781 = vpack.c.b16 %v2772, %v2771
      %v2782 = vpack.c.b16 %v2774, %v2773
      %2791 = vmatprep.subr.bf16.mxu0 0
      %2792 = vmatpush1.bf16.msra.mxu0 %v2775
      %2793 = vmatprep.subr.bf16.mxu0 0
      %2794 = vmatpush1.bf16.msra.mxu0 %v2776
      %2795 = vmatprep.subr.bf16.mxu0 0
      %2796 = vmatpush1.bf16.msra.mxu0 %v2777
      %2797 = vmatprep.subr.bf16.mxu0 0
      %2798 = vmatpush1.bf16.msra.mxu0 %v2778
      %2799 = vmatprep.subr.bf16.mxu0 0
      %2800 = vmatpush1.bf16.msra.mxu0 %v2779
      %2801 = vmatprep.subr.bf16.mxu0 0
      %2802 = vmatpush1.bf16.msra.mxu0 %v2780
      %2803 = vmatprep.subr.bf16.mxu0 0
      %2804 = vmatpush1.bf16.msra.mxu0 %v2781
      %2805 = vmatprep.subr.bf16.mxu0 0
      %2806 = vmatpush1.bf16.msra.mxu0 %v2782
      %2807 = vmatprep.subr.bf16.mxu0 0
      %2808 = vmatpush1.bf16.msra.mxu0 0
      %2809 = vmatprep.subr.bf16.mxu0 0
      %2810 = vmatpush1.bf16.msra.mxu0 0
      %2811 = vmatprep.subr.bf16.mxu0 0
      %2812 = vmatpush1.bf16.msra.mxu0 0
      %2813 = vmatprep.subr.bf16.mxu0 0
      %2814 = vmatpush1.bf16.msra.mxu0 0
      %2815 = vmatprep.subr.bf16.mxu0 0
      %2816 = vmatpush1.bf16.msra.mxu0 0
      %2817 = vmatprep.subr.bf16.mxu0 0
      %2818 = vmatpush1.bf16.msra.mxu0 0
      %2819 = vmatprep.subr.bf16.mxu0 0
      %2820 = vmatpush1.bf16.msra.mxu0 0
      %2821 = vmatprep.subr.bf16.mxu0 0
      %2822 = vmatpush1.bf16.msra.mxu0 0
      %2823 = vmatprep.mubr.bf16.mxu0 0
      %2824 = vmatmul.mubr.bf16.gmra.mrb[0].mxu0 %v2710
      %v2825 = vpop.f32.mrb[0].mxu0
      %v2826 = vadd.f32 %v2742, %v2825
      %v2827 = vpop.f32.mrb[0].mxu0
      %v2828 = vpop.f32.mrb[0].mxu0
      %v2829 = vadd.f32 %v2742, %v2828
      %v2830 = vpop.f32.mrb[0].mxu0
      %2831 = vmatprep.mubr.bf16.mxu0 0
      %2832 = vmatmul.mubr.bf16.gmra.mrb[0].mxu0 %v2711
      %v2833 = vpop.f32.mrb[0].mxu0
      %v2834 = vadd.f32 %v2742, %v2833
      %v2835 = vpop.f32.mrb[0].mxu0
      %v2836 = vpop.f32.mrb[0].mxu0
      %v2837 = vadd.f32 %v2742, %v2836
      %v2838 = vpop.f32.mrb[0].mxu0
      %2839 = vmatprep.mubr.bf16.mxu0 0
      %2840 = vmatmul.mubr.bf16.gmra.mrb[0].mxu0 %v2712
      %v2841 = vpop.f32.mrb[0].mxu0
      %v2842 = vadd.f32 %v2742, %v2841
      %v2843 = vpop.f32.mrb[0].mxu0
      %v2844 = vpop.f32.mrb[0].mxu0
      %v2845 = vadd.f32 %v2742, %v2844
      %v2846 = vpop.f32.mrb[0].mxu0
      %2847 = vmatprep.mubr.bf16.mxu0 0
      %2848 = vmatmul.mubr.bf16.gmra.mrb[0].mxu0 %v2713
      %v2849 = vpop.f32.mrb[0].mxu0
      %v2850 = vadd.f32 %v2742, %v2849
      %v2851 = vpop.f32.mrb[0].mxu0
      %v2852 = vpop.f32.mrb[0].mxu0
      %v2853 = vadd.f32 %v2742, %v2852
      %v2854 = vpop.f32.mrb[0].mxu0
      %2855 = vmatprep.mubr.bf16.mxu0 0
      %2856 = vmatmul.mubr.bf16.gmra.mrb[0].mxu0 %v2714
      %v2857 = vpop.f32.mrb[0].mxu0
      %v2858 = vadd.f32 %v2742, %v2857
      %v2859 = vpop.f32.mrb[0].mxu0
      %v2860 = vpop.f32.mrb[0].mxu0
      %v2861 = vadd.f32 %v2742, %v2860
      %v2862 = vpop.f32.mrb[0].mxu0
      %2863 = vmatprep.mubr.bf16.mxu0 0
      %2864 = vmatmul.mubr.bf16.gmra.mrb[0].mxu0 %v2715
      %v2865 = vpop.f32.mrb[0].mxu0
      %v2866 = vadd.f32 %v2742, %v2865
      %v2867 = vpop.f32.mrb[0].mxu0
      %v2868 = vpop.f32.mrb[0].mxu0
      %v2869 = vadd.f32 %v2742, %v2868
      %v2870 = vpop.f32.mrb[0].mxu0
      %2871 = vmatprep.mubr.bf16.mxu0 0
      %2872 = vmatmul.mubr.bf16.gmra.mrb[0].mxu0 %v2716
      %v2873 = vpop.f32.mrb[0].mxu0
      %v2874 = vadd.f32 %v2742, %v2873
      %v2875 = vpop.f32.mrb[0].mxu0
      %v2876 = vpop.f32.mrb[0].mxu0
      %v2877 = vadd.f32 %v2742, %v2876
      %v2878 = vpop.f32.mrb[0].mxu0
      %2879 = vmatprep.mubr.bf16.mxu0 0
      %2880 = vmatmul.mubr.bf16.gmra.mrb[0].mxu0 %v2717
      %v2881 = vpop.f32.mrb[0].mxu0
      %v2882 = vadd.f32 %v2742, %v2881
      %v2883 = vpop.f32.mrb[0].mxu0
      %v2884 = vpop.f32.mrb[0].mxu0
      %v2885 = vadd.f32 %v2742, %v2884
      %v2886 = vpop.f32.mrb[0].mxu0
      %2887 = vmatprep.mubr.bf16.mxu0 0
      %2888 = vmatmul.mubr.bf16.gmra.mrb[0].mxu0 %v2718
      %v2889 = vpop.f32.mrb[0].mxu0
      %v2890 = vadd.f32 %v2742, %v2889
      %v2891 = vpop.f32.mrb[0].mxu0
      %v2892 = vpop.f32.mrb[0].mxu0
      %v2893 = vadd.f32 %v2742, %v2892
      %v2894 = vpop.f32.mrb[0].mxu0
      %2895 = vmatprep.mubr.bf16.mxu0 0
      %2896 = vmatmul.mubr.bf16.gmra.mrb[0].mxu0 %v2719
      %v2897 = vpop.f32.mrb[0].mxu0
      %v2898 = vadd.f32 %v2742, %v2897
      %v2899 = vpop.f32.mrb[0].mxu0
      %v2900 = vpop.f32.mrb[0].mxu0
      %v2901 = vadd.f32 %v2742, %v2900
      %v2902 = vpop.f32.mrb[0].mxu0
      %2903 = vmatprep.mubr.bf16.mxu0 0
      %2904 = vmatmul.mubr.bf16.gmra.mrb[0].mxu0 %v2720
      %v2905 = vpop.f32.mrb[0].mxu0
      %v2906 = vadd.f32 %v2742, %v2905
      %v2907 = vpop.f32.mrb[0].mxu0
      %v2908 = vpop.f32.mrb[0].mxu0
      %v2909 = vadd.f32 %v2742, %v2908
      %v2910 = vpop.f32.mrb[0].mxu0
      %2911 = vmatprep.mubr.bf16.mxu0 0
      %2912 = vmatmul.mubr.bf16.gmra.mrb[0].mxu0 %v2721
      %v2913 = vpop.f32.mrb[0].mxu0
      %v2914 = vadd.f32 %v2742, %v2913
      %v2915 = vpop.f32.mrb[0].mxu0
      %v2916 = vpop.f32.mrb[0].mxu0
      %v2917 = vadd.f32 %v2742, %v2916
      %v2918 = vpop.f32.mrb[0].mxu0
      %2919 = vmatprep.mubr.bf16.mxu0 0
      %2920 = vmatmul.mubr.bf16.gmra.mrb[0].mxu0 %v2722
      %v2921 = vpop.f32.mrb[0].mxu0
      %v2922 = vadd.f32 %v2742, %v2921
      %v2923 = vpop.f32.mrb[0].mxu0
      %v2924 = vpop.f32.mrb[0].mxu0
      %v2925 = vadd.f32 %v2742, %v2924
      %v2926 = vpop.f32.mrb[0].mxu0
      %2927 = vmatprep.mubr.bf16.mxu0 0
      %2928 = vmatmul.mubr.bf16.gmra.mrb[0].mxu0 %v2723
      %v2929 = vpop.f32.mrb[0].mxu0
      %v2930 = vadd.f32 %v2742, %v2929
      %v2931 = vpop.f32.mrb[0].mxu0
      %v2932 = vpop.f32.mrb[0].mxu0
      %v2933 = vadd.f32 %v2742, %v2932
      %v2934 = vpop.f32.mrb[0].mxu0
      %2935 = vmatprep.mubr.bf16.mxu0 0
      %2936 = vmatmul.mubr.bf16.gmra.mrb[0].mxu0 %v2724
      %v2937 = vpop.f32.mrb[0].mxu0
      %v2938 = vadd.f32 %v2742, %v2937
      %v2939 = vpop.f32.mrb[0].mxu0
      %v2940 = vpop.f32.mrb[0].mxu0
      %v2941 = vadd.f32 %v2742, %v2940
      %v2942 = vpop.f32.mrb[0].mxu0
      %2943 = vmatprep.mubr.bf16.mxu0 0
      %2944 = vmatmul.mubr.bf16.gmra.mrb[0].mxu0 %v2725
      %v2945 = vpop.f32.mrb[0].mxu0
      %v2946 = vadd.f32 %v2742, %v2945
      %v2947 = vpop.f32.mrb[0].mxu0
      %v2948 = vpop.f32.mrb[0].mxu0
      %v2949 = vadd.f32 %v2742, %v2948
      %v2950 = vpop.f32.mrb[0].mxu0
      %2951 = vdwg.mxu0
      %v2952 = vlaneseq
      %v2953 = vand.u32 %v2952, 127
      %vm2954 = vcmp.eq.s32.totalorder %v2953, 3
      %2956 = vset.pattern.permute.xlu0 0
      %2957 = vperm.xlu0 %2956, %v1420
      %v2958 = vpop.permute.xlu0 %2957
      %2961 = vset.pattern.permute.xlu0 0
      %2962 = vperm.xlu0 %2961, %v1421
      %v2963 = vpop.permute.xlu0 %2962
      %2966 = vset.pattern.permute.xlu0 0
      %2967 = vperm.xlu0 %2966, %v1422
      %v2968 = vpop.permute.xlu0 %2967
      %2971 = vset.pattern.permute.xlu0 0
      %2972 = vperm.xlu0 %2971, %v1423
      %v2973 = vpop.permute.xlu0 %2972
      %2976 = vset.pattern.permute.xlu0 0
      %2977 = vperm.xlu0 %2976, %v1424
      %v2978 = vpop.permute.xlu0 %2977
      %2981 = vset.pattern.permute.xlu0 0
      %2982 = vperm.xlu0 %2981, %v1425
      %v2983 = vpop.permute.xlu0 %2982
      %2986 = vset.pattern.permute.xlu0 0
      %2987 = vperm.xlu0 %2986, %v1426
      %v2988 = vpop.permute.xlu0 %2987
      %2991 = vset.pattern.permute.xlu0 0
      %2992 = vperm.xlu0 %2991, %v1427
      %v2993 = vpop.permute.xlu0 %2992
      %2996 = vset.pattern.permute.xlu0 0
      %2997 = vperm.xlu0 %2996, %v1428
      %v2998 = vpop.permute.xlu0 %2997
      %3001 = vset.pattern.permute.xlu0 0
      %3002 = vperm.xlu0 %3001, %v1429
      %v3003 = vpop.permute.xlu0 %3002
      %3006 = vset.pattern.permute.xlu0 0
      %3007 = vperm.xlu0 %3006, %v1430
      %v3008 = vpop.permute.xlu0 %3007
      %3011 = vset.pattern.permute.xlu0 0
      %3012 = vperm.xlu0 %3011, %v1431
      %v3013 = vpop.permute.xlu0 %3012
      %3016 = vset.pattern.permute.xlu0 0
      %3017 = vperm.xlu0 %3016, %v1432
      %v3018 = vpop.permute.xlu0 %3017
      %3021 = vset.pattern.permute.xlu0 0
      %3022 = vperm.xlu0 %3021, %v1433
      %v3023 = vpop.permute.xlu0 %3022
      %3026 = vset.pattern.permute.xlu0 0
      %3027 = vperm.xlu0 %3026, %v1434
      %v3028 = vpop.permute.xlu0 %3027
      %3031 = vset.pattern.permute.xlu0 0
      %3032 = vperm.xlu0 %3031, %v1435
      %v3033 = vpop.permute.xlu0 %3032
      %3036 = vset.pattern.permute.xlu0 0
      %3037 = vperm.xlu0 %3036, %v1436
      %v3038 = vpop.permute.xlu0 %3037
      %3041 = vset.pattern.permute.xlu0 0
      %3042 = vperm.xlu0 %3041, %v1437
      %v3043 = vpop.permute.xlu0 %3042
      %3046 = vset.pattern.permute.xlu0 0
      %3047 = vperm.xlu0 %3046, %v1438
      %v3048 = vpop.permute.xlu0 %3047
      %3051 = vset.pattern.permute.xlu0 0
      %3052 = vperm.xlu0 %3051, %v1439
      %v3053 = vpop.permute.xlu0 %3052
      %3056 = vset.pattern.permute.xlu0 0
      %3057 = vperm.xlu0 %3056, %v1440
      %v3058 = vpop.permute.xlu0 %3057
      %3061 = vset.pattern.permute.xlu0 0
      %3062 = vperm.xlu0 %3061, %v1441
      %v3063 = vpop.permute.xlu0 %3062
      %3066 = vset.pattern.permute.xlu0 0
      %3067 = vperm.xlu0 %3066, %v1442
      %v3068 = vpop.permute.xlu0 %3067
      %3071 = vset.pattern.permute.xlu0 0
      %3072 = vperm.xlu0 %3071, %v1443
      %v3073 = vpop.permute.xlu0 %3072
      %3076 = vset.pattern.permute.xlu0 0
      %3077 = vperm.xlu0 %3076, %v1444
      %v3078 = vpop.permute.xlu0 %3077
      %3081 = vset.pattern.permute.xlu0 0
      %3082 = vperm.xlu0 %3081, %v1445
      %v3083 = vpop.permute.xlu0 %3082
      %3086 = vset.pattern.permute.xlu0 0
      %3087 = vperm.xlu0 %3086, %v1446
      %v3088 = vpop.permute.xlu0 %3087
      %3091 = vset.pattern.permute.xlu0 0
      %3092 = vperm.xlu0 %3091, %v1447
      %v3093 = vpop.permute.xlu0 %3092
      %3096 = vset.pattern.permute.xlu0 0
      %3097 = vperm.xlu0 %3096, %v1448
      %v3098 = vpop.permute.xlu0 %3097
      %3101 = vset.pattern.permute.xlu0 0
      %3102 = vperm.xlu0 %3101, %v1449
      %v3103 = vpop.permute.xlu0 %3102
      %3106 = vset.pattern.permute.xlu0 0
      %3107 = vperm.xlu0 %3106, %v1450
      %v3108 = vpop.permute.xlu0 %3107
      %3111 = vset.pattern.permute.xlu0 0
      %3112 = vperm.xlu0 %3111, %v1451
      %v3113 = vpop.permute.xlu0 %3112
      %v3115 = vsel %vm2954, %v2958, %v2826
      %v3116 = vsel %vm2954, %v2963, %v2829
      %v3117 = vsel %vm2954, %v2968, %v2834
      %v3118 = vsel %vm2954, %v2973, %v2837
      %v3119 = vsel %vm2954, %v2978, %v2842
      %v3120 = vsel %vm2954, %v2983, %v2845
      %v3121 = vsel %vm2954, %v2988, %v2850
      %v3122 = vsel %vm2954, %v2993, %v2853
      %v3123 = vsel %vm2954, %v2998, %v2858
      %v3124 = vsel %vm2954, %v3003, %v2861
      %v3125 = vsel %vm2954, %v3008, %v2866
      %v3126 = vsel %vm2954, %v3013, %v2869
      %v3127 = vsel %vm2954, %v3018, %v2874
      %v3128 = vsel %vm2954, %v3023, %v2877
      %v3129 = vsel %vm2954, %v3028, %v2882
      %v3130 = vsel %vm2954, %v3033, %v2885
      %v3131 = vsel %vm2954, %v3038, %v2890
      %v3132 = vsel %vm2954, %v3043, %v2893
      %v3133 = vsel %vm2954, %v3048, %v2898
      %v3134 = vsel %vm2954, %v3053, %v2901
      %v3135 = vsel %vm2954, %v3058, %v2906
      %v3136 = vsel %vm2954, %v3063, %v2909
      %v3137 = vsel %vm2954, %v3068, %v2914
      %v3138 = vsel %vm2954, %v3073, %v2917
      %v3139 = vsel %vm2954, %v3078, %v2922
      %v3140 = vsel %vm2954, %v3083, %v2925
      %v3141 = vsel %vm2954, %v3088, %v2930
      %v3142 = vsel %vm2954, %v3093, %v2933
      %v3143 = vsel %vm2954, %v3098, %v2938
      %v3144 = vsel %vm2954, %v3103, %v2941
      %v3145 = vsel %vm2954, %v3108, %v2946
      %v3146 = vsel %vm2954, %v3113, %v2949
      %vm3147 = vcmask 31744
      %3148 = vst.msk [vmem:[%s226] sm:$0xff] %vm3147, %v3115
      %3149 = vst.msk [vmem:[%s226 + $0x8] sm:$0xff] %vm3147, %v3116
      %3150 = vst.msk [vmem:[%s226 + $0x10] sm:$0xff] %vm3147, %v3117
      %3151 = vst.msk [vmem:[%s226 + $0x18] sm:$0xff] %vm3147, %v3118
      %3152 = vst.msk [vmem:[%s226 + $0x20] sm:$0xff] %vm3147, %v3119
      %3153 = vst.msk [vmem:[%s226 + $0x28] sm:$0xff] %vm3147, %v3120
      %3154 = vst.msk [vmem:[%s226 + $0x30] sm:$0xff] %vm3147, %v3121
      %3155 = vst.msk [vmem:[%s226 + $0x38] sm:$0xff] %vm3147, %v3122
      %3156 = vst.msk [vmem:[%s226 + $0x40] sm:$0xff] %vm3147, %v3123
      %3157 = vst.msk [vmem:[%s226 + $0x48] sm:$0xff] %vm3147, %v3124
      %3158 = vst.msk [vmem:[%s226 + $0x50] sm:$0xff] %vm3147, %v3125
      %3159 = vst.msk [vmem:[%s226 + $0x58] sm:$0xff] %vm3147, %v3126
      %3160 = vst.msk [vmem:[%s226 + $0x60] sm:$0xff] %vm3147, %v3127
      %3161 = vst.msk [vmem:[%s226 + $0x68] sm:$0xff] %vm3147, %v3128
      %3162 = vst.msk [vmem:[%s226 + $0x70] sm:$0xff] %vm3147, %v3129
      %3163 = vst.msk [vmem:[%s226 + $0x78] sm:$0xff] %vm3147, %v3130
      %3164 = vst.msk [vmem:[%s226 + $0x80] sm:$0xff] %vm3147, %v3131
      %3165 = vst.msk [vmem:[%s226 + $0x88] sm:$0xff] %vm3147, %v3132
      %3166 = vst.msk [vmem:[%s226 + $0x90] sm:$0xff] %vm3147, %v3133
      %3167 = vst.msk [vmem:[%s226 + $0x98] sm:$0xff] %vm3147, %v3134
      %3168 = vst.msk [vmem:[%s226 + $0xa0] sm:$0xff] %vm3147, %v3135
      %3169 = vst.msk [vmem:[%s226 + $0xa8] sm:$0xff] %vm3147, %v3136
      %3170 = vst.msk [vmem:[%s226 + $0xb0] sm:$0xff] %vm3147, %v3137
      %3171 = vst.msk [vmem:[%s226 + $0xb8] sm:$0xff] %vm3147, %v3138
      %3172 = vst.msk [vmem:[%s226 + $0xc0] sm:$0xff] %vm3147, %v3139
      %3173 = vst.msk [vmem:[%s226 + $0xc8] sm:$0xff] %vm3147, %v3140
      %3174 = vst.msk [vmem:[%s226 + $0xd0] sm:$0xff] %vm3147, %v3141
      %3175 = vst.msk [vmem:[%s226 + $0xd8] sm:$0xff] %vm3147, %v3142
      %3176 = vst.msk [vmem:[%s226 + $0xe0] sm:$0xff] %vm3147, %v3143
      %3177 = vst.msk [vmem:[%s226 + $0xe8] sm:$0xff] %vm3147, %v3144
      %3178 = vst.msk [vmem:[%s226 + $0xf0] sm:$0xff] %vm3147, %v3145
      %3179 = vst.msk [vmem:[%s226 + $0xf8] sm:$0xff] %vm3147, %v3146
      %s3180 = smul.u32 32, %s16
      %p3181 = scmp.lt.s32.totalorder %s3180, 127
      %s3182 = scalar_select %p3181, %s3180, 127
      %s3183 = smul.addr %s3182, 8
      %s3184 = scalar_lea.vmem %s5, %s3183
      // Predicated region
      $region41: #{replicate_nerf_forward.1} parent=39 // pred_check
        %p3185 = pneg %p144
      $region42: #{replicate_nerf_forward.1} parent=39 // pred_check_branch
        %3187 = sbr.rel (%p3185) target = $region44
      $region43: #{replicate_nerf_forward.1} parent=39 // pred_region
        %s3188 = smul.u32 32, %s16
      $region44: #{replicate_nerf_forward.1} parent=39 // pred_fallthru
        _
    $region40: #{replicate_nerf_forward.1} parent=5 // pred_fallthru
      _
    %p3189 = scmp.le.s32.totalorder 2, %s11
    // Predicated region
    $region45: #{replicate_nerf_forward.1} parent=5 // pred_check
      %p3190 = pneg %p3189
    $region46: #{replicate_nerf_forward.1} parent=5 // pred_check_branch
      %3192 = sbr.rel (%p3190) target = $region48
    $region47: #{replicate_nerf_forward.1} parent=5 // pred_region
      %s3193 = ssub.s32 %s11, 2
      // Predicated region
      $region49: #{replicate_nerf_forward.1} parent=47 // pred_check
        %p3194 = pneg %p150
      $region50: #{replicate_nerf_forward.1} parent=47 // pred_check_branch
        %3196 = sbr.rel (%p3194) target = $region52
      $region51: #{replicate_nerf_forward.1} parent=47 // pred_region
        %s3197 = smul.u32 32, %s17
        %p3198 = scmp.lt.s32.totalorder %s3197, 127
        %s3199 = scalar_select %p3198, %s3197, 127
        %s3200 = smul.addr %s3199, 8
        %s3201 = scalar_lea.vmem %s5, %s3200
      $region52: #{replicate_nerf_forward.1} parent=47 // pred_fallthru
        _
    $region48: #{replicate_nerf_forward.1} parent=5 // pred_fallthru
      _
  $region6: #{replicate_nerf_forward.1} parent=0 // loop_footer
    %s15 = sadd.s32 1, %s11
  $region7: #{replicate_nerf_forward.1} parent=0 // loop_footer_branch
    %10 = sbr.rel target = $region3
  $region8: #{replicate_nerf_forward.1} parent=0 // loop_exit
    _

</llo_original>
